<compile_context>
chip_gen: v6e
topology: v6e:2x2x1
jax: 0.10.0
libtpu: 0.0.40
codegen_flags: <defaults>
</compile_context>

<pallas_src>
import jax
import jax.numpy as jnp
from jax import lax
from jax.experimental import pallas as pl
from jax.experimental.pallas import tpu as pltpu


# ---------------------------------------------------------------------------
# Kernel
# ---------------------------------------------------------------------------
def _make_kernel(Bb, N, C, H, D):
    def kernel(x_ref, wqkv_ref, bqkv_ref, wout_ref, bout_ref, kscale_ref,
               y_ref, attn_ref):
        BN = Bb * N
        # x block: (Bb, N, C) -> (Bb*N, C); layout-preserving (N % 8 == 0).
        x_bf = x_ref[...].reshape(BN, C).astype(jnp.bfloat16)

        # synaptic_weights: one MXU matmul per step, f32 accumulation.
        qkv = jnp.dot(x_bf, wqkv_ref[...],
                      preferred_element_type=jnp.float32) + bqkv_ref[...]

        # Fold neurotransmitter scaling into K (f32, before the bf16 cast):
        # kscale[j, C + h*D + d] = neuro[h, j]; ones elsewhere.
        qkv = (qkv.reshape(Bb, N, 3 * C) * kscale_ref[...]).reshape(BN, 3 * C)
        qkv_bf = qkv.astype(jnp.bfloat16)         # single hoisted cast

        # TODO(synk): for very large Bb switch this fully-unrolled loop to a
        # lax.fori_loop with dynamic_update_slice accumulators.
        p_tiles = []                              # Bb*H tiles of (N, N) f32
        hv_rows = []                              # Bb tiles of (N, C) f32
        for b in range(Bb):
            r0 = b * N
            hv_tiles = []
            for h in range(H):
                c0 = h * D
                q_h = qkv_bf[r0:r0 + N, c0:c0 + D]
                k_h = qkv_bf[r0:r0 + N, C + c0:C + c0 + D]      # pre-scaled
                v_h = qkv_bf[r0:r0 + N, 2 * C + c0:2 * C + c0 + D]

                # scores[i, j] = q_i . (neuro[h, j] * k_j)   (requires N == D)
                s = lax.dot_general(q_h, k_h, (((1,), (1,)), ((), ())),
                                    preferred_element_type=jnp.float32)

                # Exact f32 softmax (stored attention rows sum to 1).
                s = s - jnp.max(s, axis=-1, keepdims=True)
                e = jnp.exp(s)
                p = e / jnp.sum(e, axis=-1, keepdims=True)
                p_tiles.append(p)

                hv_tiles.append(jnp.dot(p.astype(jnp.bfloat16), v_h,
                                        preferred_element_type=jnp.float32))
            hv_rows.append(jnp.concatenate(hv_tiles, axis=-1))   # (N, C)

        # Lane-dense attn slab: column index = (b*H + h)*N + j.
        attn_slab = jnp.concatenate(p_tiles, axis=-1)            # (N, Bb*H*N)
        attn_ref[0] = attn_slab.astype(attn_ref.dtype)

        # Single output projection per step: (Bb*N, C) @ (C, C) on the MXU.
        hv_full = jnp.concatenate(hv_rows, axis=0).astype(jnp.bfloat16)
        y = jnp.dot(hv_full, wout_ref[...],
                    preferred_element_type=jnp.float32) + bout_ref[...]
        y_ref[...] = y.astype(y_ref.dtype)

    return kernel


# ---------------------------------------------------------------------------
# Wrapper helpers
# ---------------------------------------------------------------------------
def _num_tensorcores_per_device():
    """Best-effort TensorCore count behind one JAX device (perf hint only)."""
    try:
        kind = jax.devices()[0].device_kind.lower()
    except Exception:
        return 1
    if "v7" in kind:
        return 2
    if "v4" in kind or "v5p" in kind:
        return 2
    # "tpu v5" (no e / lite suffix) is v5p-class megacore.
    if "v5" in kind and "lite" not in kind and "v5e" not in kind:
        return 2
    return 1


def _choose_batch_block(B, N, C, H, num_tc):
    """Batch elements per grid step.

    Target exactly one grid step per TensorCore (1 on v5e/v6e, 2 on v7x) and
    grow Bb until the per-step VMEM footprint or the unroll budget is hit.
    """
    steps = max(1, min(num_tc, B))
    Bb = -(-B // steps)                                  # ceil(B / steps)
    # Per-batch-element per-step bytes: x + y blocks (double-buffered), attn
    # slab, f32+bf16 qkv intermediates, hv staging.
    per_b = (2 * (N * C * 4) * 2            # x, y blocks, x2 double-buffer
             + H * N * N * 4                # attn slab slice
             + N * 3 * C * 6                # qkv f32 + bf16
             + N * C * 6)                   # hv f32 + bf16
    vmem_budget = 12 << 20                  # conservative on every generation
    max_bb_vmem = max(1, vmem_budget // per_b)
    max_bb_unroll = 32                      # bound the unrolled instr. stream
    return max(1, min(Bb, max_bb_vmem, max_bb_unroll))


# ---------------------------------------------------------------------------
# Wrapper
# ---------------------------------------------------------------------------
def brain_inspired_attention(x, w_qkv, b_qkv, w_out, b_out, neuro, n_heads):
    """x: (B, N, C); w_qkv: (3C, C); b_qkv: (3C,); w_out: (C, C); b_out: (C,);
    neuro: (H, D). Returns (y: (B, N, C), attn: (B, H, N, N))."""
    B, N, C = x.shape
    H = n_heads
    D = C // H
    assert N == D, "PyTorch broadcasting in this module requires N == head_dim"

    num_tc = _num_tensorcores_per_device()
    Bb = _choose_batch_block(B, N, C, H, num_tc)
    num_steps = pl.cdiv(B, Bb)
    B_pad = num_steps * Bb

    # Pad batch so every grid step gets a full block (no ragged fallback).
    x_in = x if B_pad == B else jnp.pad(x, ((0, B_pad - B), (0, 0), (0, 0)))

    # Glue: pre-transpose + pre-cast linear weights (plain x @ W in-kernel).
    w_qkv_t = jnp.transpose(w_qkv).astype(jnp.bfloat16)      # (C, 3C) bf16
    w_out_t = jnp.transpose(w_out).astype(jnp.bfloat16)      # (C, C)  bf16
    b_qkv_2d = b_qkv.reshape(1, 3 * C).astype(jnp.float32)
    b_out_2d = b_out.reshape(1, C).astype(jnp.float32)

    # K-section scale: kscale[j, C + h*D + d] = neuro[h, j]; ones for Q and V.
    k_scale = jnp.repeat(jnp.transpose(neuro).astype(jnp.float32), D, axis=1)
    ones_nc = jnp.ones((N, C), jnp.float32)
    scale_full = jnp.concatenate([ones_nc, k_scale, ones_nc], axis=1)  # (N,3C)

    kernel = _make_kernel(Bb, N, C, H, D)
    slab_w = Bb * H * N

    grid_spec = pltpu.PrefetchScalarGridSpec(
        num_scalar_prefetch=0,
        grid=(num_steps,),
        in_specs=[
            pl.BlockSpec((Bb, N, C), lambda s: (s, 0, 0)),        # x
            pl.BlockSpec((C, 3 * C), lambda s: (0, 0)),           # Wqkv^T bf16
            pl.BlockSpec((1, 3 * C), lambda s: (0, 0)),           # b_qkv
            pl.BlockSpec((C, C), lambda s: (0, 0)),               # Wout^T bf16
            pl.BlockSpec((1, C), lambda s: (0, 0)),               # b_out
            pl.BlockSpec((N, 3 * C), lambda s: (0, 0)),           # K scale
        ],
        out_specs=[
            pl.BlockSpec((Bb * N, C), lambda s: (s, 0)),          # y slab
            pl.BlockSpec((1, N, slab_w), lambda s: (s, 0, 0)),    # attn slab
        ],
    )

    y_flat, attn_slab = pl.pallas_call(
        kernel,
        out_shape=(
            jax.ShapeDtypeStruct((B_pad * N, C), x.dtype),
            jax.ShapeDtypeStruct((num_steps, N, slab_w), jnp.float32),
        ),
        grid_spec=grid_spec,
        compiler_params=pltpu.CompilerParams(
            dimension_semantics=("parallel",),
            vmem_limit_bytes=32 * 1024 * 1024),
    )(x_in, w_qkv_t, b_qkv_2d, w_out_t, b_out_2d, scale_full)

    # Un-pack lane-dense outputs back to the PyTorch layouts.
    y = y_flat.reshape(B_pad, N, C)[:B]
    attn = (attn_slab.reshape(num_steps, N, Bb, H, N)
            .transpose(0, 2, 3, 1, 4)
            .reshape(B_pad, H, N, N)[:B])
    return y, attn


# ---------------------------------------------------------------------------
# Plain-JAX reference (mirrors the PyTorch forward exactly, pure f32)
# ---------------------------------------------------------------------------
def reference(x, w_qkv, b_qkv, w_out, b_out, neuro, n_heads):
    B, N, C = x.shape
    H = n_heads
    D = C // H
    qkv = x @ w_qkv.T + b_qkv                                   # (B, N, 3C)
    q, k, v = jnp.split(qkv, 3, axis=-1)

    def to_heads(t):
        return jnp.transpose(t.reshape(B, N, H, D), (0, 2, 1, 3))  # (B,H,N,D)

    q, k, v = map(to_heads, (q, k, v))
    attn = jnp.einsum("bhnd,bhmd->bhnm", q, k) * neuro.reshape(1, H, 1, D)
    attn = jax.nn.softmax(attn, axis=-1)
    out = jnp.einsum("bhnm,bhmd->bhnd", attn, v)
    out = jnp.transpose(out, (0, 2, 1, 3)).reshape(B, N, C)
    out = out @ w_out.T + b_out
    return out, attn


# ---------------------------------------------------------------------------
if __name__ == "__main__":
    # head_dim = 8 == N (required by the module's broadcast).  B=8 gives one
    # grid step on v5e/v6e (Bb=8, attn slab 256 lanes) or two "parallel"
    # steps on v7x (Bb=4, attn slab 128 lanes).
    B, N, dim, n_heads = 8, 8, 32, 4
    head_dim = dim // n_heads

    key = jax.random.PRNGKey(0)
    k_x, k_n, k_w1, k_b1, k_w2, k_b2 = jax.random.split(key, 6)

    x = jax.random.normal(k_x, (B, N, dim), dtype=jnp.float32)

    # Deterministic synthetic parameters (shapes match the PyTorch module).
    neuro = jax.random.normal(k_n, (n_heads, head_dim), dtype=jnp.float32)
    w_qkv = jax.random.normal(k_w1, (3 * dim, dim), dtype=jnp.float32) * 0.1
    b_qkv = jax.random.normal(k_b1, (3 * dim,), dtype=jnp.float32) * 0.1
    w_out = jax.random.normal(k_w2, (dim, dim), dtype=jnp.float32) * 0.1
    b_out = jax.random.normal(k_b2, (dim,), dtype=jnp.float32) * 0.1

    y, attn = brain_inspired_attention(x, w_qkv, b_qkv, w_out, b_out,
                                       neuro, n_heads)
    jax.block_until_ready((y, attn))

    # Tolerances account for bf16 MXU inputs (f32 accumulation); softmax and
    # the f32 reference (bit-exact PyTorch math) are full precision.
    y_ref, attn_ref = reference(x, w_qkv, b_qkv, w_out, b_out, neuro, n_heads)
    assert y.shape == (B, N, dim) and attn.shape == (B, n_heads, N, N)
    assert jnp.allclose(y, y_ref, atol=2e-2, rtol=2e-2), "output mismatch"
    assert jnp.allclose(attn, attn_ref, atol=2e-2, rtol=2e-2), "attn mismatch"

    print("KERNEL_OK")
</pallas_src>

<mosaic_0001>
module attributes {stable_mosaic.version = 11 : i64} {
  func.func @kernel(%arg0: i32, %arg1: memref<8x8x32xf32, #tpu.memory_space<vmem>>, %arg2: memref<32x96xbf16, #tpu.memory_space<vmem>>, %arg3: memref<1x96xf32, #tpu.memory_space<vmem>>, %arg4: memref<32x32xbf16, #tpu.memory_space<vmem>>, %arg5: memref<1x32xf32, #tpu.memory_space<vmem>>, %arg6: memref<8x96xf32, #tpu.memory_space<vmem>>, %arg7: memref<64x32xf32, #tpu.memory_space<vmem>>, %arg8: memref<1x8x256xf32, #tpu.memory_space<vmem>>) attributes {dimension_semantics = [#tpu.dimension_semantics<parallel>], iteration_bounds = array<i64: 1>, scalar_prefetch = 0 : i64, scratch_operands = 0 : i64, tpu.core_type = #tpu.core_type<tc>, window_params = [{transform_indices = @transform_0, window_bounds = array<i64: 8, 8, 32>}, {pipeline_mode = #tpu.pipeline_mode<synchronous>, transform_indices = @transform_1, window_bounds = array<i64: 32, 96>}, {pipeline_mode = #tpu.pipeline_mode<synchronous>, transform_indices = @transform_2, window_bounds = array<i64: 1, 96>}, {pipeline_mode = #tpu.pipeline_mode<synchronous>, transform_indices = @transform_3, window_bounds = array<i64: 32, 32>}, {pipeline_mode = #tpu.pipeline_mode<synchronous>, transform_indices = @transform_4, window_bounds = array<i64: 1, 32>}, {pipeline_mode = #tpu.pipeline_mode<synchronous>, transform_indices = @transform_5, window_bounds = array<i64: 8, 96>}, {transform_indices = @transform_6, window_bounds = array<i64: 64, 32>}, {transform_indices = @transform_7, window_bounds = array<i64: 1, 8, 256>}]} {
    %c0 = arith.constant 0 : index
    %c0_0 = arith.constant 0 : index
    %c0_1 = arith.constant 0 : index
    %0 = vector.load %arg1[%c0, %c0_0, %c0_1] : memref<8x8x32xf32, #tpu.memory_space<vmem>>, vector<8x8x32xf32>
    %1 = vector.shape_cast %0 : vector<8x8x32xf32> to vector<64x32xf32>
    %2 = arith.truncf %1 : vector<64x32xf32> to vector<64x32xbf16>
    %c0_2 = arith.constant 0 : index
    %c0_3 = arith.constant 0 : index
    %3 = vector.load %arg2[%c0_2, %c0_3] : memref<32x96xbf16, #tpu.memory_space<vmem>>, vector<32x96xbf16>
    %cst = arith.constant dense<0.000000e+00> : vector<64x96xf32>
    %4 = tpu.matmul %2, %3, %cst {dimension_numbers = #tpu.dot_dimension_numbers<[1], [0], [0], [1], [0, 0, 1, 1], [], []>} : vector<64x32xbf16>, vector<32x96xbf16>, vector<64x96xf32> -> vector<64x96xf32>
    %c0_4 = arith.constant 0 : index
    %c0_5 = arith.constant 0 : index
    %5 = vector.load %arg3[%c0_4, %c0_5] : memref<1x96xf32, #tpu.memory_space<vmem>>, vector<1x96xf32>
    %6 = vector.broadcast %5 : vector<1x96xf32> to vector<64x96xf32>
    %7 = arith.addf %4, %6 : vector<64x96xf32>
    %8 = vector.shape_cast %7 : vector<64x96xf32> to vector<8x8x96xf32>
    %c0_6 = arith.constant 0 : index
    %c0_7 = arith.constant 0 : index
    %9 = vector.load %arg6[%c0_6, %c0_7] : memref<8x96xf32, #tpu.memory_space<vmem>>, vector<8x96xf32>
    %10 = vector.shape_cast %9 : vector<8x96xf32> to vector<1x8x96xf32>
    %11 = vector.broadcast %10 : vector<1x8x96xf32> to vector<8x8x96xf32>
    %12 = arith.mulf %8, %11 : vector<8x8x96xf32>
    %13 = vector.shape_cast %12 : vector<8x8x96xf32> to vector<64x96xf32>
    %14 = arith.truncf %13 : vector<64x96xf32> to vector<64x96xbf16>
    %15 = vector.extract_strided_slice %14 {offsets = [0, 0], sizes = [8, 8], strides = [1, 1]} : vector<64x96xbf16> to vector<8x8xbf16>
    %16 = vector.extract_strided_slice %14 {offsets = [0, 32], sizes = [8, 8], strides = [1, 1]} : vector<64x96xbf16> to vector<8x8xbf16>
    %17 = vector.extract_strided_slice %14 {offsets = [0, 64], sizes = [8, 8], strides = [1, 1]} : vector<64x96xbf16> to vector<8x8xbf16>
    %cst_8 = arith.constant dense<0.000000e+00> : vector<8x8xf32>
    %18 = tpu.matmul %15, %16, %cst_8 {dimension_numbers = #tpu.dot_dimension_numbers<[1], [1], [0], [0], [0, 0, 1, 0], [], []>} : vector<8x8xbf16>, vector<8x8xbf16>, vector<8x8xf32> -> vector<8x8xf32>
    %cst_9 = arith.constant dense<0xFF800000> : vector<8xf32>
    %19 = vector.multi_reduction <maximumf>, %18, %cst_9 [1] : vector<8x8xf32> to vector<8xf32>
    %20 = vector.shape_cast %19 : vector<8xf32> to vector<8x1xf32>
    %21 = vector.broadcast %20 : vector<8x1xf32> to vector<8x8xf32>
    %22 = arith.subf %18, %21 : vector<8x8xf32>
    %23 = math.exp %22 : vector<8x8xf32>
    %cst_10 = arith.constant dense<0.000000e+00> : vector<8xf32>
    %24 = vector.multi_reduction <add>, %23, %cst_10 [1] : vector<8x8xf32> to vector<8xf32>
    %25 = vector.shape_cast %24 : vector<8xf32> to vector<8x1xf32>
    %26 = vector.broadcast %25 : vector<8x1xf32> to vector<8x8xf32>
    %27 = arith.divf %23, %26 : vector<8x8xf32>
    %28 = arith.truncf %27 : vector<8x8xf32> to vector<8x8xbf16>
    %cst_11 = arith.constant dense<0.000000e+00> : vector<8x8xf32>
    %29 = tpu.matmul %28, %17, %cst_11 {dimension_numbers = #tpu.dot_dimension_numbers<[1], [0], [0], [1], [0, 0, 1, 1], [], []>} : vector<8x8xbf16>, vector<8x8xbf16>, vector<8x8xf32> -> vector<8x8xf32>
    %30 = vector.extract_strided_slice %14 {offsets = [0, 8], sizes = [8, 8], strides = [1, 1]} : vector<64x96xbf16> to vector<8x8xbf16>
    %31 = vector.extract_strided_slice %14 {offsets = [0, 40], sizes = [8, 8], strides = [1, 1]} : vector<64x96xbf16> to vector<8x8xbf16>
    %32 = vector.extract_strided_slice %14 {offsets = [0, 72], sizes = [8, 8], strides = [1, 1]} : vector<64x96xbf16> to vector<8x8xbf16>
    %cst_12 = arith.constant dense<0.000000e+00> : vector<8x8xf32>
    %33 = tpu.matmul %30, %31, %cst_12 {dimension_numbers = #tpu.dot_dimension_numbers<[1], [1], [0], [0], [0, 0, 1, 0], [], []>} : vector<8x8xbf16>, vector<8x8xbf16>, vector<8x8xf32> -> vector<8x8xf32>
    %cst_13 = arith.constant dense<0xFF800000> : vector<8xf32>
    %34 = vector.multi_reduction <maximumf>, %33, %cst_13 [1] : vector<8x8xf32> to vector<8xf32>
    %35 = vector.shape_cast %34 : vector<8xf32> to vector<8x1xf32>
    %36 = vector.broadcast %35 : vector<8x1xf32> to vector<8x8xf32>
    %37 = arith.subf %33, %36 : vector<8x8xf32>
    %38 = math.exp %37 : vector<8x8xf32>
    %cst_14 = arith.constant dense<0.000000e+00> : vector<8xf32>
    %39 = vector.multi_reduction <add>, %38, %cst_14 [1] : vector<8x8xf32> to vector<8xf32>
    %40 = vector.shape_cast %39 : vector<8xf32> to vector<8x1xf32>
    %41 = vector.broadcast %40 : vector<8x1xf32> to vector<8x8xf32>
    %42 = arith.divf %38, %41 : vector<8x8xf32>
    %43 = arith.truncf %42 : vector<8x8xf32> to vector<8x8xbf16>
    %cst_15 = arith.constant dense<0.000000e+00> : vector<8x8xf32>
    %44 = tpu.matmul %43, %32, %cst_15 {dimension_numbers = #tpu.dot_dimension_numbers<[1], [0], [0], [1], [0, 0, 1, 1], [], []>} : vector<8x8xbf16>, vector<8x8xbf16>, vector<8x8xf32> -> vector<8x8xf32>
    %45 = vector.extract_strided_slice %14 {offsets = [0, 16], sizes = [8, 8], strides = [1, 1]} : vector<64x96xbf16> to vector<8x8xbf16>
    %46 = vector.extract_strided_slice %14 {offsets = [0, 48], sizes = [8, 8], strides = [1, 1]} : vector<64x96xbf16> to vector<8x8xbf16>
    %47 = vector.extract_strided_slice %14 {offsets = [0, 80], sizes = [8, 8], strides = [1, 1]} : vector<64x96xbf16> to vector<8x8xbf16>
    %cst_16 = arith.constant dense<0.000000e+00> : vector<8x8xf32>
    %48 = tpu.matmul %45, %46, %cst_16 {dimension_numbers = #tpu.dot_dimension_numbers<[1], [1], [0], [0], [0, 0, 1, 0], [], []>} : vector<8x8xbf16>, vector<8x8xbf16>, vector<8x8xf32> -> vector<8x8xf32>
    %cst_17 = arith.constant dense<0xFF800000> : vector<8xf32>
    %49 = vector.multi_reduction <maximumf>, %48, %cst_17 [1] : vector<8x8xf32> to vector<8xf32>
    %50 = vector.shape_cast %49 : vector<8xf32> to vector<8x1xf32>
    %51 = vector.broadcast %50 : vector<8x1xf32> to vector<8x8xf32>
    %52 = arith.subf %48, %51 : vector<8x8xf32>
    %53 = math.exp %52 : vector<8x8xf32>
    %cst_18 = arith.constant dense<0.000000e+00> : vector<8xf32>
    %54 = vector.multi_reduction <add>, %53, %cst_18 [1] : vector<8x8xf32> to vector<8xf32>
    %55 = vector.shape_cast %54 : vector<8xf32> to vector<8x1xf32>
    %56 = vector.broadcast %55 : vector<8x1xf32> to vector<8x8xf32>
    %57 = arith.divf %53, %56 : vector<8x8xf32>
    %58 = arith.truncf %57 : vector<8x8xf32> to vector<8x8xbf16>
    %cst_19 = arith.constant dense<0.000000e+00> : vector<8x8xf32>
    %59 = tpu.matmul %58, %47, %cst_19 {dimension_numbers = #tpu.dot_dimension_numbers<[1], [0], [0], [1], [0, 0, 1, 1], [], []>} : vector<8x8xbf16>, vector<8x8xbf16>, vector<8x8xf32> -> vector<8x8xf32>
    %60 = vector.extract_strided_slice %14 {offsets = [0, 24], sizes = [8, 8], strides = [1, 1]} : vector<64x96xbf16> to vector<8x8xbf16>
    %61 = vector.extract_strided_slice %14 {offsets = [0, 56], sizes = [8, 8], strides = [1, 1]} : vector<64x96xbf16> to vector<8x8xbf16>
    %62 = vector.extract_strided_slice %14 {offsets = [0, 88], sizes = [8, 8], strides = [1, 1]} : vector<64x96xbf16> to vector<8x8xbf16>
    %cst_20 = arith.constant dense<0.000000e+00> : vector<8x8xf32>
    %63 = tpu.matmul %60, %61, %cst_20 {dimension_numbers = #tpu.dot_dimension_numbers<[1], [1], [0], [0], [0, 0, 1, 0], [], []>} : vector<8x8xbf16>, vector<8x8xbf16>, vector<8x8xf32> -> vector<8x8xf32>
    %cst_21 = arith.constant dense<0xFF800000> : vector<8xf32>
    %64 = vector.multi_reduction <maximumf>, %63, %cst_21 [1] : vector<8x8xf32> to vector<8xf32>
    %65 = vector.shape_cast %64 : vector<8xf32> to vector<8x1xf32>
    %66 = vector.broadcast %65 : vector<8x1xf32> to vector<8x8xf32>
    %67 = arith.subf %63, %66 : vector<8x8xf32>
    %68 = math.exp %67 : vector<8x8xf32>
    %cst_22 = arith.constant dense<0.000000e+00> : vector<8xf32>
    %69 = vector.multi_reduction <add>, %68, %cst_22 [1] : vector<8x8xf32> to vector<8xf32>
    %70 = vector.shape_cast %69 : vector<8xf32> to vector<8x1xf32>
    %71 = vector.broadcast %70 : vector<8x1xf32> to vector<8x8xf32>
    %72 = arith.divf %68, %71 : vector<8x8xf32>
    %73 = arith.truncf %72 : vector<8x8xf32> to vector<8x8xbf16>
    %cst_23 = arith.constant dense<0.000000e+00> : vector<8x8xf32>
    %74 = tpu.matmul %73, %62, %cst_23 {dimension_numbers = #tpu.dot_dimension_numbers<[1], [0], [0], [1], [0, 0, 1, 1], [], []>} : vector<8x8xbf16>, vector<8x8xbf16>, vector<8x8xf32> -> vector<8x8xf32>
    %75 = tpu.concatenate %29, %44, %59, %74 in 1 : vector<8x8xf32>, vector<8x8xf32>, vector<8x8xf32>, vector<8x8xf32> -> vector<8x32xf32>
    %76 = vector.extract_strided_slice %14 {offsets = [8, 0], sizes = [8, 8], strides = [1, 1]} : vector<64x96xbf16> to vector<8x8xbf16>
    %77 = vector.extract_strided_slice %14 {offsets = [8, 32], sizes = [8, 8], strides = [1, 1]} : vector<64x96xbf16> to vector<8x8xbf16>
    %78 = vector.extract_strided_slice %14 {offsets = [8, 64], sizes = [8, 8], strides = [1, 1]} : vector<64x96xbf16> to vector<8x8xbf16>
    %cst_24 = arith.constant dense<0.000000e+00> : vector<8x8xf32>
    %79 = tpu.matmul %76, %77, %cst_24 {dimension_numbers = #tpu.dot_dimension_numbers<[1], [1], [0], [0], [0, 0, 1, 0], [], []>} : vector<8x8xbf16>, vector<8x8xbf16>, vector<8x8xf32> -> vector<8x8xf32>
    %cst_25 = arith.constant dense<0xFF800000> : vector<8xf32>
    %80 = vector.multi_reduction <maximumf>, %79, %cst_25 [1] : vector<8x8xf32> to vector<8xf32>
    %81 = vector.shape_cast %80 : vector<8xf32> to vector<8x1xf32>
    %82 = vector.broadcast %81 : vector<8x1xf32> to vector<8x8xf32>
    %83 = arith.subf %79, %82 : vector<8x8xf32>
    %84 = math.exp %83 : vector<8x8xf32>
    %cst_26 = arith.constant dense<0.000000e+00> : vector<8xf32>
    %85 = vector.multi_reduction <add>, %84, %cst_26 [1] : vector<8x8xf32> to vector<8xf32>
    %86 = vector.shape_cast %85 : vector<8xf32> to vector<8x1xf32>
    %87 = vector.broadcast %86 : vector<8x1xf32> to vector<8x8xf32>
    %88 = arith.divf %84, %87 : vector<8x8xf32>
    %89 = arith.truncf %88 : vector<8x8xf32> to vector<8x8xbf16>
    %cst_27 = arith.constant dense<0.000000e+00> : vector<8x8xf32>
    %90 = tpu.matmul %89, %78, %cst_27 {dimension_numbers = #tpu.dot_dimension_numbers<[1], [0], [0], [1], [0, 0, 1, 1], [], []>} : vector<8x8xbf16>, vector<8x8xbf16>, vector<8x8xf32> -> vector<8x8xf32>
    %91 = vector.extract_strided_slice %14 {offsets = [8, 8], sizes = [8, 8], strides = [1, 1]} : vector<64x96xbf16> to vector<8x8xbf16>
    %92 = vector.extract_strided_slice %14 {offsets = [8, 40], sizes = [8, 8], strides = [1, 1]} : vector<64x96xbf16> to vector<8x8xbf16>
    %93 = vector.extract_strided_slice %14 {offsets = [8, 72], sizes = [8, 8], strides = [1, 1]} : vector<64x96xbf16> to vector<8x8xbf16>
    %cst_28 = arith.constant dense<0.000000e+00> : vector<8x8xf32>
    %94 = tpu.matmul %91, %92, %cst_28 {dimension_numbers = #tpu.dot_dimension_numbers<[1], [1], [0], [0], [0, 0, 1, 0], [], []>} : vector<8x8xbf16>, vector<8x8xbf16>, vector<8x8xf32> -> vector<8x8xf32>
    %cst_29 = arith.constant dense<0xFF800000> : vector<8xf32>
    %95 = vector.multi_reduction <maximumf>, %94, %cst_29 [1] : vector<8x8xf32> to vector<8xf32>
    %96 = vector.shape_cast %95 : vector<8xf32> to vector<8x1xf32>
    %97 = vector.broadcast %96 : vector<8x1xf32> to vector<8x8xf32>
    %98 = arith.subf %94, %97 : vector<8x8xf32>
    %99 = math.exp %98 : vector<8x8xf32>
    %cst_30 = arith.constant dense<0.000000e+00> : vector<8xf32>
    %100 = vector.multi_reduction <add>, %99, %cst_30 [1] : vector<8x8xf32> to vector<8xf32>
    %101 = vector.shape_cast %100 : vector<8xf32> to vector<8x1xf32>
    %102 = vector.broadcast %101 : vector<8x1xf32> to vector<8x8xf32>
    %103 = arith.divf %99, %102 : vector<8x8xf32>
    %104 = arith.truncf %103 : vector<8x8xf32> to vector<8x8xbf16>
    %cst_31 = arith.constant dense<0.000000e+00> : vector<8x8xf32>
    %105 = tpu.matmul %104, %93, %cst_31 {dimension_numbers = #tpu.dot_dimension_numbers<[1], [0], [0], [1], [0, 0, 1, 1], [], []>} : vector<8x8xbf16>, vector<8x8xbf16>, vector<8x8xf32> -> vector<8x8xf32>
    %106 = vector.extract_strided_slice %14 {offsets = [8, 16], sizes = [8, 8], strides = [1, 1]} : vector<64x96xbf16> to vector<8x8xbf16>
    %107 = vector.extract_strided_slice %14 {offsets = [8, 48], sizes = [8, 8], strides = [1, 1]} : vector<64x96xbf16> to vector<8x8xbf16>
    %108 = vector.extract_strided_slice %14 {offsets = [8, 80], sizes = [8, 8], strides = [1, 1]} : vector<64x96xbf16> to vector<8x8xbf16>
    %cst_32 = arith.constant dense<0.000000e+00> : vector<8x8xf32>
    %109 = tpu.matmul %106, %107, %cst_32 {dimension_numbers = #tpu.dot_dimension_numbers<[1], [1], [0], [0], [0, 0, 1, 0], [], []>} : vector<8x8xbf16>, vector<8x8xbf16>, vector<8x8xf32> -> vector<8x8xf32>
    %cst_33 = arith.constant dense<0xFF800000> : vector<8xf32>
    %110 = vector.multi_reduction <maximumf>, %109, %cst_33 [1] : vector<8x8xf32> to vector<8xf32>
    %111 = vector.shape_cast %110 : vector<8xf32> to vector<8x1xf32>
    %112 = vector.broadcast %111 : vector<8x1xf32> to vector<8x8xf32>
    %113 = arith.subf %109, %112 : vector<8x8xf32>
    %114 = math.exp %113 : vector<8x8xf32>
    %cst_34 = arith.constant dense<0.000000e+00> : vector<8xf32>
    %115 = vector.multi_reduction <add>, %114, %cst_34 [1] : vector<8x8xf32> to vector<8xf32>
    %116 = vector.shape_cast %115 : vector<8xf32> to vector<8x1xf32>
    %117 = vector.broadcast %116 : vector<8x1xf32> to vector<8x8xf32>
    %118 = arith.divf %114, %117 : vector<8x8xf32>
    %119 = arith.truncf %118 : vector<8x8xf32> to vector<8x8xbf16>
    %cst_35 = arith.constant dense<0.000000e+00> : vector<8x8xf32>
    %120 = tpu.matmul %119, %108, %cst_35 {dimension_numbers = #tpu.dot_dimension_numbers<[1], [0], [0], [1], [0, 0, 1, 1], [], []>} : vector<8x8xbf16>, vector<8x8xbf16>, vector<8x8xf32> -> vector<8x8xf32>
    %121 = vector.extract_strided_slice %14 {offsets = [8, 24], sizes = [8, 8], strides = [1, 1]} : vector<64x96xbf16> to vector<8x8xbf16>
    %122 = vector.extract_strided_slice %14 {offsets = [8, 56], sizes = [8, 8], strides = [1, 1]} : vector<64x96xbf16> to vector<8x8xbf16>
    %123 = vector.extract_strided_slice %14 {offsets = [8, 88], sizes = [8, 8], strides = [1, 1]} : vector<64x96xbf16> to vector<8x8xbf16>
    %cst_36 = arith.constant dense<0.000000e+00> : vector<8x8xf32>
    %124 = tpu.matmul %121, %122, %cst_36 {dimension_numbers = #tpu.dot_dimension_numbers<[1], [1], [0], [0], [0, 0, 1, 0], [], []>} : vector<8x8xbf16>, vector<8x8xbf16>, vector<8x8xf32> -> vector<8x8xf32>
    %cst_37 = arith.constant dense<0xFF800000> : vector<8xf32>
    %125 = vector.multi_reduction <maximumf>, %124, %cst_37 [1] : vector<8x8xf32> to vector<8xf32>
    %126 = vector.shape_cast %125 : vector<8xf32> to vector<8x1xf32>
    %127 = vector.broadcast %126 : vector<8x1xf32> to vector<8x8xf32>
    %128 = arith.subf %124, %127 : vector<8x8xf32>
    %129 = math.exp %128 : vector<8x8xf32>
    %cst_38 = arith.constant dense<0.000000e+00> : vector<8xf32>
    %130 = vector.multi_reduction <add>, %129, %cst_38 [1] : vector<8x8xf32> to vector<8xf32>
    %131 = vector.shape_cast %130 : vector<8xf32> to vector<8x1xf32>
    %132 = vector.broadcast %131 : vector<8x1xf32> to vector<8x8xf32>
    %133 = arith.divf %129, %132 : vector<8x8xf32>
    %134 = arith.truncf %133 : vector<8x8xf32> to vector<8x8xbf16>
    %cst_39 = arith.constant dense<0.000000e+00> : vector<8x8xf32>
    %135 = tpu.matmul %134, %123, %cst_39 {dimension_numbers = #tpu.dot_dimension_numbers<[1], [0], [0], [1], [0, 0, 1, 1], [], []>} : vector<8x8xbf16>, vector<8x8xbf16>, vector<8x8xf32> -> vector<8x8xf32>
    %136 = tpu.concatenate %90, %105, %120, %135 in 1 : vector<8x8xf32>, vector<8x8xf32>, vector<8x8xf32>, vector<8x8xf32> -> vector<8x32xf32>
    %137 = vector.extract_strided_slice %14 {offsets = [16, 0], sizes = [8, 8], strides = [1, 1]} : vector<64x96xbf16> to vector<8x8xbf16>
    %138 = vector.extract_strided_slice %14 {offsets = [16, 32], sizes = [8, 8], strides = [1, 1]} : vector<64x96xbf16> to vector<8x8xbf16>
    %139 = vector.extract_strided_slice %14 {offsets = [16, 64], sizes = [8, 8], strides = [1, 1]} : vector<64x96xbf16> to vector<8x8xbf16>
    %cst_40 = arith.constant dense<0.000000e+00> : vector<8x8xf32>
    %140 = tpu.matmul %137, %138, %cst_40 {dimension_numbers = #tpu.dot_dimension_numbers<[1], [1], [0], [0], [0, 0, 1, 0], [], []>} : vector<8x8xbf16>, vector<8x8xbf16>, vector<8x8xf32> -> vector<8x8xf32>
    %cst_41 = arith.constant dense<0xFF800000> : vector<8xf32>
    %141 = vector.multi_reduction <maximumf>, %140, %cst_41 [1] : vector<8x8xf32> to vector<8xf32>
    %142 = vector.shape_cast %141 : vector<8xf32> to vector<8x1xf32>
    %143 = vector.broadcast %142 : vector<8x1xf32> to vector<8x8xf32>
    %144 = arith.subf %140, %143 : vector<8x8xf32>
    %145 = math.exp %144 : vector<8x8xf32>
    %cst_42 = arith.constant dense<0.000000e+00> : vector<8xf32>
    %146 = vector.multi_reduction <add>, %145, %cst_42 [1] : vector<8x8xf32> to vector<8xf32>
    %147 = vector.shape_cast %146 : vector<8xf32> to vector<8x1xf32>
    %148 = vector.broadcast %147 : vector<8x1xf32> to vector<8x8xf32>
    %149 = arith.divf %145, %148 : vector<8x8xf32>
    %150 = arith.truncf %149 : vector<8x8xf32> to vector<8x8xbf16>
    %cst_43 = arith.constant dense<0.000000e+00> : vector<8x8xf32>
    %151 = tpu.matmul %150, %139, %cst_43 {dimension_numbers = #tpu.dot_dimension_numbers<[1], [0], [0], [1], [0, 0, 1, 1], [], []>} : vector<8x8xbf16>, vector<8x8xbf16>, vector<8x8xf32> -> vector<8x8xf32>
    %152 = vector.extract_strided_slice %14 {offsets = [16, 8], sizes = [8, 8], strides = [1, 1]} : vector<64x96xbf16> to vector<8x8xbf16>
    %153 = vector.extract_strided_slice %14 {offsets = [16, 40], sizes = [8, 8], strides = [1, 1]} : vector<64x96xbf16> to vector<8x8xbf16>
    %154 = vector.extract_strided_slice %14 {offsets = [16, 72], sizes = [8, 8], strides = [1, 1]} : vector<64x96xbf16> to vector<8x8xbf16>
    %cst_44 = arith.constant dense<0.000000e+00> : vector<8x8xf32>
    %155 = tpu.matmul %152, %153, %cst_44 {dimension_numbers = #tpu.dot_dimension_numbers<[1], [1], [0], [0], [0, 0, 1, 0], [], []>} : vector<8x8xbf16>, vector<8x8xbf16>, vector<8x8xf32> -> vector<8x8xf32>
    %cst_45 = arith.constant dense<0xFF800000> : vector<8xf32>
    %156 = vector.multi_reduction <maximumf>, %155, %cst_45 [1] : vector<8x8xf32> to vector<8xf32>
    %157 = vector.shape_cast %156 : vector<8xf32> to vector<8x1xf32>
    %158 = vector.broadcast %157 : vector<8x1xf32> to vector<8x8xf32>
    %159 = arith.subf %155, %158 : vector<8x8xf32>
    %160 = math.exp %159 : vector<8x8xf32>
    %cst_46 = arith.constant dense<0.000000e+00> : vector<8xf32>
    %161 = vector.multi_reduction <add>, %160, %cst_46 [1] : vector<8x8xf32> to vector<8xf32>
    %162 = vector.shape_cast %161 : vector<8xf32> to vector<8x1xf32>
    %163 = vector.broadcast %162 : vector<8x1xf32> to vector<8x8xf32>
    %164 = arith.divf %160, %163 : vector<8x8xf32>
    %165 = arith.truncf %164 : vector<8x8xf32> to vector<8x8xbf16>
    %cst_47 = arith.constant dense<0.000000e+00> : vector<8x8xf32>
    %166 = tpu.matmul %165, %154, %cst_47 {dimension_numbers = #tpu.dot_dimension_numbers<[1], [0], [0], [1], [0, 0, 1, 1], [], []>} : vector<8x8xbf16>, vector<8x8xbf16>, vector<8x8xf32> -> vector<8x8xf32>
    %167 = vector.extract_strided_slice %14 {offsets = [16, 16], sizes = [8, 8], strides = [1, 1]} : vector<64x96xbf16> to vector<8x8xbf16>
    %168 = vector.extract_strided_slice %14 {offsets = [16, 48], sizes = [8, 8], strides = [1, 1]} : vector<64x96xbf16> to vector<8x8xbf16>
    %169 = vector.extract_strided_slice %14 {offsets = [16, 80], sizes = [8, 8], strides = [1, 1]} : vector<64x96xbf16> to vector<8x8xbf16>
    %cst_48 = arith.constant dense<0.000000e+00> : vector<8x8xf32>
    %170 = tpu.matmul %167, %168, %cst_48 {dimension_numbers = #tpu.dot_dimension_numbers<[1], [1], [0], [0], [0, 0, 1, 0], [], []>} : vector<8x8xbf16>, vector<8x8xbf16>, vector<8x8xf32> -> vector<8x8xf32>
    %cst_49 = arith.constant dense<0xFF800000> : vector<8xf32>
    %171 = vector.multi_reduction <maximumf>, %170, %cst_49 [1] : vector<8x8xf32> to vector<8xf32>
    %172 = vector.shape_cast %171 : vector<8xf32> to vector<8x1xf32>
    %173 = vector.broadcast %172 : vector<8x1xf32> to vector<8x8xf32>
    %174 = arith.subf %170, %173 : vector<8x8xf32>
    %175 = math.exp %174 : vector<8x8xf32>
    %cst_50 = arith.constant dense<0.000000e+00> : vector<8xf32>
    %176 = vector.multi_reduction <add>, %175, %cst_50 [1] : vector<8x8xf32> to vector<8xf32>
    %177 = vector.shape_cast %176 : vector<8xf32> to vector<8x1xf32>
    %178 = vector.broadcast %177 : vector<8x1xf32> to vector<8x8xf32>
    %179 = arith.divf %175, %178 : vector<8x8xf32>
    %180 = arith.truncf %179 : vector<8x8xf32> to vector<8x8xbf16>
    %cst_51 = arith.constant dense<0.000000e+00> : vector<8x8xf32>
    %181 = tpu.matmul %180, %169, %cst_51 {dimension_numbers = #tpu.dot_dimension_numbers<[1], [0], [0], [1], [0, 0, 1, 1], [], []>} : vector<8x8xbf16>, vector<8x8xbf16>, vector<8x8xf32> -> vector<8x8xf32>
    %182 = vector.extract_strided_slice %14 {offsets = [16, 24], sizes = [8, 8], strides = [1, 1]} : vector<64x96xbf16> to vector<8x8xbf16>
    %183 = vector.extract_strided_slice %14 {offsets = [16, 56], sizes = [8, 8], strides = [1, 1]} : vector<64x96xbf16> to vector<8x8xbf16>
    %184 = vector.extract_strided_slice %14 {offsets = [16, 88], sizes = [8, 8], strides = [1, 1]} : vector<64x96xbf16> to vector<8x8xbf16>
    %cst_52 = arith.constant dense<0.000000e+00> : vector<8x8xf32>
    %185 = tpu.matmul %182, %183, %cst_52 {dimension_numbers = #tpu.dot_dimension_numbers<[1], [1], [0], [0], [0, 0, 1, 0], [], []>} : vector<8x8xbf16>, vector<8x8xbf16>, vector<8x8xf32> -> vector<8x8xf32>
    %cst_53 = arith.constant dense<0xFF800000> : vector<8xf32>
    %186 = vector.multi_reduction <maximumf>, %185, %cst_53 [1] : vector<8x8xf32> to vector<8xf32>
    %187 = vector.shape_cast %186 : vector<8xf32> to vector<8x1xf32>
    %188 = vector.broadcast %187 : vector<8x1xf32> to vector<8x8xf32>
    %189 = arith.subf %185, %188 : vector<8x8xf32>
    %190 = math.exp %189 : vector<8x8xf32>
    %cst_54 = arith.constant dense<0.000000e+00> : vector<8xf32>
    %191 = vector.multi_reduction <add>, %190, %cst_54 [1] : vector<8x8xf32> to vector<8xf32>
    %192 = vector.shape_cast %191 : vector<8xf32> to vector<8x1xf32>
    %193 = vector.broadcast %192 : vector<8x1xf32> to vector<8x8xf32>
    %194 = arith.divf %190, %193 : vector<8x8xf32>
    %195 = arith.truncf %194 : vector<8x8xf32> to vector<8x8xbf16>
    %cst_55 = arith.constant dense<0.000000e+00> : vector<8x8xf32>
    %196 = tpu.matmul %195, %184, %cst_55 {dimension_numbers = #tpu.dot_dimension_numbers<[1], [0], [0], [1], [0, 0, 1, 1], [], []>} : vector<8x8xbf16>, vector<8x8xbf16>, vector<8x8xf32> -> vector<8x8xf32>
    %197 = tpu.concatenate %151, %166, %181, %196 in 1 : vector<8x8xf32>, vector<8x8xf32>, vector<8x8xf32>, vector<8x8xf32> -> vector<8x32xf32>
    %198 = vector.extract_strided_slice %14 {offsets = [24, 0], sizes = [8, 8], strides = [1, 1]} : vector<64x96xbf16> to vector<8x8xbf16>
    %199 = vector.extract_strided_slice %14 {offsets = [24, 32], sizes = [8, 8], strides = [1, 1]} : vector<64x96xbf16> to vector<8x8xbf16>
    %200 = vector.extract_strided_slice %14 {offsets = [24, 64], sizes = [8, 8], strides = [1, 1]} : vector<64x96xbf16> to vector<8x8xbf16>
    %cst_56 = arith.constant dense<0.000000e+00> : vector<8x8xf32>
    %201 = tpu.matmul %198, %199, %cst_56 {dimension_numbers = #tpu.dot_dimension_numbers<[1], [1], [0], [0], [0, 0, 1, 0], [], []>} : vector<8x8xbf16>, vector<8x8xbf16>, vector<8x8xf32> -> vector<8x8xf32>
    %cst_57 = arith.constant dense<0xFF800000> : vector<8xf32>
    %202 = vector.multi_reduction <maximumf>, %201, %cst_57 [1] : vector<8x8xf32> to vector<8xf32>
    %203 = vector.shape_cast %202 : vector<8xf32> to vector<8x1xf32>
    %204 = vector.broadcast %203 : vector<8x1xf32> to vector<8x8xf32>
    %205 = arith.subf %201, %204 : vector<8x8xf32>
    %206 = math.exp %205 : vector<8x8xf32>
    %cst_58 = arith.constant dense<0.000000e+00> : vector<8xf32>
    %207 = vector.multi_reduction <add>, %206, %cst_58 [1] : vector<8x8xf32> to vector<8xf32>
    %208 = vector.shape_cast %207 : vector<8xf32> to vector<8x1xf32>
    %209 = vector.broadcast %208 : vector<8x1xf32> to vector<8x8xf32>
    %210 = arith.divf %206, %209 : vector<8x8xf32>
    %211 = arith.truncf %210 : vector<8x8xf32> to vector<8x8xbf16>
    %cst_59 = arith.constant dense<0.000000e+00> : vector<8x8xf32>
    %212 = tpu.matmul %211, %200, %cst_59 {dimension_numbers = #tpu.dot_dimension_numbers<[1], [0], [0], [1], [0, 0, 1, 1], [], []>} : vector<8x8xbf16>, vector<8x8xbf16>, vector<8x8xf32> -> vector<8x8xf32>
    %213 = vector.extract_strided_slice %14 {offsets = [24, 8], sizes = [8, 8], strides = [1, 1]} : vector<64x96xbf16> to vector<8x8xbf16>
    %214 = vector.extract_strided_slice %14 {offsets = [24, 40], sizes = [8, 8], strides = [1, 1]} : vector<64x96xbf16> to vector<8x8xbf16>
    %215 = vector.extract_strided_slice %14 {offsets = [24, 72], sizes = [8, 8], strides = [1, 1]} : vector<64x96xbf16> to vector<8x8xbf16>
    %cst_60 = arith.constant dense<0.000000e+00> : vector<8x8xf32>
    %216 = tpu.matmul %213, %214, %cst_60 {dimension_numbers = #tpu.dot_dimension_numbers<[1], [1], [0], [0], [0, 0, 1, 0], [], []>} : vector<8x8xbf16>, vector<8x8xbf16>, vector<8x8xf32> -> vector<8x8xf32>
    %cst_61 = arith.constant dense<0xFF800000> : vector<8xf32>
    %217 = vector.multi_reduction <maximumf>, %216, %cst_61 [1] : vector<8x8xf32> to vector<8xf32>
    %218 = vector.shape_cast %217 : vector<8xf32> to vector<8x1xf32>
    %219 = vector.broadcast %218 : vector<8x1xf32> to vector<8x8xf32>
    %220 = arith.subf %216, %219 : vector<8x8xf32>
    %221 = math.exp %220 : vector<8x8xf32>
    %cst_62 = arith.constant dense<0.000000e+00> : vector<8xf32>
    %222 = vector.multi_reduction <add>, %221, %cst_62 [1] : vector<8x8xf32> to vector<8xf32>
    %223 = vector.shape_cast %222 : vector<8xf32> to vector<8x1xf32>
    %224 = vector.broadcast %223 : vector<8x1xf32> to vector<8x8xf32>
    %225 = arith.divf %221, %224 : vector<8x8xf32>
    %226 = arith.truncf %225 : vector<8x8xf32> to vector<8x8xbf16>
    %cst_63 = arith.constant dense<0.000000e+00> : vector<8x8xf32>
    %227 = tpu.matmul %226, %215, %cst_63 {dimension_numbers = #tpu.dot_dimension_numbers<[1], [0], [0], [1], [0, 0, 1, 1], [], []>} : vector<8x8xbf16>, vector<8x8xbf16>, vector<8x8xf32> -> vector<8x8xf32>
    %228 = vector.extract_strided_slice %14 {offsets = [24, 16], sizes = [8, 8], strides = [1, 1]} : vector<64x96xbf16> to vector<8x8xbf16>
    %229 = vector.extract_strided_slice %14 {offsets = [24, 48], sizes = [8, 8], strides = [1, 1]} : vector<64x96xbf16> to vector<8x8xbf16>
    %230 = vector.extract_strided_slice %14 {offsets = [24, 80], sizes = [8, 8], strides = [1, 1]} : vector<64x96xbf16> to vector<8x8xbf16>
    %cst_64 = arith.constant dense<0.000000e+00> : vector<8x8xf32>
    %231 = tpu.matmul %228, %229, %cst_64 {dimension_numbers = #tpu.dot_dimension_numbers<[1], [1], [0], [0], [0, 0, 1, 0], [], []>} : vector<8x8xbf16>, vector<8x8xbf16>, vector<8x8xf32> -> vector<8x8xf32>
    %cst_65 = arith.constant dense<0xFF800000> : vector<8xf32>
    %232 = vector.multi_reduction <maximumf>, %231, %cst_65 [1] : vector<8x8xf32> to vector<8xf32>
    %233 = vector.shape_cast %232 : vector<8xf32> to vector<8x1xf32>
    %234 = vector.broadcast %233 : vector<8x1xf32> to vector<8x8xf32>
    %235 = arith.subf %231, %234 : vector<8x8xf32>
    %236 = math.exp %235 : vector<8x8xf32>
    %cst_66 = arith.constant dense<0.000000e+00> : vector<8xf32>
    %237 = vector.multi_reduction <add>, %236, %cst_66 [1] : vector<8x8xf32> to vector<8xf32>
    %238 = vector.shape_cast %237 : vector<8xf32> to vector<8x1xf32>
    %239 = vector.broadcast %238 : vector<8x1xf32> to vector<8x8xf32>
    %240 = arith.divf %236, %239 : vector<8x8xf32>
    %241 = arith.truncf %240 : vector<8x8xf32> to vector<8x8xbf16>
    %cst_67 = arith.constant dense<0.000000e+00> : vector<8x8xf32>
    %242 = tpu.matmul %241, %230, %cst_67 {dimension_numbers = #tpu.dot_dimension_numbers<[1], [0], [0], [1], [0, 0, 1, 1], [], []>} : vector<8x8xbf16>, vector<8x8xbf16>, vector<8x8xf32> -> vector<8x8xf32>
    %243 = vector.extract_strided_slice %14 {offsets = [24, 24], sizes = [8, 8], strides = [1, 1]} : vector<64x96xbf16> to vector<8x8xbf16>
    %244 = vector.extract_strided_slice %14 {offsets = [24, 56], sizes = [8, 8], strides = [1, 1]} : vector<64x96xbf16> to vector<8x8xbf16>
    %245 = vector.extract_strided_slice %14 {offsets = [24, 88], sizes = [8, 8], strides = [1, 1]} : vector<64x96xbf16> to vector<8x8xbf16>
    %cst_68 = arith.constant dense<0.000000e+00> : vector<8x8xf32>
    %246 = tpu.matmul %243, %244, %cst_68 {dimension_numbers = #tpu.dot_dimension_numbers<[1], [1], [0], [0], [0, 0, 1, 0], [], []>} : vector<8x8xbf16>, vector<8x8xbf16>, vector<8x8xf32> -> vector<8x8xf32>
    %cst_69 = arith.constant dense<0xFF800000> : vector<8xf32>
    %247 = vector.multi_reduction <maximumf>, %246, %cst_69 [1] : vector<8x8xf32> to vector<8xf32>
    %248 = vector.shape_cast %247 : vector<8xf32> to vector<8x1xf32>
    %249 = vector.broadcast %248 : vector<8x1xf32> to vector<8x8xf32>
    %250 = arith.subf %246, %249 : vector<8x8xf32>
    %251 = math.exp %250 : vector<8x8xf32>
    %cst_70 = arith.constant dense<0.000000e+00> : vector<8xf32>
    %252 = vector.multi_reduction <add>, %251, %cst_70 [1] : vector<8x8xf32> to vector<8xf32>
    %253 = vector.shape_cast %252 : vector<8xf32> to vector<8x1xf32>
    %254 = vector.broadcast %253 : vector<8x1xf32> to vector<8x8xf32>
    %255 = arith.divf %251, %254 : vector<8x8xf32>
    %256 = arith.truncf %255 : vector<8x8xf32> to vector<8x8xbf16>
    %cst_71 = arith.constant dense<0.000000e+00> : vector<8x8xf32>
    %257 = tpu.matmul %256, %245, %cst_71 {dimension_numbers = #tpu.dot_dimension_numbers<[1], [0], [0], [1], [0, 0, 1, 1], [], []>} : vector<8x8xbf16>, vector<8x8xbf16>, vector<8x8xf32> -> vector<8x8xf32>
    %258 = tpu.concatenate %212, %227, %242, %257 in 1 : vector<8x8xf32>, vector<8x8xf32>, vector<8x8xf32>, vector<8x8xf32> -> vector<8x32xf32>
    %259 = vector.extract_strided_slice %14 {offsets = [32, 0], sizes = [8, 8], strides = [1, 1]} : vector<64x96xbf16> to vector<8x8xbf16>
    %260 = vector.extract_strided_slice %14 {offsets = [32, 32], sizes = [8, 8], strides = [1, 1]} : vector<64x96xbf16> to vector<8x8xbf16>
    %261 = vector.extract_strided_slice %14 {offsets = [32, 64], sizes = [8, 8], strides = [1, 1]} : vector<64x96xbf16> to vector<8x8xbf16>
    %cst_72 = arith.constant dense<0.000000e+00> : vector<8x8xf32>
    %262 = tpu.matmul %259, %260, %cst_72 {dimension_numbers = #tpu.dot_dimension_numbers<[1], [1], [0], [0], [0, 0, 1, 0], [], []>} : vector<8x8xbf16>, vector<8x8xbf16>, vector<8x8xf32> -> vector<8x8xf32>
    %cst_73 = arith.constant dense<0xFF800000> : vector<8xf32>
    %263 = vector.multi_reduction <maximumf>, %262, %cst_73 [1] : vector<8x8xf32> to vector<8xf32>
    %264 = vector.shape_cast %263 : vector<8xf32> to vector<8x1xf32>
    %265 = vector.broadcast %264 : vector<8x1xf32> to vector<8x8xf32>
    %266 = arith.subf %262, %265 : vector<8x8xf32>
    %267 = math.exp %266 : vector<8x8xf32>
    %cst_74 = arith.constant dense<0.000000e+00> : vector<8xf32>
    %268 = vector.multi_reduction <add>, %267, %cst_74 [1] : vector<8x8xf32> to vector<8xf32>
    %269 = vector.shape_cast %268 : vector<8xf32> to vector<8x1xf32>
    %270 = vector.broadcast %269 : vector<8x1xf32> to vector<8x8xf32>
    %271 = arith.divf %267, %270 : vector<8x8xf32>
    %272 = arith.truncf %271 : vector<8x8xf32> to vector<8x8xbf16>
    %cst_75 = arith.constant dense<0.000000e+00> : vector<8x8xf32>
    %273 = tpu.matmul %272, %261, %cst_75 {dimension_numbers = #tpu.dot_dimension_numbers<[1], [0], [0], [1], [0, 0, 1, 1], [], []>} : vector<8x8xbf16>, vector<8x8xbf16>, vector<8x8xf32> -> vector<8x8xf32>
    %274 = vector.extract_strided_slice %14 {offsets = [32, 8], sizes = [8, 8], strides = [1, 1]} : vector<64x96xbf16> to vector<8x8xbf16>
    %275 = vector.extract_strided_slice %14 {offsets = [32, 40], sizes = [8, 8], strides = [1, 1]} : vector<64x96xbf16> to vector<8x8xbf16>
    %276 = vector.extract_strided_slice %14 {offsets = [32, 72], sizes = [8, 8], strides = [1, 1]} : vector<64x96xbf16> to vector<8x8xbf16>
    %cst_76 = arith.constant dense<0.000000e+00> : vector<8x8xf32>
    %277 = tpu.matmul %274, %275, %cst_76 {dimension_numbers = #tpu.dot_dimension_numbers<[1], [1], [0], [0], [0, 0, 1, 0], [], []>} : vector<8x8xbf16>, vector<8x8xbf16>, vector<8x8xf32> -> vector<8x8xf32>
    %cst_77 = arith.constant dense<0xFF800000> : vector<8xf32>
    %278 = vector.multi_reduction <maximumf>, %277, %cst_77 [1] : vector<8x8xf32> to vector<8xf32>
    %279 = vector.shape_cast %278 : vector<8xf32> to vector<8x1xf32>
    %280 = vector.broadcast %279 : vector<8x1xf32> to vector<8x8xf32>
    %281 = arith.subf %277, %280 : vector<8x8xf32>
    %282 = math.exp %281 : vector<8x8xf32>
    %cst_78 = arith.constant dense<0.000000e+00> : vector<8xf32>
    %283 = vector.multi_reduction <add>, %282, %cst_78 [1] : vector<8x8xf32> to vector<8xf32>
    %284 = vector.shape_cast %283 : vector<8xf32> to vector<8x1xf32>
    %285 = vector.broadcast %284 : vector<8x1xf32> to vector<8x8xf32>
    %286 = arith.divf %282, %285 : vector<8x8xf32>
    %287 = arith.truncf %286 : vector<8x8xf32> to vector<8x8xbf16>
    %cst_79 = arith.constant dense<0.000000e+00> : vector<8x8xf32>
    %288 = tpu.matmul %287, %276, %cst_79 {dimension_numbers = #tpu.dot_dimension_numbers<[1], [0], [0], [1], [0, 0, 1, 1], [], []>} : vector<8x8xbf16>, vector<8x8xbf16>, vector<8x8xf32> -> vector<8x8xf32>
    %289 = vector.extract_strided_slice %14 {offsets = [32, 16], sizes = [8, 8], strides = [1, 1]} : vector<64x96xbf16> to vector<8x8xbf16>
    %290 = vector.extract_strided_slice %14 {offsets = [32, 48], sizes = [8, 8], strides = [1, 1]} : vector<64x96xbf16> to vector<8x8xbf16>
    %291 = vector.extract_strided_slice %14 {offsets = [32, 80], sizes = [8, 8], strides = [1, 1]} : vector<64x96xbf16> to vector<8x8xbf16>
    %cst_80 = arith.constant dense<0.000000e+00> : vector<8x8xf32>
    %292 = tpu.matmul %289, %290, %cst_80 {dimension_numbers = #tpu.dot_dimension_numbers<[1], [1], [0], [0], [0, 0, 1, 0], [], []>} : vector<8x8xbf16>, vector<8x8xbf16>, vector<8x8xf32> -> vector<8x8xf32>
    %cst_81 = arith.constant dense<0xFF800000> : vector<8xf32>
    %293 = vector.multi_reduction <maximumf>, %292, %cst_81 [1] : vector<8x8xf32> to vector<8xf32>
    %294 = vector.shape_cast %293 : vector<8xf32> to vector<8x1xf32>
    %295 = vector.broadcast %294 : vector<8x1xf32> to vector<8x8xf32>
    %296 = arith.subf %292, %295 : vector<8x8xf32>
    %297 = math.exp %296 : vector<8x8xf32>
    %cst_82 = arith.constant dense<0.000000e+00> : vector<8xf32>
    %298 = vector.multi_reduction <add>, %297, %cst_82 [1] : vector<8x8xf32> to vector<8xf32>
    %299 = vector.shape_cast %298 : vector<8xf32> to vector<8x1xf32>
    %300 = vector.broadcast %299 : vector<8x1xf32> to vector<8x8xf32>
    %301 = arith.divf %297, %300 : vector<8x8xf32>
    %302 = arith.truncf %301 : vector<8x8xf32> to vector<8x8xbf16>
    %cst_83 = arith.constant dense<0.000000e+00> : vector<8x8xf32>
    %303 = tpu.matmul %302, %291, %cst_83 {dimension_numbers = #tpu.dot_dimension_numbers<[1], [0], [0], [1], [0, 0, 1, 1], [], []>} : vector<8x8xbf16>, vector<8x8xbf16>, vector<8x8xf32> -> vector<8x8xf32>
    %304 = vector.extract_strided_slice %14 {offsets = [32, 24], sizes = [8, 8], strides = [1, 1]} : vector<64x96xbf16> to vector<8x8xbf16>
    %305 = vector.extract_strided_slice %14 {offsets = [32, 56], sizes = [8, 8], strides = [1, 1]} : vector<64x96xbf16> to vector<8x8xbf16>
    %306 = vector.extract_strided_slice %14 {offsets = [32, 88], sizes = [8, 8], strides = [1, 1]} : vector<64x96xbf16> to vector<8x8xbf16>
    %cst_84 = arith.constant dense<0.000000e+00> : vector<8x8xf32>
    %307 = tpu.matmul %304, %305, %cst_84 {dimension_numbers = #tpu.dot_dimension_numbers<[1], [1], [0], [0], [0, 0, 1, 0], [], []>} : vector<8x8xbf16>, vector<8x8xbf16>, vector<8x8xf32> -> vector<8x8xf32>
    %cst_85 = arith.constant dense<0xFF800000> : vector<8xf32>
    %308 = vector.multi_reduction <maximumf>, %307, %cst_85 [1] : vector<8x8xf32> to vector<8xf32>
    %309 = vector.shape_cast %308 : vector<8xf32> to vector<8x1xf32>
    %310 = vector.broadcast %309 : vector<8x1xf32> to vector<8x8xf32>
    %311 = arith.subf %307, %310 : vector<8x8xf32>
    %312 = math.exp %311 : vector<8x8xf32>
    %cst_86 = arith.constant dense<0.000000e+00> : vector<8xf32>
    %313 = vector.multi_reduction <add>, %312, %cst_86 [1] : vector<8x8xf32> to vector<8xf32>
    %314 = vector.shape_cast %313 : vector<8xf32> to vector<8x1xf32>
    %315 = vector.broadcast %314 : vector<8x1xf32> to vector<8x8xf32>
    %316 = arith.divf %312, %315 : vector<8x8xf32>
    %317 = arith.truncf %316 : vector<8x8xf32> to vector<8x8xbf16>
    %cst_87 = arith.constant dense<0.000000e+00> : vector<8x8xf32>
    %318 = tpu.matmul %317, %306, %cst_87 {dimension_numbers = #tpu.dot_dimension_numbers<[1], [0], [0], [1], [0, 0, 1, 1], [], []>} : vector<8x8xbf16>, vector<8x8xbf16>, vector<8x8xf32> -> vector<8x8xf32>
    %319 = tpu.concatenate %273, %288, %303, %318 in 1 : vector<8x8xf32>, vector<8x8xf32>, vector<8x8xf32>, vector<8x8xf32> -> vector<8x32xf32>
    %320 = vector.extract_strided_slice %14 {offsets = [40, 0], sizes = [8, 8], strides = [1, 1]} : vector<64x96xbf16> to vector<8x8xbf16>
    %321 = vector.extract_strided_slice %14 {offsets = [40, 32], sizes = [8, 8], strides = [1, 1]} : vector<64x96xbf16> to vector<8x8xbf16>
    %322 = vector.extract_strided_slice %14 {offsets = [40, 64], sizes = [8, 8], strides = [1, 1]} : vector<64x96xbf16> to vector<8x8xbf16>
    %cst_88 = arith.constant dense<0.000000e+00> : vector<8x8xf32>
    %323 = tpu.matmul %320, %321, %cst_88 {dimension_numbers = #tpu.dot_dimension_numbers<[1], [1], [0], [0], [0, 0, 1, 0], [], []>} : vector<8x8xbf16>, vector<8x8xbf16>, vector<8x8xf32> -> vector<8x8xf32>
    %cst_89 = arith.constant dense<0xFF800000> : vector<8xf32>
    %324 = vector.multi_reduction <maximumf>, %323, %cst_89 [1] : vector<8x8xf32> to vector<8xf32>
    %325 = vector.shape_cast %324 : vector<8xf32> to vector<8x1xf32>
    %326 = vector.broadcast %325 : vector<8x1xf32> to vector<8x8xf32>
    %327 = arith.subf %323, %326 : vector<8x8xf32>
    %328 = math.exp %327 : vector<8x8xf32>
    %cst_90 = arith.constant dense<0.000000e+00> : vector<8xf32>
    %329 = vector.multi_reduction <add>, %328, %cst_90 [1] : vector<8x8xf32> to vector<8xf32>
    %330 = vector.shape_cast %329 : vector<8xf32> to vector<8x1xf32>
    %331 = vector.broadcast %330 : vector<8x1xf32> to vector<8x8xf32>
    %332 = arith.divf %328, %331 : vector<8x8xf32>
    %333 = arith.truncf %332 : vector<8x8xf32> to vector<8x8xbf16>
    %cst_91 = arith.constant dense<0.000000e+00> : vector<8x8xf32>
    %334 = tpu.matmul %333, %322, %cst_91 {dimension_numbers = #tpu.dot_dimension_numbers<[1], [0], [0], [1], [0, 0, 1, 1], [], []>} : vector<8x8xbf16>, vector<8x8xbf16>, vector<8x8xf32> -> vector<8x8xf32>
    %335 = vector.extract_strided_slice %14 {offsets = [40, 8], sizes = [8, 8], strides = [1, 1]} : vector<64x96xbf16> to vector<8x8xbf16>
    %336 = vector.extract_strided_slice %14 {offsets = [40, 40], sizes = [8, 8], strides = [1, 1]} : vector<64x96xbf16> to vector<8x8xbf16>
    %337 = vector.extract_strided_slice %14 {offsets = [40, 72], sizes = [8, 8], strides = [1, 1]} : vector<64x96xbf16> to vector<8x8xbf16>
    %cst_92 = arith.constant dense<0.000000e+00> : vector<8x8xf32>
    %338 = tpu.matmul %335, %336, %cst_92 {dimension_numbers = #tpu.dot_dimension_numbers<[1], [1], [0], [0], [0, 0, 1, 0], [], []>} : vector<8x8xbf16>, vector<8x8xbf16>, vector<8x8xf32> -> vector<8x8xf32>
    %cst_93 = arith.constant dense<0xFF800000> : vector<8xf32>
    %339 = vector.multi_reduction <maximumf>, %338, %cst_93 [1] : vector<8x8xf32> to vector<8xf32>
    %340 = vector.shape_cast %339 : vector<8xf32> to vector<8x1xf32>
    %341 = vector.broadcast %340 : vector<8x1xf32> to vector<8x8xf32>
    %342 = arith.subf %338, %341 : vector<8x8xf32>
    %343 = math.exp %342 : vector<8x8xf32>
    %cst_94 = arith.constant dense<0.000000e+00> : vector<8xf32>
    %344 = vector.multi_reduction <add>, %343, %cst_94 [1] : vector<8x8xf32> to vector<8xf32>
    %345 = vector.shape_cast %344 : vector<8xf32> to vector<8x1xf32>
    %346 = vector.broadcast %345 : vector<8x1xf32> to vector<8x8xf32>
    %347 = arith.divf %343, %346 : vector<8x8xf32>
    %348 = arith.truncf %347 : vector<8x8xf32> to vector<8x8xbf16>
    %cst_95 = arith.constant dense<0.000000e+00> : vector<8x8xf32>
    %349 = tpu.matmul %348, %337, %cst_95 {dimension_numbers = #tpu.dot_dimension_numbers<[1], [0], [0], [1], [0, 0, 1, 1], [], []>} : vector<8x8xbf16>, vector<8x8xbf16>, vector<8x8xf32> -> vector<8x8xf32>
    %350 = vector.extract_strided_slice %14 {offsets = [40, 16], sizes = [8, 8], strides = [1, 1]} : vector<64x96xbf16> to vector<8x8xbf16>
    %351 = vector.extract_strided_slice %14 {offsets = [40, 48], sizes = [8, 8], strides = [1, 1]} : vector<64x96xbf16> to vector<8x8xbf16>
    %352 = vector.extract_strided_slice %14 {offsets = [40, 80], sizes = [8, 8], strides = [1, 1]} : vector<64x96xbf16> to vector<8x8xbf16>
    %cst_96 = arith.constant dense<0.000000e+00> : vector<8x8xf32>
    %353 = tpu.matmul %350, %351, %cst_96 {dimension_numbers = #tpu.dot_dimension_numbers<[1], [1], [0], [0], [0, 0, 1, 0], [], []>} : vector<8x8xbf16>, vector<8x8xbf16>, vector<8x8xf32> -> vector<8x8xf32>
    %cst_97 = arith.constant dense<0xFF800000> : vector<8xf32>
    %354 = vector.multi_reduction <maximumf>, %353, %cst_97 [1] : vector<8x8xf32> to vector<8xf32>
    %355 = vector.shape_cast %354 : vector<8xf32> to vector<8x1xf32>
    %356 = vector.broadcast %355 : vector<8x1xf32> to vector<8x8xf32>
    %357 = arith.subf %353, %356 : vector<8x8xf32>
    %358 = math.exp %357 : vector<8x8xf32>
    %cst_98 = arith.constant dense<0.000000e+00> : vector<8xf32>
    %359 = vector.multi_reduction <add>, %358, %cst_98 [1] : vector<8x8xf32> to vector<8xf32>
    %360 = vector.shape_cast %359 : vector<8xf32> to vector<8x1xf32>
    %361 = vector.broadcast %360 : vector<8x1xf32> to vector<8x8xf32>
    %362 = arith.divf %358, %361 : vector<8x8xf32>
    %363 = arith.truncf %362 : vector<8x8xf32> to vector<8x8xbf16>
    %cst_99 = arith.constant dense<0.000000e+00> : vector<8x8xf32>
    %364 = tpu.matmul %363, %352, %cst_99 {dimension_numbers = #tpu.dot_dimension_numbers<[1], [0], [0], [1], [0, 0, 1, 1], [], []>} : vector<8x8xbf16>, vector<8x8xbf16>, vector<8x8xf32> -> vector<8x8xf32>
    %365 = vector.extract_strided_slice %14 {offsets = [40, 24], sizes = [8, 8], strides = [1, 1]} : vector<64x96xbf16> to vector<8x8xbf16>
    %366 = vector.extract_strided_slice %14 {offsets = [40, 56], sizes = [8, 8], strides = [1, 1]} : vector<64x96xbf16> to vector<8x8xbf16>
    %367 = vector.extract_strided_slice %14 {offsets = [40, 88], sizes = [8, 8], strides = [1, 1]} : vector<64x96xbf16> to vector<8x8xbf16>
    %cst_100 = arith.constant dense<0.000000e+00> : vector<8x8xf32>
    %368 = tpu.matmul %365, %366, %cst_100 {dimension_numbers = #tpu.dot_dimension_numbers<[1], [1], [0], [0], [0, 0, 1, 0], [], []>} : vector<8x8xbf16>, vector<8x8xbf16>, vector<8x8xf32> -> vector<8x8xf32>
    %cst_101 = arith.constant dense<0xFF800000> : vector<8xf32>
    %369 = vector.multi_reduction <maximumf>, %368, %cst_101 [1] : vector<8x8xf32> to vector<8xf32>
    %370 = vector.shape_cast %369 : vector<8xf32> to vector<8x1xf32>
    %371 = vector.broadcast %370 : vector<8x1xf32> to vector<8x8xf32>
    %372 = arith.subf %368, %371 : vector<8x8xf32>
    %373 = math.exp %372 : vector<8x8xf32>
    %cst_102 = arith.constant dense<0.000000e+00> : vector<8xf32>
    %374 = vector.multi_reduction <add>, %373, %cst_102 [1] : vector<8x8xf32> to vector<8xf32>
    %375 = vector.shape_cast %374 : vector<8xf32> to vector<8x1xf32>
    %376 = vector.broadcast %375 : vector<8x1xf32> to vector<8x8xf32>
    %377 = arith.divf %373, %376 : vector<8x8xf32>
    %378 = arith.truncf %377 : vector<8x8xf32> to vector<8x8xbf16>
    %cst_103 = arith.constant dense<0.000000e+00> : vector<8x8xf32>
    %379 = tpu.matmul %378, %367, %cst_103 {dimension_numbers = #tpu.dot_dimension_numbers<[1], [0], [0], [1], [0, 0, 1, 1], [], []>} : vector<8x8xbf16>, vector<8x8xbf16>, vector<8x8xf32> -> vector<8x8xf32>
    %380 = tpu.concatenate %334, %349, %364, %379 in 1 : vector<8x8xf32>, vector<8x8xf32>, vector<8x8xf32>, vector<8x8xf32> -> vector<8x32xf32>
    %381 = vector.extract_strided_slice %14 {offsets = [48, 0], sizes = [8, 8], strides = [1, 1]} : vector<64x96xbf16> to vector<8x8xbf16>
    %382 = vector.extract_strided_slice %14 {offsets = [48, 32], sizes = [8, 8], strides = [1, 1]} : vector<64x96xbf16> to vector<8x8xbf16>
    %383 = vector.extract_strided_slice %14 {offsets = [48, 64], sizes = [8, 8], strides = [1, 1]} : vector<64x96xbf16> to vector<8x8xbf16>
    %cst_104 = arith.constant dense<0.000000e+00> : vector<8x8xf32>
    %384 = tpu.matmul %381, %382, %cst_104 {dimension_numbers = #tpu.dot_dimension_numbers<[1], [1], [0], [0], [0, 0, 1, 0], [], []>} : vector<8x8xbf16>, vector<8x8xbf16>, vector<8x8xf32> -> vector<8x8xf32>
    %cst_105 = arith.constant dense<0xFF800000> : vector<8xf32>
    %385 = vector.multi_reduction <maximumf>, %384, %cst_105 [1] : vector<8x8xf32> to vector<8xf32>
    %386 = vector.shape_cast %385 : vector<8xf32> to vector<8x1xf32>
    %387 = vector.broadcast %386 : vector<8x1xf32> to vector<8x8xf32>
    %388 = arith.subf %384, %387 : vector<8x8xf32>
    %389 = math.exp %388 : vector<8x8xf32>
    %cst_106 = arith.constant dense<0.000000e+00> : vector<8xf32>
    %390 = vector.multi_reduction <add>, %389, %cst_106 [1] : vector<8x8xf32> to vector<8xf32>
    %391 = vector.shape_cast %390 : vector<8xf32> to vector<8x1xf32>
    %392 = vector.broadcast %391 : vector<8x1xf32> to vector<8x8xf32>
    %393 = arith.divf %389, %392 : vector<8x8xf32>
    %394 = arith.truncf %393 : vector<8x8xf32> to vector<8x8xbf16>
    %cst_107 = arith.constant dense<0.000000e+00> : vector<8x8xf32>
    %395 = tpu.matmul %394, %383, %cst_107 {dimension_numbers = #tpu.dot_dimension_numbers<[1], [0], [0], [1], [0, 0, 1, 1], [], []>} : vector<8x8xbf16>, vector<8x8xbf16>, vector<8x8xf32> -> vector<8x8xf32>
    %396 = vector.extract_strided_slice %14 {offsets = [48, 8], sizes = [8, 8], strides = [1, 1]} : vector<64x96xbf16> to vector<8x8xbf16>
    %397 = vector.extract_strided_slice %14 {offsets = [48, 40], sizes = [8, 8], strides = [1, 1]} : vector<64x96xbf16> to vector<8x8xbf16>
    %398 = vector.extract_strided_slice %14 {offsets = [48, 72], sizes = [8, 8], strides = [1, 1]} : vector<64x96xbf16> to vector<8x8xbf16>
    %cst_108 = arith.constant dense<0.000000e+00> : vector<8x8xf32>
    %399 = tpu.matmul %396, %397, %cst_108 {dimension_numbers = #tpu.dot_dimension_numbers<[1], [1], [0], [0], [0, 0, 1, 0], [], []>} : vector<8x8xbf16>, vector<8x8xbf16>, vector<8x8xf32> -> vector<8x8xf32>
    %cst_109 = arith.constant dense<0xFF800000> : vector<8xf32>
    %400 = vector.multi_reduction <maximumf>, %399, %cst_109 [1] : vector<8x8xf32> to vector<8xf32>
    %401 = vector.shape_cast %400 : vector<8xf32> to vector<8x1xf32>
    %402 = vector.broadcast %401 : vector<8x1xf32> to vector<8x8xf32>
    %403 = arith.subf %399, %402 : vector<8x8xf32>
    %404 = math.exp %403 : vector<8x8xf32>
    %cst_110 = arith.constant dense<0.000000e+00> : vector<8xf32>
    %405 = vector.multi_reduction <add>, %404, %cst_110 [1] : vector<8x8xf32> to vector<8xf32>
    %406 = vector.shape_cast %405 : vector<8xf32> to vector<8x1xf32>
    %407 = vector.broadcast %406 : vector<8x1xf32> to vector<8x8xf32>
    %408 = arith.divf %404, %407 : vector<8x8xf32>
    %409 = arith.truncf %408 : vector<8x8xf32> to vector<8x8xbf16>
    %cst_111 = arith.constant dense<0.000000e+00> : vector<8x8xf32>
    %410 = tpu.matmul %409, %398, %cst_111 {dimension_numbers = #tpu.dot_dimension_numbers<[1], [0], [0], [1], [0, 0, 1, 1], [], []>} : vector<8x8xbf16>, vector<8x8xbf16>, vector<8x8xf32> -> vector<8x8xf32>
    %411 = vector.extract_strided_slice %14 {offsets = [48, 16], sizes = [8, 8], strides = [1, 1]} : vector<64x96xbf16> to vector<8x8xbf16>
    %412 = vector.extract_strided_slice %14 {offsets = [48, 48], sizes = [8, 8], strides = [1, 1]} : vector<64x96xbf16> to vector<8x8xbf16>
    %413 = vector.extract_strided_slice %14 {offsets = [48, 80], sizes = [8, 8], strides = [1, 1]} : vector<64x96xbf16> to vector<8x8xbf16>
    %cst_112 = arith.constant dense<0.000000e+00> : vector<8x8xf32>
    %414 = tpu.matmul %411, %412, %cst_112 {dimension_numbers = #tpu.dot_dimension_numbers<[1], [1], [0], [0], [0, 0, 1, 0], [], []>} : vector<8x8xbf16>, vector<8x8xbf16>, vector<8x8xf32> -> vector<8x8xf32>
    %cst_113 = arith.constant dense<0xFF800000> : vector<8xf32>
    %415 = vector.multi_reduction <maximumf>, %414, %cst_113 [1] : vector<8x8xf32> to vector<8xf32>
    %416 = vector.shape_cast %415 : vector<8xf32> to vector<8x1xf32>
    %417 = vector.broadcast %416 : vector<8x1xf32> to vector<8x8xf32>
    %418 = arith.subf %414, %417 : vector<8x8xf32>
    %419 = math.exp %418 : vector<8x8xf32>
    %cst_114 = arith.constant dense<0.000000e+00> : vector<8xf32>
    %420 = vector.multi_reduction <add>, %419, %cst_114 [1] : vector<8x8xf32> to vector<8xf32>
    %421 = vector.shape_cast %420 : vector<8xf32> to vector<8x1xf32>
    %422 = vector.broadcast %421 : vector<8x1xf32> to vector<8x8xf32>
    %423 = arith.divf %419, %422 : vector<8x8xf32>
    %424 = arith.truncf %423 : vector<8x8xf32> to vector<8x8xbf16>
    %cst_115 = arith.constant dense<0.000000e+00> : vector<8x8xf32>
    %425 = tpu.matmul %424, %413, %cst_115 {dimension_numbers = #tpu.dot_dimension_numbers<[1], [0], [0], [1], [0, 0, 1, 1], [], []>} : vector<8x8xbf16>, vector<8x8xbf16>, vector<8x8xf32> -> vector<8x8xf32>
    %426 = vector.extract_strided_slice %14 {offsets = [48, 24], sizes = [8, 8], strides = [1, 1]} : vector<64x96xbf16> to vector<8x8xbf16>
    %427 = vector.extract_strided_slice %14 {offsets = [48, 56], sizes = [8, 8], strides = [1, 1]} : vector<64x96xbf16> to vector<8x8xbf16>
    %428 = vector.extract_strided_slice %14 {offsets = [48, 88], sizes = [8, 8], strides = [1, 1]} : vector<64x96xbf16> to vector<8x8xbf16>
    %cst_116 = arith.constant dense<0.000000e+00> : vector<8x8xf32>
    %429 = tpu.matmul %426, %427, %cst_116 {dimension_numbers = #tpu.dot_dimension_numbers<[1], [1], [0], [0], [0, 0, 1, 0], [], []>} : vector<8x8xbf16>, vector<8x8xbf16>, vector<8x8xf32> -> vector<8x8xf32>
    %cst_117 = arith.constant dense<0xFF800000> : vector<8xf32>
    %430 = vector.multi_reduction <maximumf>, %429, %cst_117 [1] : vector<8x8xf32> to vector<8xf32>
    %431 = vector.shape_cast %430 : vector<8xf32> to vector<8x1xf32>
    %432 = vector.broadcast %431 : vector<8x1xf32> to vector<8x8xf32>
    %433 = arith.subf %429, %432 : vector<8x8xf32>
    %434 = math.exp %433 : vector<8x8xf32>
    %cst_118 = arith.constant dense<0.000000e+00> : vector<8xf32>
    %435 = vector.multi_reduction <add>, %434, %cst_118 [1] : vector<8x8xf32> to vector<8xf32>
    %436 = vector.shape_cast %435 : vector<8xf32> to vector<8x1xf32>
    %437 = vector.broadcast %436 : vector<8x1xf32> to vector<8x8xf32>
    %438 = arith.divf %434, %437 : vector<8x8xf32>
    %439 = arith.truncf %438 : vector<8x8xf32> to vector<8x8xbf16>
    %cst_119 = arith.constant dense<0.000000e+00> : vector<8x8xf32>
    %440 = tpu.matmul %439, %428, %cst_119 {dimension_numbers = #tpu.dot_dimension_numbers<[1], [0], [0], [1], [0, 0, 1, 1], [], []>} : vector<8x8xbf16>, vector<8x8xbf16>, vector<8x8xf32> -> vector<8x8xf32>
    %441 = tpu.concatenate %395, %410, %425, %440 in 1 : vector<8x8xf32>, vector<8x8xf32>, vector<8x8xf32>, vector<8x8xf32> -> vector<8x32xf32>
    %442 = vector.extract_strided_slice %14 {offsets = [56, 0], sizes = [8, 8], strides = [1, 1]} : vector<64x96xbf16> to vector<8x8xbf16>
    %443 = vector.extract_strided_slice %14 {offsets = [56, 32], sizes = [8, 8], strides = [1, 1]} : vector<64x96xbf16> to vector<8x8xbf16>
    %444 = vector.extract_strided_slice %14 {offsets = [56, 64], sizes = [8, 8], strides = [1, 1]} : vector<64x96xbf16> to vector<8x8xbf16>
    %cst_120 = arith.constant dense<0.000000e+00> : vector<8x8xf32>
    %445 = tpu.matmul %442, %443, %cst_120 {dimension_numbers = #tpu.dot_dimension_numbers<[1], [1], [0], [0], [0, 0, 1, 0], [], []>} : vector<8x8xbf16>, vector<8x8xbf16>, vector<8x8xf32> -> vector<8x8xf32>
    %cst_121 = arith.constant dense<0xFF800000> : vector<8xf32>
    %446 = vector.multi_reduction <maximumf>, %445, %cst_121 [1] : vector<8x8xf32> to vector<8xf32>
    %447 = vector.shape_cast %446 : vector<8xf32> to vector<8x1xf32>
    %448 = vector.broadcast %447 : vector<8x1xf32> to vector<8x8xf32>
    %449 = arith.subf %445, %448 : vector<8x8xf32>
    %450 = math.exp %449 : vector<8x8xf32>
    %cst_122 = arith.constant dense<0.000000e+00> : vector<8xf32>
    %451 = vector.multi_reduction <add>, %450, %cst_122 [1] : vector<8x8xf32> to vector<8xf32>
    %452 = vector.shape_cast %451 : vector<8xf32> to vector<8x1xf32>
    %453 = vector.broadcast %452 : vector<8x1xf32> to vector<8x8xf32>
    %454 = arith.divf %450, %453 : vector<8x8xf32>
    %455 = arith.truncf %454 : vector<8x8xf32> to vector<8x8xbf16>
    %cst_123 = arith.constant dense<0.000000e+00> : vector<8x8xf32>
    %456 = tpu.matmul %455, %444, %cst_123 {dimension_numbers = #tpu.dot_dimension_numbers<[1], [0], [0], [1], [0, 0, 1, 1], [], []>} : vector<8x8xbf16>, vector<8x8xbf16>, vector<8x8xf32> -> vector<8x8xf32>
    %457 = vector.extract_strided_slice %14 {offsets = [56, 8], sizes = [8, 8], strides = [1, 1]} : vector<64x96xbf16> to vector<8x8xbf16>
    %458 = vector.extract_strided_slice %14 {offsets = [56, 40], sizes = [8, 8], strides = [1, 1]} : vector<64x96xbf16> to vector<8x8xbf16>
    %459 = vector.extract_strided_slice %14 {offsets = [56, 72], sizes = [8, 8], strides = [1, 1]} : vector<64x96xbf16> to vector<8x8xbf16>
    %cst_124 = arith.constant dense<0.000000e+00> : vector<8x8xf32>
    %460 = tpu.matmul %457, %458, %cst_124 {dimension_numbers = #tpu.dot_dimension_numbers<[1], [1], [0], [0], [0, 0, 1, 0], [], []>} : vector<8x8xbf16>, vector<8x8xbf16>, vector<8x8xf32> -> vector<8x8xf32>
    %cst_125 = arith.constant dense<0xFF800000> : vector<8xf32>
    %461 = vector.multi_reduction <maximumf>, %460, %cst_125 [1] : vector<8x8xf32> to vector<8xf32>
    %462 = vector.shape_cast %461 : vector<8xf32> to vector<8x1xf32>
    %463 = vector.broadcast %462 : vector<8x1xf32> to vector<8x8xf32>
    %464 = arith.subf %460, %463 : vector<8x8xf32>
    %465 = math.exp %464 : vector<8x8xf32>
    %cst_126 = arith.constant dense<0.000000e+00> : vector<8xf32>
    %466 = vector.multi_reduction <add>, %465, %cst_126 [1] : vector<8x8xf32> to vector<8xf32>
    %467 = vector.shape_cast %466 : vector<8xf32> to vector<8x1xf32>
    %468 = vector.broadcast %467 : vector<8x1xf32> to vector<8x8xf32>
    %469 = arith.divf %465, %468 : vector<8x8xf32>
    %470 = arith.truncf %469 : vector<8x8xf32> to vector<8x8xbf16>
    %cst_127 = arith.constant dense<0.000000e+00> : vector<8x8xf32>
    %471 = tpu.matmul %470, %459, %cst_127 {dimension_numbers = #tpu.dot_dimension_numbers<[1], [0], [0], [1], [0, 0, 1, 1], [], []>} : vector<8x8xbf16>, vector<8x8xbf16>, vector<8x8xf32> -> vector<8x8xf32>
    %472 = vector.extract_strided_slice %14 {offsets = [56, 16], sizes = [8, 8], strides = [1, 1]} : vector<64x96xbf16> to vector<8x8xbf16>
    %473 = vector.extract_strided_slice %14 {offsets = [56, 48], sizes = [8, 8], strides = [1, 1]} : vector<64x96xbf16> to vector<8x8xbf16>
    %474 = vector.extract_strided_slice %14 {offsets = [56, 80], sizes = [8, 8], strides = [1, 1]} : vector<64x96xbf16> to vector<8x8xbf16>
    %cst_128 = arith.constant dense<0.000000e+00> : vector<8x8xf32>
    %475 = tpu.matmul %472, %473, %cst_128 {dimension_numbers = #tpu.dot_dimension_numbers<[1], [1], [0], [0], [0, 0, 1, 0], [], []>} : vector<8x8xbf16>, vector<8x8xbf16>, vector<8x8xf32> -> vector<8x8xf32>
    %cst_129 = arith.constant dense<0xFF800000> : vector<8xf32>
    %476 = vector.multi_reduction <maximumf>, %475, %cst_129 [1] : vector<8x8xf32> to vector<8xf32>
    %477 = vector.shape_cast %476 : vector<8xf32> to vector<8x1xf32>
    %478 = vector.broadcast %477 : vector<8x1xf32> to vector<8x8xf32>
    %479 = arith.subf %475, %478 : vector<8x8xf32>
    %480 = math.exp %479 : vector<8x8xf32>
    %cst_130 = arith.constant dense<0.000000e+00> : vector<8xf32>
    %481 = vector.multi_reduction <add>, %480, %cst_130 [1] : vector<8x8xf32> to vector<8xf32>
    %482 = vector.shape_cast %481 : vector<8xf32> to vector<8x1xf32>
    %483 = vector.broadcast %482 : vector<8x1xf32> to vector<8x8xf32>
    %484 = arith.divf %480, %483 : vector<8x8xf32>
    %485 = arith.truncf %484 : vector<8x8xf32> to vector<8x8xbf16>
    %cst_131 = arith.constant dense<0.000000e+00> : vector<8x8xf32>
    %486 = tpu.matmul %485, %474, %cst_131 {dimension_numbers = #tpu.dot_dimension_numbers<[1], [0], [0], [1], [0, 0, 1, 1], [], []>} : vector<8x8xbf16>, vector<8x8xbf16>, vector<8x8xf32> -> vector<8x8xf32>
    %487 = vector.extract_strided_slice %14 {offsets = [56, 24], sizes = [8, 8], strides = [1, 1]} : vector<64x96xbf16> to vector<8x8xbf16>
    %488 = vector.extract_strided_slice %14 {offsets = [56, 56], sizes = [8, 8], strides = [1, 1]} : vector<64x96xbf16> to vector<8x8xbf16>
    %489 = vector.extract_strided_slice %14 {offsets = [56, 88], sizes = [8, 8], strides = [1, 1]} : vector<64x96xbf16> to vector<8x8xbf16>
    %cst_132 = arith.constant dense<0.000000e+00> : vector<8x8xf32>
    %490 = tpu.matmul %487, %488, %cst_132 {dimension_numbers = #tpu.dot_dimension_numbers<[1], [1], [0], [0], [0, 0, 1, 0], [], []>} : vector<8x8xbf16>, vector<8x8xbf16>, vector<8x8xf32> -> vector<8x8xf32>
    %cst_133 = arith.constant dense<0xFF800000> : vector<8xf32>
    %491 = vector.multi_reduction <maximumf>, %490, %cst_133 [1] : vector<8x8xf32> to vector<8xf32>
    %492 = vector.shape_cast %491 : vector<8xf32> to vector<8x1xf32>
    %493 = vector.broadcast %492 : vector<8x1xf32> to vector<8x8xf32>
    %494 = arith.subf %490, %493 : vector<8x8xf32>
    %495 = math.exp %494 : vector<8x8xf32>
    %cst_134 = arith.constant dense<0.000000e+00> : vector<8xf32>
    %496 = vector.multi_reduction <add>, %495, %cst_134 [1] : vector<8x8xf32> to vector<8xf32>
    %497 = vector.shape_cast %496 : vector<8xf32> to vector<8x1xf32>
    %498 = vector.broadcast %497 : vector<8x1xf32> to vector<8x8xf32>
    %499 = arith.divf %495, %498 : vector<8x8xf32>
    %500 = arith.truncf %499 : vector<8x8xf32> to vector<8x8xbf16>
    %cst_135 = arith.constant dense<0.000000e+00> : vector<8x8xf32>
    %501 = tpu.matmul %500, %489, %cst_135 {dimension_numbers = #tpu.dot_dimension_numbers<[1], [0], [0], [1], [0, 0, 1, 1], [], []>} : vector<8x8xbf16>, vector<8x8xbf16>, vector<8x8xf32> -> vector<8x8xf32>
    %502 = tpu.concatenate %456, %471, %486, %501 in 1 : vector<8x8xf32>, vector<8x8xf32>, vector<8x8xf32>, vector<8x8xf32> -> vector<8x32xf32>
    %503 = tpu.concatenate %27, %42, %57, %72, %88, %103, %118, %133, %149, %164, %179, %194, %210, %225, %240, %255 in 1 : vector<8x8xf32>, vector<8x8xf32>, vector<8x8xf32>, vector<8x8xf32>, vector<8x8xf32>, vector<8x8xf32>, vector<8x8xf32>, vector<8x8xf32>, vector<8x8xf32>, vector<8x8xf32>, vector<8x8xf32>, vector<8x8xf32>, vector<8x8xf32>, vector<8x8xf32>, vector<8x8xf32>, vector<8x8xf32> -> vector<8x128xf32>
    %504 = tpu.concatenate %271, %286, %301, %316, %332, %347, %362, %377, %393, %408, %423, %438, %454, %469, %484, %499 in 1 : vector<8x8xf32>, vector<8x8xf32>, vector<8x8xf32>, vector<8x8xf32>, vector<8x8xf32>, vector<8x8xf32>, vector<8x8xf32>, vector<8x8xf32>, vector<8x8xf32>, vector<8x8xf32>, vector<8x8xf32>, vector<8x8xf32>, vector<8x8xf32>, vector<8x8xf32>, vector<8x8xf32>, vector<8x8xf32> -> vector<8x128xf32>
    %505 = tpu.concatenate %503, %504 in 1 : vector<8x128xf32>, vector<8x128xf32> -> vector<8x256xf32>
    %c0_136 = arith.constant 0 : index
    %c0_137 = arith.constant 0 : index
    %c0_138 = arith.constant 0 : index
    %506 = vector.load %arg8[%c0_136, %c0_137, %c0_138] : memref<1x8x256xf32, #tpu.memory_space<vmem>>, vector<1x8x256xf32>
    %507 = vector.shape_cast %506 : vector<1x8x256xf32> to vector<8x256xf32>
    %508 = vector.shape_cast %505 : vector<8x256xf32> to vector<1x8x256xf32>
    tpu.vector_store %arg8[%c0_136, %c0_137, %c0_138], %508 {strides = array<i32>} : memref<1x8x256xf32, #tpu.memory_space<vmem>>, vector<1x8x256xf32>,
    %509 = tpu.concatenate %75, %136, %197, %258, %319, %380, %441, %502 in 0 : vector<8x32xf32>, vector<8x32xf32>, vector<8x32xf32>, vector<8x32xf32>, vector<8x32xf32>, vector<8x32xf32>, vector<8x32xf32>, vector<8x32xf32> -> vector<64x32xf32>
    %510 = arith.truncf %509 : vector<64x32xf32> to vector<64x32xbf16>
    %c0_139 = arith.constant 0 : index
    %c0_140 = arith.constant 0 : index
    %511 = vector.load %arg4[%c0_139, %c0_140] : memref<32x32xbf16, #tpu.memory_space<vmem>>, vector<32x32xbf16>
    %cst_141 = arith.constant dense<0.000000e+00> : vector<64x32xf32>
    %512 = tpu.matmul %510, %511, %cst_141 {dimension_numbers = #tpu.dot_dimension_numbers<[1], [0], [0], [1], [0, 0, 1, 1], [], []>} : vector<64x32xbf16>, vector<32x32xbf16>, vector<64x32xf32> -> vector<64x32xf32>
    %c0_142 = arith.constant 0 : index
    %c0_143 = arith.constant 0 : index
    %513 = vector.load %arg5[%c0_142, %c0_143] : memref<1x32xf32, #tpu.memory_space<vmem>>, vector<1x32xf32>
    %514 = vector.broadcast %513 : vector<1x32xf32> to vector<64x32xf32>
    %515 = arith.addf %512, %514 : vector<64x32xf32>
    %c0_144 = arith.constant 0 : index
    %c0_145 = arith.constant 0 : index
    %516 = vector.load %arg7[%c0_144, %c0_145] : memref<64x32xf32, #tpu.memory_space<vmem>>, vector<64x32xf32>
    tpu.vector_store %arg7[%c0_144, %c0_145], %515 {strides = array<i32>} : memref<64x32xf32, #tpu.memory_space<vmem>>, vector<64x32xf32>,
    return
  }
  func.func @transform_0(%arg0: i32) -> (i32, i32, i32) {
    %c0_i32 = arith.constant 0 : i32
    %c0_i32_0 = arith.constant 0 : i32
    %c0_i32_1 = arith.constant 0 : i32
    return %arg0, %c0_i32, %c0_i32_0 : i32, i32, i32
  }
  func.func @transform_1(%arg0: i32) -> (i32, i32) {
    %c0_i32 = arith.constant 0 : i32
    %c0_i32_0 = arith.constant 0 : i32
    %c0_i32_1 = arith.constant 0 : i32
    return %c0_i32, %c0_i32_0 : i32, i32
  }
  func.func @transform_2(%arg0: i32) -> (i32, i32) {
    %c0_i32 = arith.constant 0 : i32
    %c0_i32_0 = arith.constant 0 : i32
    %c0_i32_1 = arith.constant 0 : i32
    return %c0_i32, %c0_i32_0 : i32, i32
  }
  func.func @transform_3(%arg0: i32) -> (i32, i32) {
    %c0_i32 = arith.constant 0 : i32
    %c0_i32_0 = arith.constant 0 : i32
    %c0_i32_1 = arith.constant 0 : i32
    return %c0_i32, %c0_i32_0 : i32, i32
  }
  func.func @transform_4(%arg0: i32) -> (i32, i32) {
    %c0_i32 = arith.constant 0 : i32
    %c0_i32_0 = arith.constant 0 : i32
    %c0_i32_1 = arith.constant 0 : i32
    return %c0_i32, %c0_i32_0 : i32, i32
  }
  func.func @transform_5(%arg0: i32) -> (i32, i32) {
    %c0_i32 = arith.constant 0 : i32
    %c0_i32_0 = arith.constant 0 : i32
    %c0_i32_1 = arith.constant 0 : i32
    return %c0_i32, %c0_i32_0 : i32, i32
  }
  func.func @transform_6(%arg0: i32) -> (i32, i32) {
    %c0_i32 = arith.constant 0 : i32
    %c0_i32_0 = arith.constant 0 : i32
    return %arg0, %c0_i32 : i32, i32
  }
  func.func @transform_7(%arg0: i32) -> (i32, i32, i32) {
    %c0_i32 = arith.constant 0 : i32
    %c0_i32_0 = arith.constant 0 : i32
    %c0_i32_1 = arith.constant 0 : i32
    return %arg0, %c0_i32, %c0_i32_0 : i32, i32, i32
  }
}

</mosaic_0001>

<llo_original>
// kernel: tpu_custom_call.1
$region0: #{tpu_custom_call.1}
  #allocation0 [shape = 'u32[]', space=smem, size = 0x4, offset = 0x4, fixed_abs, tag = 'smem constant byte address 0x4 - core index']
  #allocation1 [shape = 'u32[144,128]{1,0:T(1,128)}', space=vmem, size = 0x12000, scoped, tag = 'internal scratch']
  %s0 = inlined_call_operand.hbm [shape: f32[8,8,32], index: 0, kind: input, shape index: {}]
  %s1 = inlined_call_operand.hbm [shape: bf16[32,96], index: 1, kind: input, shape index: {}]
  %s2 = inlined_call_operand.vmem [shape: f32[1,96], index: 2, kind: input, shape index: {}]
  %s3 = inlined_call_operand.hbm [shape: bf16[32,32], index: 3, kind: input, shape index: {}]
  %s4 = inlined_call_operand.hbm [shape: f32[1,32], index: 4, kind: input, shape index: {}]
  %s5 = inlined_call_operand.vmem [shape: f32[8,96], index: 5, kind: input, shape index: {}]
  %s6 = inlined_call_operand.vmem [shape: f32[64,32], index: 6, kind: output, shape index: {0}]
  %s7 = inlined_call_operand.hbm [shape: f32[1,8,256], index: 7, kind: output, shape index: {1}]
  %8 = xla_tuple %s6, %s7
  %s9 = sld [smem:[#allocation0]]
  $region58: #{tpu_custom_call.1} parent=0
    _
  %s11 = ssub.s32 1, %s9
  %s12 = scalar_select 0, %s11, %s9
  $region1: #{tpu_custom_call.1} parent=0
    #allocation2 [shape = 'u8[32768]{0}', space=vmem, size = 0x8000, scoped, tag = 'input window, operand 0, single buffered']
    #allocation3 [shape = 's32[1]{0}', space=sflag, size = 0x4, scoped, tag = 'scoped memory for tpu_custom_call.1']
    #allocation4 [shape = 's32[1]{0}', space=sflag, size = 0x4, scoped, tag = 'scoped memory for tpu_custom_call.1']
    #allocation5 [shape = 'u8[8192]{0}', space=vmem, size = 0x2000, scoped, tag = 'input window, operand 1, single buffered']
    #allocation6 [shape = 's32[1]{0}', space=sflag, size = 0x4, scoped, tag = 'scoped memory for tpu_custom_call.1']
    #allocation7 [shape = 'u8[8192]{0}', space=vmem, size = 0x2000, scoped, tag = 'input window, operand 3, single buffered']
    #allocation8 [shape = 'u8[512]{0}', space=vmem, size = 0x400, scoped, tag = 'input window, operand 4, single buffered']
    #allocation9 [shape = 's32[1]{0}', space=sflag, size = 0x4, scoped, tag = 'scoped memory for tpu_custom_call.1']
    #allocation10 [shape = 'u8[8192]{0}', space=vmem, size = 0x2000, scoped, tag = 'output window, operand 1, single buffered']
    %13 = vsyncpa [#allocation3], 0
    %14 = vsyncpa [#allocation6], 0
    %15 = vsyncpa [#allocation9], 0
    %16 = vsyncpa [#allocation4], 0
    // Predicated region
    $region2: #{tpu_custom_call.1} parent=1 // pred_check
      _
    $region3: #{tpu_custom_call.1} parent=1 // pred_check_branch
      %18 = sbr.rel (0) target = $region5
    $region4: #{tpu_custom_call.1} parent=1 // pred_region
      %s20 = ssub.s32 1024, 1024
      %21 = vsyncadd [#allocation3], %s20
      %s22 = sshll.u32 [#allocation2], 4
      %s23 = int_to_ptr.vmem [resolvable:$true] %s22
      %28 = dma.hbm_to_vmem [thread:$0]  %s0, 1024, %s23, [#allocation3], 128, 128, 8
    $region5: #{tpu_custom_call.1} parent=1 // pred_fallthru
      _
    // Predicated region
    $region6: #{tpu_custom_call.1} parent=1 // pred_check
      _
    $region7: #{tpu_custom_call.1} parent=1 // pred_check_branch
      %30 = sbr.rel (0) target = $region9
    $region8: #{tpu_custom_call.1} parent=1 // pred_region
      %s32 = ssub.s32 256, 256
      %33 = vsyncadd [#allocation6], %s32
      %s34 = sshll.u32 [#allocation5], 4
      %s35 = int_to_ptr.vmem [resolvable:$true] %s34
      %40 = dma.hbm_to_vmem [thread:$0]  %s1, 256, %s35, [#allocation6], 64, 64, 4
    $region9: #{tpu_custom_call.1} parent=1 // pred_fallthru
      _
    // Predicated region
    $region10: #{tpu_custom_call.1} parent=1 // pred_check
      _
    $region11: #{tpu_custom_call.1} parent=1 // pred_check_branch
      %42 = sbr.rel (0) target = $region13
    $region12: #{tpu_custom_call.1} parent=1 // pred_region
      _
    $region13: #{tpu_custom_call.1} parent=1 // pred_fallthru
      _
    // Predicated region
    $region14: #{tpu_custom_call.1} parent=1 // pred_check
      _
    $region15: #{tpu_custom_call.1} parent=1 // pred_check_branch
      %44 = sbr.rel (0) target = $region17
    $region16: #{tpu_custom_call.1} parent=1 // pred_region
      %s46 = ssub.s32 256, 256
      %47 = vsyncadd [#allocation6], %s46
      %s48 = sshll.u32 [#allocation7], 4
      %s49 = int_to_ptr.vmem [resolvable:$true] %s48
      %54 = dma.hbm_to_vmem [thread:$0]  %s3, 256, %s49, [#allocation6], 64, 64, 4
    $region17: #{tpu_custom_call.1} parent=1 // pred_fallthru
      _
    // Predicated region
    $region18: #{tpu_custom_call.1} parent=1 // pred_check
      _
    $region19: #{tpu_custom_call.1} parent=1 // pred_check_branch
      %56 = sbr.rel (0) target = $region21
    $region20: #{tpu_custom_call.1} parent=1 // pred_region
      %s58 = ssub.s32 16, 16
      %59 = vsyncadd [#allocation9], %s58
      %s61 = sshll.u32 [#allocation8], 4
      %s62 = int_to_ptr.vmem [resolvable:$true] %s61
      %64 = dma.hbm_to_vmem [thread:$0]  %s4, 16, %s62, [#allocation9]
    $region21: #{tpu_custom_call.1} parent=1 // pred_fallthru
      _
    // Predicated region
    $region22: #{tpu_custom_call.1} parent=1 // pred_check
      _
    $region23: #{tpu_custom_call.1} parent=1 // pred_check_branch
      %66 = sbr.rel (0) target = $region25
    $region24: #{tpu_custom_call.1} parent=1 // pred_region
      _
    $region25: #{tpu_custom_call.1} parent=1 // pred_fallthru
      _
    // Predicated region
    $region26: #{tpu_custom_call.1} parent=1 // pred_check
      _
    $region27: #{tpu_custom_call.1} parent=1 // pred_check_branch
      %68 = sbr.rel (0) target = $region29
    $region28: #{tpu_custom_call.1} parent=1 // pred_region
      %69 = dma.done [#allocation3], 1024
    $region29: #{tpu_custom_call.1} parent=1 // pred_fallthru
      _
    // Predicated region
    $region30: #{tpu_custom_call.1} parent=1 // pred_check
      _
    $region31: #{tpu_custom_call.1} parent=1 // pred_check_branch
      %71 = sbr.rel (0) target = $region33
    $region32: #{tpu_custom_call.1} parent=1 // pred_region
      %72 = dma.done [#allocation6], 256
    $region33: #{tpu_custom_call.1} parent=1 // pred_fallthru
      _
    // Predicated region
    $region34: #{tpu_custom_call.1} parent=1 // pred_check
      _
    $region35: #{tpu_custom_call.1} parent=1 // pred_check_branch
      %74 = sbr.rel (0) target = $region37
    $region36: #{tpu_custom_call.1} parent=1 // pred_region
      %75 = dma.done [#allocation6], 256
    $region37: #{tpu_custom_call.1} parent=1 // pred_fallthru
      _
    // Predicated region
    $region38: #{tpu_custom_call.1} parent=1 // pred_check
      _
    $region39: #{tpu_custom_call.1} parent=1 // pred_check_branch
      %77 = sbr.rel (0) target = $region41
    $region40: #{tpu_custom_call.1} parent=1 // pred_region
      %78 = dma.done [#allocation9], 16
    $region41: #{tpu_custom_call.1} parent=1 // pred_fallthru
      _
    %v80 = vld [vmem:[#allocation2] sm:$0xff]
    %v81 = vld [vmem:[#allocation2 + $0x8] sm:$0xff]
    %v82 = vld [vmem:[#allocation2 + $0x10] sm:$0xff]
    %v83 = vld [vmem:[#allocation2 + $0x18] sm:$0xff]
    %v84 = vld [vmem:[#allocation2 + $0x20] sm:$0xff]
    %v85 = vld [vmem:[#allocation2 + $0x28] sm:$0xff]
    %v86 = vld [vmem:[#allocation2 + $0x30] sm:$0xff]
    %v87 = vld [vmem:[#allocation2 + $0x38] sm:$0xff]
    %v88 = vpack.c.bf16 %v81, %v80
    %v89 = vpack.c.bf16 %v83, %v82
    %v90 = vpack.c.bf16 %v85, %v84
    %v91 = vpack.c.bf16 %v87, %v86
    %v92 = vld [vmem:[#allocation5] sm:$0xf]
    %v93 = vld [vmem:[#allocation5 + $0x4] sm:$0xf]
    %v94 = vld [vmem:[#allocation5 + $0x8] sm:$0xf]
    %v95 = vld [vmem:[#allocation5 + $0xc] sm:$0xf]
    %v96 = vld [vmem:[%s2] sm:$0x1]
    %v98 = vlaneseq
    %v99 = vshrl.u32 %v98, 7
    %v100 = vsub.s32 0, %v99
    %v101 = vrot.slane %v96, %v100
    %v107 = vunpack.c.l.b16 %v92
    %v108 = vunpack.c.l.b16 %v93
    %v109 = vunpack.c.l.b16 %v94
    %v110 = vunpack.c.l.b16 %v95
    %v111 = vpack.c.b16 %v108, %v107
    %v112 = vpack.c.b16 %v110, %v109
    %vm115 = vcmask 261120
    %v117 = vsel %vm115, %v88, 0
    %v120 = vsel %vm115, %v89, 0
    %v123 = vsel %vm115, %v90, 0
    %v126 = vsel %vm115, %v91, 0
    %128 = vmatprep.subr.bf16.mxu0 0
    %129 = vmatpush1.bf16.msra.mxu0 0
    %130 = vmatprep.subr.bf16.mxu0 0
    %131 = vmatpush1.bf16.msra.mxu0 0
    %132 = vmatprep.subr.bf16.mxu0 0
    %133 = vmatpush1.bf16.msra.mxu0 0
    %134 = vmatprep.subr.bf16.mxu0 0
    %135 = vmatpush1.bf16.msra.mxu0 0
    %136 = vmatprep.subr.bf16.mxu0 0
    %137 = vmatpush1.bf16.msra.mxu0 0
    %138 = vmatprep.subr.bf16.mxu0 0
    %139 = vmatpush1.bf16.msra.mxu0 0
    %140 = vmatprep.subr.bf16.mxu0 0
    %141 = vmatpush1.bf16.msra.mxu0 %v112
    %142 = vmatprep.subr.bf16.mxu0 0
    %143 = vmatpush1.bf16.msra.mxu0 %v111
    %144 = vmatprep.subr.bf16.mxu0 0
    %145 = vmatpush2.bf16.msra.mxu0 0
    %146 = vmatprep.subr.bf16.mxu0 0
    %147 = vmatpush2.bf16.msra.mxu0 0
    %148 = vmatprep.subr.bf16.mxu0 0
    %149 = vmatpush2.bf16.msra.mxu0 0
    %150 = vmatprep.subr.bf16.mxu0 0
    %151 = vmatpush2.bf16.msra.mxu0 0
    %152 = vmatprep.subr.bf16.mxu0 0
    %153 = vmatpush2.bf16.msra.mxu0 0
    %154 = vmatprep.subr.bf16.mxu0 0
    %155 = vmatpush2.bf16.msra.mxu0 0
    %156 = vmatprep.subr.bf16.mxu0 0
    %157 = vmatpush2.bf16.msra.mxu0 0
    %158 = vmatprep.subr.bf16.mxu0 0
    %159 = vmatpush2.bf16.msra.mxu0 0
    %160 = vmatprep.mubr.bf16.mxu0 0
    %161 = vmatmul.mubr.bf16.gmra.mxu0 %v117
    %v162 = vpop.f32.mrf.mxu0
    %v163 = vadd.f32 %v101, %v162
    %v164 = vpop.f32.mrf.mxu0
    %v165 = vpop.f32.mrf.mxu0
    %v166 = vadd.f32 %v101, %v165
    %v167 = vpop.f32.mrf.mxu0
    %168 = vmatprep.mubr.bf16.mxu0 0
    %169 = vmatmul.mubr.bf16.gmra.mxu0 %v120
    %v170 = vpop.f32.mrf.mxu0
    %v171 = vadd.f32 %v101, %v170
    %v172 = vpop.f32.mrf.mxu0
    %v173 = vpop.f32.mrf.mxu0
    %v174 = vadd.f32 %v101, %v173
    %v175 = vpop.f32.mrf.mxu0
    %176 = vmatprep.mubr.bf16.mxu0 0
    %177 = vmatmul.mubr.bf16.gmra.mxu0 %v123
    %v178 = vpop.f32.mrf.mxu0
    %v179 = vadd.f32 %v101, %v178
    %v180 = vpop.f32.mrf.mxu0
    %v181 = vpop.f32.mrf.mxu0
    %v182 = vadd.f32 %v101, %v181
    %v183 = vpop.f32.mrf.mxu0
    %184 = vmatprep.mubr.bf16.mxu0 0
    %185 = vmatmul.mubr.bf16.gmra.mxu0 %v126
    %v186 = vpop.f32.mrf.mxu0
    %v187 = vadd.f32 %v101, %v186
    %v188 = vpop.f32.mrf.mxu0
    %v189 = vpop.f32.mrf.mxu0
    %v190 = vadd.f32 %v101, %v189
    %v191 = vpop.f32.mrf.mxu0
    %192 = vdwg.mxu0
    %v193 = vld [vmem:[%s5] sm:$0xff]
    %v194 = vmul.f32 %v163, %v193
    %v195 = vmul.f32 %v166, %v193
    %v196 = vmul.f32 %v171, %v193
    %v197 = vmul.f32 %v174, %v193
    %v198 = vmul.f32 %v179, %v193
    %v199 = vmul.f32 %v182, %v193
    %v200 = vmul.f32 %v187, %v193
    %v201 = vmul.f32 %v190, %v193
    %v202 = vpack.c.bf16 %v195, %v194
    %v203 = vpack.c.bf16 %v197, %v196
    %v204 = vpack.c.bf16 %v199, %v198
    %v205 = vpack.c.bf16 %v201, %v200
    %207 = vrot.lane.b32.xlu0 %v202, 96
    %v208 = vpop.permute.xlu0 %207
    %vm209 = vcmask 64512
    %v211 = vsel %vm209, %v202, 0
    %v214 = vsel %vm209, %v208, 0
    %216 = vmatprep.subr.bf16.mxu0 0
    %217 = vmatpush1.bf16.xpose.msra.mxu0 0
    %218 = vmatprep.subr.bf16.mxu0 0
    %219 = vmatpush1.bf16.xpose.msra.mxu0 0
    %220 = vmatprep.subr.bf16.mxu0 0
    %221 = vmatpush1.bf16.xpose.msra.mxu0 0
    %222 = vmatprep.subr.bf16.mxu0 0
    %223 = vmatpush1.bf16.xpose.msra.mxu0 0
    %224 = vmatprep.subr.bf16.mxu0 0
    %225 = vmatpush1.bf16.xpose.msra.mxu0 0
    %226 = vmatprep.subr.bf16.mxu0 0
    %227 = vmatpush1.bf16.xpose.msra.mxu0 0
    %228 = vmatprep.subr.bf16.mxu0 0
    %229 = vmatpush1.bf16.xpose.msra.mxu0 0
    %230 = vmatprep.subr.bf16.mxu0 0
    %231 = vmatpush1.bf16.xpose.msra.mxu0 %v214
    %232 = vmatprep.subr.bf16.mxu0 0
    %233 = vmatpush2.bf16.xpose.msra.mxu0 0
    %234 = vmatprep.subr.bf16.mxu0 0
    %235 = vmatpush2.bf16.xpose.msra.mxu0 0
    %236 = vmatprep.subr.bf16.mxu0 0
    %237 = vmatpush2.bf16.xpose.msra.mxu0 0
    %238 = vmatprep.subr.bf16.mxu0 0
    %239 = vmatpush2.bf16.xpose.msra.mxu0 0
    %240 = vmatprep.subr.bf16.mxu0 0
    %241 = vmatpush2.bf16.xpose.msra.mxu0 0
    %242 = vmatprep.subr.bf16.mxu0 0
    %243 = vmatpush2.bf16.xpose.msra.mxu0 0
    %244 = vmatprep.subr.bf16.mxu0 0
    %245 = vmatpush2.bf16.xpose.msra.mxu0 0
    %246 = vmatprep.subr.bf16.mxu0 0
    %247 = vmatpush2.bf16.xpose.msra.mxu0 0
    %248 = vmatprep.mubr.bf16.mxu0 0
    %249 = vmatmul.mubr.bf16.gmra.mxu0 %v211
    %v250 = vpop.f32.mrf.mxu0
    %v251 = vadd.f32 0.0, %v250
    %v252 = vpop.f32.mrf.mxu0
    %v253 = vpop.f32.mrf.mxu0
    %v254 = vpop.f32.mrf.mxu0
    %255 = vdwg.mxu0
    %v256 = vsel %vm209, %v251, -inf
    %257 = vmax.xlane.f32.xlu0 %v256
    %v258 = vpop.xlane.xlu0 %257
    %v259 = vsub.f32 %v251, %v258
    %v260 = vmul.f32 %v259, 1.442695
    %v261 = vpow.pop %v260
    %v262 = vsel %vm209, %v261, 0.0
    %263 = vadd.xlane.f32.xlu0 %v262
    %v264 = vpop.xlane.xlu0 %263
    %v265 = vrcp.pop %v264
    %v266 = vmul.f32 %v261, %v265
    %v267 = vpack.c.bf16 %v266, %v266
    %268 = vrot.lane.b32.xlu0 %v202, 64
    %v269 = vpop.permute.xlu0 %268
    %v271 = vsel %vm209, %v267, 0
    %vm273 = vcmask 1043456
    %v275 = vsel %vm273, %v269, 0
    %277 = vmatprep.subr.bf16.mxu0 0
    %278 = vmatpush1.bf16.msra.mxu0 0
    %279 = vmatprep.subr.bf16.mxu0 0
    %280 = vmatpush1.bf16.msra.mxu0 0
    %281 = vmatprep.subr.bf16.mxu0 0
    %282 = vmatpush1.bf16.msra.mxu0 0
    %283 = vmatprep.subr.bf16.mxu0 0
    %284 = vmatpush1.bf16.msra.mxu0 0
    %285 = vmatprep.subr.bf16.mxu0 0
    %286 = vmatpush1.bf16.msra.mxu0 0
    %287 = vmatprep.subr.bf16.mxu0 0
    %288 = vmatpush1.bf16.msra.mxu0 0
    %289 = vmatprep.subr.bf16.mxu0 0
    %290 = vmatpush1.bf16.msra.mxu0 0
    %291 = vmatprep.subr.bf16.mxu0 0
    %292 = vmatpush1.bf16.msra.mxu0 %v275
    %293 = vmatprep.subr.bf16.mxu0 0
    %294 = vmatpush2.bf16.msra.mxu0 0
    %295 = vmatprep.subr.bf16.mxu0 0
    %296 = vmatpush2.bf16.msra.mxu0 0
    %297 = vmatprep.subr.bf16.mxu0 0
    %298 = vmatpush2.bf16.msra.mxu0 0
    %299 = vmatprep.subr.bf16.mxu0 0
    %300 = vmatpush2.bf16.msra.mxu0 0
    %301 = vmatprep.subr.bf16.mxu0 0
    %302 = vmatpush2.bf16.msra.mxu0 0
    %303 = vmatprep.subr.bf16.mxu0 0
    %304 = vmatpush2.bf16.msra.mxu0 0
    %305 = vmatprep.subr.bf16.mxu0 0
    %306 = vmatpush2.bf16.msra.mxu0 0
    %307 = vmatprep.subr.bf16.mxu0 0
    %308 = vmatpush2.bf16.msra.mxu0 0
    %309 = vmatprep.mubr.bf16.mxu0 0
    %310 = vmatmul.mubr.bf16.gmra.mxu0 %v271
    %v311 = vpop.f32.mrf.mxu0
    %v312 = vadd.f32 0.0, %v311
    %v313 = vpop.f32.mrf.mxu0
    %v314 = vpop.f32.mrf.mxu0
    %v315 = vpop.f32.mrf.mxu0
    %316 = vdwg.mxu0
    %317 = vrot.lane.b32.xlu0 %v202, 120
    %v318 = vpop.permute.xlu0 %317
    %319 = vrot.lane.b32.xlu0 %v202, 88
    %v320 = vpop.permute.xlu0 %319
    %v322 = vsel %vm209, %v318, 0
    %v325 = vsel %vm209, %v320, 0
    %327 = vmatprep.subr.bf16.mxu0 0
    %328 = vmatpush1.bf16.xpose.msra.mxu0 0
    %329 = vmatprep.subr.bf16.mxu0 0
    %330 = vmatpush1.bf16.xpose.msra.mxu0 0
    %331 = vmatprep.subr.bf16.mxu0 0
    %332 = vmatpush1.bf16.xpose.msra.mxu0 0
    %333 = vmatprep.subr.bf16.mxu0 0
    %334 = vmatpush1.bf16.xpose.msra.mxu0 0
    %335 = vmatprep.subr.bf16.mxu0 0
    %336 = vmatpush1.bf16.xpose.msra.mxu0 0
    %337 = vmatprep.subr.bf16.mxu0 0
    %338 = vmatpush1.bf16.xpose.msra.mxu0 0
    %339 = vmatprep.subr.bf16.mxu0 0
    %340 = vmatpush1.bf16.xpose.msra.mxu0 0
    %341 = vmatprep.subr.bf16.mxu0 0
    %342 = vmatpush1.bf16.xpose.msra.mxu0 %v325
    %343 = vmatprep.subr.bf16.mxu0 0
    %344 = vmatpush2.bf16.xpose.msra.mxu0 0
    %345 = vmatprep.subr.bf16.mxu0 0
    %346 = vmatpush2.bf16.xpose.msra.mxu0 0
    %347 = vmatprep.subr.bf16.mxu0 0
    %348 = vmatpush2.bf16.xpose.msra.mxu0 0
    %349 = vmatprep.subr.bf16.mxu0 0
    %350 = vmatpush2.bf16.xpose.msra.mxu0 0
    %351 = vmatprep.subr.bf16.mxu0 0
    %352 = vmatpush2.bf16.xpose.msra.mxu0 0
    %353 = vmatprep.subr.bf16.mxu0 0
    %354 = vmatpush2.bf16.xpose.msra.mxu0 0
    %355 = vmatprep.subr.bf16.mxu0 0
    %356 = vmatpush2.bf16.xpose.msra.mxu0 0
    %357 = vmatprep.subr.bf16.mxu0 0
    %358 = vmatpush2.bf16.xpose.msra.mxu0 0
    %359 = vmatprep.mubr.bf16.mxu0 0
    %360 = vmatmul.mubr.bf16.gmra.mxu0 %v322
    %v361 = vpop.f32.mrf.mxu0
    %v362 = vadd.f32 0.0, %v361
    %v363 = vpop.f32.mrf.mxu0
    %v364 = vpop.f32.mrf.mxu0
    %v365 = vpop.f32.mrf.mxu0
    %366 = vdwg.mxu0
    %v367 = vsel %vm209, %v362, -inf
    %368 = vmax.xlane.f32.xlu0 %v367
    %v369 = vpop.xlane.xlu0 %368
    %v370 = vsub.f32 %v362, %v369
    %v371 = vmul.f32 %v370, 1.442695
    %v372 = vpow.pop %v371
    %v373 = vsel %vm209, %v372, 0.0
    %374 = vadd.xlane.f32.xlu0 %v373
    %v375 = vpop.xlane.xlu0 %374
    %v376 = vrcp.pop %v375
    %v377 = vmul.f32 %v372, %v376
    %v378 = vpack.c.bf16 %v377, %v377
    %379 = vrot.lane.b32.xlu0 %v202, 56
    %v380 = vpop.permute.xlu0 %379
    %v382 = vsel %vm209, %v378, 0
    %v385 = vsel %vm273, %v380, 0
    %387 = vmatprep.subr.bf16.mxu0 0
    %388 = vmatpush1.bf16.msra.mxu0 0
    %389 = vmatprep.subr.bf16.mxu0 0
    %390 = vmatpush1.bf16.msra.mxu0 0
    %391 = vmatprep.subr.bf16.mxu0 0
    %392 = vmatpush1.bf16.msra.mxu0 0
    %393 = vmatprep.subr.bf16.mxu0 0
    %394 = vmatpush1.bf16.msra.mxu0 0
    %395 = vmatprep.subr.bf16.mxu0 0
    %396 = vmatpush1.bf16.msra.mxu0 0
    %397 = vmatprep.subr.bf16.mxu0 0
    %398 = vmatpush1.bf16.msra.mxu0 0
    %399 = vmatprep.subr.bf16.mxu0 0
    %400 = vmatpush1.bf16.msra.mxu0 0
    %401 = vmatprep.subr.bf16.mxu0 0
    %402 = vmatpush1.bf16.msra.mxu0 %v385
    %403 = vmatprep.subr.bf16.mxu0 0
    %404 = vmatpush2.bf16.msra.mxu0 0
    %405 = vmatprep.subr.bf16.mxu0 0
    %406 = vmatpush2.bf16.msra.mxu0 0
    %407 = vmatprep.subr.bf16.mxu0 0
    %408 = vmatpush2.bf16.msra.mxu0 0
    %409 = vmatprep.subr.bf16.mxu0 0
    %410 = vmatpush2.bf16.msra.mxu0 0
    %411 = vmatprep.subr.bf16.mxu0 0
    %412 = vmatpush2.bf16.msra.mxu0 0
    %413 = vmatprep.subr.bf16.mxu0 0
    %414 = vmatpush2.bf16.msra.mxu0 0
    %415 = vmatprep.subr.bf16.mxu0 0
    %416 = vmatpush2.bf16.msra.mxu0 0
    %417 = vmatprep.subr.bf16.mxu0 0
    %418 = vmatpush2.bf16.msra.mxu0 0
    %419 = vmatprep.mubr.bf16.mxu0 0
    %420 = vmatmul.mubr.bf16.gmra.mxu0 %v382
    %v421 = vpop.f32.mrf.mxu0
    %v422 = vadd.f32 0.0, %v421
    %v423 = vpop.f32.mrf.mxu0
    %v424 = vpop.f32.mrf.mxu0
    %v425 = vpop.f32.mrf.mxu0
    %426 = vdwg.mxu0
    %427 = vrot.lane.b32.xlu0 %v202, 112
    %v428 = vpop.permute.xlu0 %427
    %429 = vrot.lane.b32.xlu0 %v202, 80
    %v430 = vpop.permute.xlu0 %429
    %v432 = vsel %vm209, %v428, 0
    %v435 = vsel %vm209, %v430, 0
    %437 = vmatprep.subr.bf16.mxu0 0
    %438 = vmatpush1.bf16.xpose.msra.mxu0 0
    %439 = vmatprep.subr.bf16.mxu0 0
    %440 = vmatpush1.bf16.xpose.msra.mxu0 0
    %441 = vmatprep.subr.bf16.mxu0 0
    %442 = vmatpush1.bf16.xpose.msra.mxu0 0
    %443 = vmatprep.subr.bf16.mxu0 0
    %444 = vmatpush1.bf16.xpose.msra.mxu0 0
    %445 = vmatprep.subr.bf16.mxu0 0
    %446 = vmatpush1.bf16.xpose.msra.mxu0 0
    %447 = vmatprep.subr.bf16.mxu0 0
    %448 = vmatpush1.bf16.xpose.msra.mxu0 0
    %449 = vmatprep.subr.bf16.mxu0 0
    %450 = vmatpush1.bf16.xpose.msra.mxu0 0
    %451 = vmatprep.subr.bf16.mxu0 0
    %452 = vmatpush1.bf16.xpose.msra.mxu0 %v435
    %453 = vmatprep.subr.bf16.mxu0 0
    %454 = vmatpush2.bf16.xpose.msra.mxu0 0
    %455 = vmatprep.subr.bf16.mxu0 0
    %456 = vmatpush2.bf16.xpose.msra.mxu0 0
    %457 = vmatprep.subr.bf16.mxu0 0
    %458 = vmatpush2.bf16.xpose.msra.mxu0 0
    %459 = vmatprep.subr.bf16.mxu0 0
    %460 = vmatpush2.bf16.xpose.msra.mxu0 0
    %461 = vmatprep.subr.bf16.mxu0 0
    %462 = vmatpush2.bf16.xpose.msra.mxu0 0
    %463 = vmatprep.subr.bf16.mxu0 0
    %464 = vmatpush2.bf16.xpose.msra.mxu0 0
    %465 = vmatprep.subr.bf16.mxu0 0
    %466 = vmatpush2.bf16.xpose.msra.mxu0 0
    %467 = vmatprep.subr.bf16.mxu0 0
    %468 = vmatpush2.bf16.xpose.msra.mxu0 0
    %469 = vmatprep.mubr.bf16.mxu0 0
    %470 = vmatmul.mubr.bf16.gmra.mxu0 %v432
    %v471 = vpop.f32.mrf.mxu0
    %v472 = vadd.f32 0.0, %v471
    %v473 = vpop.f32.mrf.mxu0
    %v474 = vpop.f32.mrf.mxu0
    %v475 = vpop.f32.mrf.mxu0
    %476 = vdwg.mxu0
    %v477 = vsel %vm209, %v472, -inf
    %478 = vmax.xlane.f32.xlu0 %v477
    %v479 = vpop.xlane.xlu0 %478
    %v480 = vsub.f32 %v472, %v479
    %v481 = vmul.f32 %v480, 1.442695
    %v482 = vpow.pop %v481
    %v483 = vsel %vm209, %v482, 0.0
    %484 = vadd.xlane.f32.xlu0 %v483
    %v485 = vpop.xlane.xlu0 %484
    %v486 = vrcp.pop %v485
    %v487 = vmul.f32 %v482, %v486
    %v488 = vpack.c.bf16 %v487, %v487
    %489 = vrot.lane.b32.xlu0 %v202, 48
    %v490 = vpop.permute.xlu0 %489
    %v492 = vsel %vm209, %v488, 0
    %v495 = vsel %vm273, %v490, 0
    %497 = vmatprep.subr.bf16.mxu0 0
    %498 = vmatpush1.bf16.msra.mxu0 0
    %499 = vmatprep.subr.bf16.mxu0 0
    %500 = vmatpush1.bf16.msra.mxu0 0
    %501 = vmatprep.subr.bf16.mxu0 0
    %502 = vmatpush1.bf16.msra.mxu0 0
    %503 = vmatprep.subr.bf16.mxu0 0
    %504 = vmatpush1.bf16.msra.mxu0 0
    %505 = vmatprep.subr.bf16.mxu0 0
    %506 = vmatpush1.bf16.msra.mxu0 0
    %507 = vmatprep.subr.bf16.mxu0 0
    %508 = vmatpush1.bf16.msra.mxu0 0
    %509 = vmatprep.subr.bf16.mxu0 0
    %510 = vmatpush1.bf16.msra.mxu0 0
    %511 = vmatprep.subr.bf16.mxu0 0
    %512 = vmatpush1.bf16.msra.mxu0 %v495
    %513 = vmatprep.subr.bf16.mxu0 0
    %514 = vmatpush2.bf16.msra.mxu0 0
    %515 = vmatprep.subr.bf16.mxu0 0
    %516 = vmatpush2.bf16.msra.mxu0 0
    %517 = vmatprep.subr.bf16.mxu0 0
    %518 = vmatpush2.bf16.msra.mxu0 0
    %519 = vmatprep.subr.bf16.mxu0 0
    %520 = vmatpush2.bf16.msra.mxu0 0
    %521 = vmatprep.subr.bf16.mxu0 0
    %522 = vmatpush2.bf16.msra.mxu0 0
    %523 = vmatprep.subr.bf16.mxu0 0
    %524 = vmatpush2.bf16.msra.mxu0 0
    %525 = vmatprep.subr.bf16.mxu0 0
    %526 = vmatpush2.bf16.msra.mxu0 0
    %527 = vmatprep.subr.bf16.mxu0 0
    %528 = vmatpush2.bf16.msra.mxu0 0
    %529 = vmatprep.mubr.bf16.mxu0 0
    %530 = vmatmul.mubr.bf16.gmra.mxu0 %v492
    %v531 = vpop.f32.mrf.mxu0
    %v532 = vadd.f32 0.0, %v531
    %v533 = vpop.f32.mrf.mxu0
    %v534 = vpop.f32.mrf.mxu0
    %v535 = vpop.f32.mrf.mxu0
    %536 = vdwg.mxu0
    %537 = vrot.lane.b32.xlu0 %v202, 104
    %v538 = vpop.permute.xlu0 %537
    %539 = vrot.lane.b32.xlu0 %v202, 72
    %v540 = vpop.permute.xlu0 %539
    %v542 = vsel %vm209, %v538, 0
    %v545 = vsel %vm209, %v540, 0
    %547 = vmatprep.subr.bf16.mxu0 0
    %548 = vmatpush1.bf16.xpose.msra.mxu0 0
    %549 = vmatprep.subr.bf16.mxu0 0
    %550 = vmatpush1.bf16.xpose.msra.mxu0 0
    %551 = vmatprep.subr.bf16.mxu0 0
    %552 = vmatpush1.bf16.xpose.msra.mxu0 0
    %553 = vmatprep.subr.bf16.mxu0 0
    %554 = vmatpush1.bf16.xpose.msra.mxu0 0
    %555 = vmatprep.subr.bf16.mxu0 0
    %556 = vmatpush1.bf16.xpose.msra.mxu0 0
    %557 = vmatprep.subr.bf16.mxu0 0
    %558 = vmatpush1.bf16.xpose.msra.mxu0 0
    %559 = vmatprep.subr.bf16.mxu0 0
    %560 = vmatpush1.bf16.xpose.msra.mxu0 0
    %561 = vmatprep.subr.bf16.mxu0 0
    %562 = vmatpush1.bf16.xpose.msra.mxu0 %v545
    %563 = vmatprep.subr.bf16.mxu0 0
    %564 = vmatpush2.bf16.xpose.msra.mxu0 0
    %565 = vmatprep.subr.bf16.mxu0 0
    %566 = vmatpush2.bf16.xpose.msra.mxu0 0
    %567 = vmatprep.subr.bf16.mxu0 0
    %568 = vmatpush2.bf16.xpose.msra.mxu0 0
    %569 = vmatprep.subr.bf16.mxu0 0
    %570 = vmatpush2.bf16.xpose.msra.mxu0 0
    %571 = vmatprep.subr.bf16.mxu0 0
    %572 = vmatpush2.bf16.xpose.msra.mxu0 0
    %573 = vmatprep.subr.bf16.mxu0 0
    %574 = vmatpush2.bf16.xpose.msra.mxu0 0
    %575 = vmatprep.subr.bf16.mxu0 0
    %576 = vmatpush2.bf16.xpose.msra.mxu0 0
    %577 = vmatprep.subr.bf16.mxu0 0
    %578 = vmatpush2.bf16.xpose.msra.mxu0 0
    %579 = vmatprep.mubr.bf16.mxu0 0
    %580 = vmatmul.mubr.bf16.gmra.mxu0 %v542
    %v581 = vpop.f32.mrf.mxu0
    %v582 = vadd.f32 0.0, %v581
    %v583 = vpop.f32.mrf.mxu0
    %v584 = vpop.f32.mrf.mxu0
    %v585 = vpop.f32.mrf.mxu0
    %586 = vdwg.mxu0
    %v587 = vsel %vm209, %v582, -inf
    %588 = vmax.xlane.f32.xlu0 %v587
    %v589 = vpop.xlane.xlu0 %588
    %v590 = vsub.f32 %v582, %v589
    %v591 = vmul.f32 %v590, 1.442695
    %v592 = vpow.pop %v591
    %v593 = vsel %vm209, %v592, 0.0
    %594 = vadd.xlane.f32.xlu0 %v593
    %v595 = vpop.xlane.xlu0 %594
    %v596 = vrcp.pop %v595
    %v597 = vmul.f32 %v592, %v596
    %v598 = vpack.c.bf16 %v597, %v597
    %599 = vrot.lane.b32.xlu0 %v202, 40
    %v600 = vpop.permute.xlu0 %599
    %v602 = vsel %vm209, %v598, 0
    %v605 = vsel %vm273, %v600, 0
    %607 = vmatprep.subr.bf16.mxu0 0
    %608 = vmatpush1.bf16.msra.mxu0 0
    %609 = vmatprep.subr.bf16.mxu0 0
    %610 = vmatpush1.bf16.msra.mxu0 0
    %611 = vmatprep.subr.bf16.mxu0 0
    %612 = vmatpush1.bf16.msra.mxu0 0
    %613 = vmatprep.subr.bf16.mxu0 0
    %614 = vmatpush1.bf16.msra.mxu0 0
    %615 = vmatprep.subr.bf16.mxu0 0
    %616 = vmatpush1.bf16.msra.mxu0 0
    %617 = vmatprep.subr.bf16.mxu0 0
    %618 = vmatpush1.bf16.msra.mxu0 0
    %619 = vmatprep.subr.bf16.mxu0 0
    %620 = vmatpush1.bf16.msra.mxu0 0
    %621 = vmatprep.subr.bf16.mxu0 0
    %622 = vmatpush1.bf16.msra.mxu0 %v605
    %623 = vmatprep.subr.bf16.mxu0 0
    %624 = vmatpush2.bf16.msra.mxu0 0
    %625 = vmatprep.subr.bf16.mxu0 0
    %626 = vmatpush2.bf16.msra.mxu0 0
    %627 = vmatprep.subr.bf16.mxu0 0
    %628 = vmatpush2.bf16.msra.mxu0 0
    %629 = vmatprep.subr.bf16.mxu0 0
    %630 = vmatpush2.bf16.msra.mxu0 0
    %631 = vmatprep.subr.bf16.mxu0 0
    %632 = vmatpush2.bf16.msra.mxu0 0
    %633 = vmatprep.subr.bf16.mxu0 0
    %634 = vmatpush2.bf16.msra.mxu0 0
    %635 = vmatprep.subr.bf16.mxu0 0
    %636 = vmatpush2.bf16.msra.mxu0 0
    %637 = vmatprep.subr.bf16.mxu0 0
    %638 = vmatpush2.bf16.msra.mxu0 0
    %639 = vmatprep.mubr.bf16.mxu0 0
    %640 = vmatmul.mubr.bf16.gmra.mxu0 %v602
    %v641 = vpop.f32.mrf.mxu0
    %v642 = vadd.f32 0.0, %v641
    %v643 = vpop.f32.mrf.mxu0
    %v644 = vpop.f32.mrf.mxu0
    %v645 = vpop.f32.mrf.mxu0
    %646 = vdwg.mxu0
    %648 = vrot.lane.b32.xlu0 %v422, 8
    %v649 = vpop.permute.xlu0 %648
    %652 = vrot.lane.b32.xlu0 %v532, 16
    %v653 = vpop.permute.xlu0 %652
    %656 = vrot.lane.b32.xlu0 %v642, 24
    %v657 = vpop.permute.xlu0 %656
    %v659 = vsel %vm209, %v312, %v649
    %vm660 = vcmask 130048
    %v661 = vsel %vm660, %v659, %v653
    %vm662 = vcmask 195584
    %v663 = vsel %vm662, %v661, %v657
    %v664 = vrot.slane %v202, 4
    %665 = vrot.lane.b32.xlu0 %v664, 96
    %v666 = vpop.permute.xlu0 %665
    %v668 = vsel %vm209, %v664, 0
    %v671 = vsel %vm209, %v666, 0
    %673 = vmatprep.subr.bf16.mxu0 0
    %674 = vmatpush1.bf16.xpose.msra.mxu0 0
    %675 = vmatprep.subr.bf16.mxu0 0
    %676 = vmatpush1.bf16.xpose.msra.mxu0 0
    %677 = vmatprep.subr.bf16.mxu0 0
    %678 = vmatpush1.bf16.xpose.msra.mxu0 0
    %679 = vmatprep.subr.bf16.mxu0 0
    %680 = vmatpush1.bf16.xpose.msra.mxu0 0
    %681 = vmatprep.subr.bf16.mxu0 0
    %682 = vmatpush1.bf16.xpose.msra.mxu0 0
    %683 = vmatprep.subr.bf16.mxu0 0
    %684 = vmatpush1.bf16.xpose.msra.mxu0 0
    %685 = vmatprep.subr.bf16.mxu0 0
    %686 = vmatpush1.bf16.xpose.msra.mxu0 0
    %687 = vmatprep.subr.bf16.mxu0 0
    %688 = vmatpush1.bf16.xpose.msra.mxu0 %v671
    %689 = vmatprep.subr.bf16.mxu0 0
    %690 = vmatpush2.bf16.xpose.msra.mxu0 0
    %691 = vmatprep.subr.bf16.mxu0 0
    %692 = vmatpush2.bf16.xpose.msra.mxu0 0
    %693 = vmatprep.subr.bf16.mxu0 0
    %694 = vmatpush2.bf16.xpose.msra.mxu0 0
    %695 = vmatprep.subr.bf16.mxu0 0
    %696 = vmatpush2.bf16.xpose.msra.mxu0 0
    %697 = vmatprep.subr.bf16.mxu0 0
    %698 = vmatpush2.bf16.xpose.msra.mxu0 0
    %699 = vmatprep.subr.bf16.mxu0 0
    %700 = vmatpush2.bf16.xpose.msra.mxu0 0
    %701 = vmatprep.subr.bf16.mxu0 0
    %702 = vmatpush2.bf16.xpose.msra.mxu0 0
    %703 = vmatprep.subr.bf16.mxu0 0
    %704 = vmatpush2.bf16.xpose.msra.mxu0 0
    %705 = vmatprep.mubr.bf16.mxu0 0
    %706 = vmatmul.mubr.bf16.gmra.mxu0 %v668
    %v707 = vpop.f32.mrf.mxu0
    %v708 = vadd.f32 0.0, %v707
    %v709 = vpop.f32.mrf.mxu0
    %v710 = vpop.f32.mrf.mxu0
    %v711 = vpop.f32.mrf.mxu0
    %712 = vdwg.mxu0
    %v713 = vsel %vm209, %v708, -inf
    %714 = vmax.xlane.f32.xlu0 %v713
    %v715 = vpop.xlane.xlu0 %714
    %v716 = vsub.f32 %v708, %v715
    %v717 = vmul.f32 %v716, 1.442695
    %v718 = vpow.pop %v717
    %v719 = vsel %vm209, %v718, 0.0
    %720 = vadd.xlane.f32.xlu0 %v719
    %v721 = vpop.xlane.xlu0 %720
    %v722 = vrcp.pop %v721
    %v723 = vmul.f32 %v718, %v722
    %v724 = vpack.c.bf16 %v723, %v723
    %725 = vrot.lane.b32.xlu0 %v664, 64
    %v726 = vpop.permute.xlu0 %725
    %v728 = vsel %vm209, %v724, 0
    %v731 = vsel %vm273, %v726, 0
    %733 = vmatprep.subr.bf16.mxu0 0
    %734 = vmatpush1.bf16.msra.mxu0 0
    %735 = vmatprep.subr.bf16.mxu0 0
    %736 = vmatpush1.bf16.msra.mxu0 0
    %737 = vmatprep.subr.bf16.mxu0 0
    %738 = vmatpush1.bf16.msra.mxu0 0
    %739 = vmatprep.subr.bf16.mxu0 0
    %740 = vmatpush1.bf16.msra.mxu0 0
    %741 = vmatprep.subr.bf16.mxu0 0
    %742 = vmatpush1.bf16.msra.mxu0 0
    %743 = vmatprep.subr.bf16.mxu0 0
    %744 = vmatpush1.bf16.msra.mxu0 0
    %745 = vmatprep.subr.bf16.mxu0 0
    %746 = vmatpush1.bf16.msra.mxu0 0
    %747 = vmatprep.subr.bf16.mxu0 0
    %748 = vmatpush1.bf16.msra.mxu0 %v731
    %749 = vmatprep.subr.bf16.mxu0 0
    %750 = vmatpush2.bf16.msra.mxu0 0
    %751 = vmatprep.subr.bf16.mxu0 0
    %752 = vmatpush2.bf16.msra.mxu0 0
    %753 = vmatprep.subr.bf16.mxu0 0
    %754 = vmatpush2.bf16.msra.mxu0 0
    %755 = vmatprep.subr.bf16.mxu0 0
    %756 = vmatpush2.bf16.msra.mxu0 0
    %757 = vmatprep.subr.bf16.mxu0 0
    %758 = vmatpush2.bf16.msra.mxu0 0
    %759 = vmatprep.subr.bf16.mxu0 0
    %760 = vmatpush2.bf16.msra.mxu0 0
    %761 = vmatprep.subr.bf16.mxu0 0
    %762 = vmatpush2.bf16.msra.mxu0 0
    %763 = vmatprep.subr.bf16.mxu0 0
    %764 = vmatpush2.bf16.msra.mxu0 0
    %765 = vmatprep.mubr.bf16.mxu0 0
    %766 = vmatmul.mubr.bf16.gmra.mxu0 %v728
    %v767 = vpop.f32.mrf.mxu0
    %v768 = vadd.f32 0.0, %v767
    %v769 = vpop.f32.mrf.mxu0
    %v770 = vpop.f32.mrf.mxu0
    %v771 = vpop.f32.mrf.mxu0
    %772 = vdwg.mxu0
    %773 = vrot.lane.b32.xlu0 %v664, 120
    %v774 = vpop.permute.xlu0 %773
    %775 = vrot.lane.b32.xlu0 %v664, 88
    %v776 = vpop.permute.xlu0 %775
    %v778 = vsel %vm209, %v774, 0
    %v781 = vsel %vm209, %v776, 0
    %783 = vmatprep.subr.bf16.mxu0 0
    %784 = vmatpush1.bf16.xpose.msra.mxu0 0
    %785 = vmatprep.subr.bf16.mxu0 0
    %786 = vmatpush1.bf16.xpose.msra.mxu0 0
    %787 = vmatprep.subr.bf16.mxu0 0
    %788 = vmatpush1.bf16.xpose.msra.mxu0 0
    %789 = vmatprep.subr.bf16.mxu0 0
    %790 = vmatpush1.bf16.xpose.msra.mxu0 0
    %791 = vmatprep.subr.bf16.mxu0 0
    %792 = vmatpush1.bf16.xpose.msra.mxu0 0
    %793 = vmatprep.subr.bf16.mxu0 0
    %794 = vmatpush1.bf16.xpose.msra.mxu0 0
    %795 = vmatprep.subr.bf16.mxu0 0
    %796 = vmatpush1.bf16.xpose.msra.mxu0 0
    %797 = vmatprep.subr.bf16.mxu0 0
    %798 = vmatpush1.bf16.xpose.msra.mxu0 %v781
    %799 = vmatprep.subr.bf16.mxu0 0
    %800 = vmatpush2.bf16.xpose.msra.mxu0 0
    %801 = vmatprep.subr.bf16.mxu0 0
    %802 = vmatpush2.bf16.xpose.msra.mxu0 0
    %803 = vmatprep.subr.bf16.mxu0 0
    %804 = vmatpush2.bf16.xpose.msra.mxu0 0
    %805 = vmatprep.subr.bf16.mxu0 0
    %806 = vmatpush2.bf16.xpose.msra.mxu0 0
    %807 = vmatprep.subr.bf16.mxu0 0
    %808 = vmatpush2.bf16.xpose.msra.mxu0 0
    %809 = vmatprep.subr.bf16.mxu0 0
    %810 = vmatpush2.bf16.xpose.msra.mxu0 0
    %811 = vmatprep.subr.bf16.mxu0 0
    %812 = vmatpush2.bf16.xpose.msra.mxu0 0
    %813 = vmatprep.subr.bf16.mxu0 0
    %814 = vmatpush2.bf16.xpose.msra.mxu0 0
    %815 = vmatprep.mubr.bf16.mxu0 0
    %816 = vmatmul.mubr.bf16.gmra.mxu0 %v778
    %v817 = vpop.f32.mrf.mxu0
    %v818 = vadd.f32 0.0, %v817
    %v819 = vpop.f32.mrf.mxu0
    %v820 = vpop.f32.mrf.mxu0
    %v821 = vpop.f32.mrf.mxu0
    %822 = vdwg.mxu0
    %v823 = vsel %vm209, %v818, -inf
    %824 = vmax.xlane.f32.xlu0 %v823
    %v825 = vpop.xlane.xlu0 %824
    %v826 = vsub.f32 %v818, %v825
    %v827 = vmul.f32 %v826, 1.442695
    %v828 = vpow.pop %v827
    %v829 = vsel %vm209, %v828, 0.0
    %830 = vadd.xlane.f32.xlu0 %v829
    %v831 = vpop.xlane.xlu0 %830
    %v832 = vrcp.pop %v831
    %v833 = vmul.f32 %v828, %v832
    %v834 = vpack.c.bf16 %v833, %v833
    %835 = vrot.lane.b32.xlu0 %v664, 56
    %v836 = vpop.permute.xlu0 %835
    %v838 = vsel %vm209, %v834, 0
    %v841 = vsel %vm273, %v836, 0
    %843 = vmatprep.subr.bf16.mxu0 0
    %844 = vmatpush1.bf16.msra.mxu0 0
    %845 = vmatprep.subr.bf16.mxu0 0
    %846 = vmatpush1.bf16.msra.mxu0 0
    %847 = vmatprep.subr.bf16.mxu0 0
    %848 = vmatpush1.bf16.msra.mxu0 0
    %849 = vmatprep.subr.bf16.mxu0 0
    %850 = vmatpush1.bf16.msra.mxu0 0
    %851 = vmatprep.subr.bf16.mxu0 0
    %852 = vmatpush1.bf16.msra.mxu0 0
    %853 = vmatprep.subr.bf16.mxu0 0
    %854 = vmatpush1.bf16.msra.mxu0 0
    %855 = vmatprep.subr.bf16.mxu0 0
    %856 = vmatpush1.bf16.msra.mxu0 0
    %857 = vmatprep.subr.bf16.mxu0 0
    %858 = vmatpush1.bf16.msra.mxu0 %v841
    %859 = vmatprep.subr.bf16.mxu0 0
    %860 = vmatpush2.bf16.msra.mxu0 0
    %861 = vmatprep.subr.bf16.mxu0 0
    %862 = vmatpush2.bf16.msra.mxu0 0
    %863 = vmatprep.subr.bf16.mxu0 0
    %864 = vmatpush2.bf16.msra.mxu0 0
    %865 = vmatprep.subr.bf16.mxu0 0
    %866 = vmatpush2.bf16.msra.mxu0 0
    %867 = vmatprep.subr.bf16.mxu0 0
    %868 = vmatpush2.bf16.msra.mxu0 0
    %869 = vmatprep.subr.bf16.mxu0 0
    %870 = vmatpush2.bf16.msra.mxu0 0
    %871 = vmatprep.subr.bf16.mxu0 0
    %872 = vmatpush2.bf16.msra.mxu0 0
    %873 = vmatprep.subr.bf16.mxu0 0
    %874 = vmatpush2.bf16.msra.mxu0 0
    %875 = vmatprep.mubr.bf16.mxu0 0
    %876 = vmatmul.mubr.bf16.gmra.mxu0 %v838
    %v877 = vpop.f32.mrf.mxu0
    %v878 = vadd.f32 0.0, %v877
    %v879 = vpop.f32.mrf.mxu0
    %v880 = vpop.f32.mrf.mxu0
    %v881 = vpop.f32.mrf.mxu0
    %882 = vdwg.mxu0
    %883 = vrot.lane.b32.xlu0 %v664, 112
    %v884 = vpop.permute.xlu0 %883
    %885 = vrot.lane.b32.xlu0 %v664, 80
    %v886 = vpop.permute.xlu0 %885
    %v888 = vsel %vm209, %v884, 0
    %v891 = vsel %vm209, %v886, 0
    %893 = vmatprep.subr.bf16.mxu0 0
    %894 = vmatpush1.bf16.xpose.msra.mxu0 0
    %895 = vmatprep.subr.bf16.mxu0 0
    %896 = vmatpush1.bf16.xpose.msra.mxu0 0
    %897 = vmatprep.subr.bf16.mxu0 0
    %898 = vmatpush1.bf16.xpose.msra.mxu0 0
    %899 = vmatprep.subr.bf16.mxu0 0
    %900 = vmatpush1.bf16.xpose.msra.mxu0 0
    %901 = vmatprep.subr.bf16.mxu0 0
    %902 = vmatpush1.bf16.xpose.msra.mxu0 0
    %903 = vmatprep.subr.bf16.mxu0 0
    %904 = vmatpush1.bf16.xpose.msra.mxu0 0
    %905 = vmatprep.subr.bf16.mxu0 0
    %906 = vmatpush1.bf16.xpose.msra.mxu0 0
    %907 = vmatprep.subr.bf16.mxu0 0
    %908 = vmatpush1.bf16.xpose.msra.mxu0 %v891
    %909 = vmatprep.subr.bf16.mxu0 0
    %910 = vmatpush2.bf16.xpose.msra.mxu0 0
    %911 = vmatprep.subr.bf16.mxu0 0
    %912 = vmatpush2.bf16.xpose.msra.mxu0 0
    %913 = vmatprep.subr.bf16.mxu0 0
    %914 = vmatpush2.bf16.xpose.msra.mxu0 0
    %915 = vmatprep.subr.bf16.mxu0 0
    %916 = vmatpush2.bf16.xpose.msra.mxu0 0
    %917 = vmatprep.subr.bf16.mxu0 0
    %918 = vmatpush2.bf16.xpose.msra.mxu0 0
    %919 = vmatprep.subr.bf16.mxu0 0
    %920 = vmatpush2.bf16.xpose.msra.mxu0 0
    %921 = vmatprep.subr.bf16.mxu0 0
    %922 = vmatpush2.bf16.xpose.msra.mxu0 0
    %923 = vmatprep.subr.bf16.mxu0 0
    %924 = vmatpush2.bf16.xpose.msra.mxu0 0
    %925 = vmatprep.mubr.bf16.mxu0 0
    %926 = vmatmul.mubr.bf16.gmra.mxu0 %v888
    %v927 = vpop.f32.mrf.mxu0
    %v928 = vadd.f32 0.0, %v927
    %v929 = vpop.f32.mrf.mxu0
    %v930 = vpop.f32.mrf.mxu0
    %v931 = vpop.f32.mrf.mxu0
    %932 = vdwg.mxu0
    %v933 = vsel %vm209, %v928, -inf
    %934 = vmax.xlane.f32.xlu0 %v933
    %v935 = vpop.xlane.xlu0 %934
    %v936 = vsub.f32 %v928, %v935
    %v937 = vmul.f32 %v936, 1.442695
    %v938 = vpow.pop %v937
    %v939 = vsel %vm209, %v938, 0.0
    %940 = vadd.xlane.f32.xlu0 %v939
    %v941 = vpop.xlane.xlu0 %940
    %v942 = vrcp.pop %v941
    %v943 = vmul.f32 %v938, %v942
    %v944 = vpack.c.bf16 %v943, %v943
    %945 = vrot.lane.b32.xlu0 %v664, 48
    %v946 = vpop.permute.xlu0 %945
    %v948 = vsel %vm209, %v944, 0
    %v951 = vsel %vm273, %v946, 0
    %953 = vmatprep.subr.bf16.mxu0 0
    %954 = vmatpush1.bf16.msra.mxu0 0
    %955 = vmatprep.subr.bf16.mxu0 0
    %956 = vmatpush1.bf16.msra.mxu0 0
    %957 = vmatprep.subr.bf16.mxu0 0
    %958 = vmatpush1.bf16.msra.mxu0 0
    %959 = vmatprep.subr.bf16.mxu0 0
    %960 = vmatpush1.bf16.msra.mxu0 0
    %961 = vmatprep.subr.bf16.mxu0 0
    %962 = vmatpush1.bf16.msra.mxu0 0
    %963 = vmatprep.subr.bf16.mxu0 0
    %964 = vmatpush1.bf16.msra.mxu0 0
    %965 = vmatprep.subr.bf16.mxu0 0
    %966 = vmatpush1.bf16.msra.mxu0 0
    %967 = vmatprep.subr.bf16.mxu0 0
    %968 = vmatpush1.bf16.msra.mxu0 %v951
    %969 = vmatprep.subr.bf16.mxu0 0
    %970 = vmatpush2.bf16.msra.mxu0 0
    %971 = vmatprep.subr.bf16.mxu0 0
    %972 = vmatpush2.bf16.msra.mxu0 0
    %973 = vmatprep.subr.bf16.mxu0 0
    %974 = vmatpush2.bf16.msra.mxu0 0
    %975 = vmatprep.subr.bf16.mxu0 0
    %976 = vmatpush2.bf16.msra.mxu0 0
    %977 = vmatprep.subr.bf16.mxu0 0
    %978 = vmatpush2.bf16.msra.mxu0 0
    %979 = vmatprep.subr.bf16.mxu0 0
    %980 = vmatpush2.bf16.msra.mxu0 0
    %981 = vmatprep.subr.bf16.mxu0 0
    %982 = vmatpush2.bf16.msra.mxu0 0
    %983 = vmatprep.subr.bf16.mxu0 0
    %984 = vmatpush2.bf16.msra.mxu0 0
    %985 = vmatprep.mubr.bf16.mxu0 0
    %986 = vmatmul.mubr.bf16.gmra.mxu0 %v948
    %v987 = vpop.f32.mrf.mxu0
    %v988 = vadd.f32 0.0, %v987
    %v989 = vpop.f32.mrf.mxu0
    %v990 = vpop.f32.mrf.mxu0
    %v991 = vpop.f32.mrf.mxu0
    %992 = vdwg.mxu0
    %993 = vrot.lane.b32.xlu0 %v664, 104
    %v994 = vpop.permute.xlu0 %993
    %995 = vrot.lane.b32.xlu0 %v664, 72
    %v996 = vpop.permute.xlu0 %995
    %v998 = vsel %vm209, %v994, 0
    %v1001 = vsel %vm209, %v996, 0
    %1003 = vmatprep.subr.bf16.mxu0 0
    %1004 = vmatpush1.bf16.xpose.msra.mxu0 0
    %1005 = vmatprep.subr.bf16.mxu0 0
    %1006 = vmatpush1.bf16.xpose.msra.mxu0 0
    %1007 = vmatprep.subr.bf16.mxu0 0
    %1008 = vmatpush1.bf16.xpose.msra.mxu0 0
    %1009 = vmatprep.subr.bf16.mxu0 0
    %1010 = vmatpush1.bf16.xpose.msra.mxu0 0
    %1011 = vmatprep.subr.bf16.mxu0 0
    %1012 = vmatpush1.bf16.xpose.msra.mxu0 0
    %1013 = vmatprep.subr.bf16.mxu0 0
    %1014 = vmatpush1.bf16.xpose.msra.mxu0 0
    %1015 = vmatprep.subr.bf16.mxu0 0
    %1016 = vmatpush1.bf16.xpose.msra.mxu0 0
    %1017 = vmatprep.subr.bf16.mxu0 0
    %1018 = vmatpush1.bf16.xpose.msra.mxu0 %v1001
    %1019 = vmatprep.subr.bf16.mxu0 0
    %1020 = vmatpush2.bf16.xpose.msra.mxu0 0
    %1021 = vmatprep.subr.bf16.mxu0 0
    %1022 = vmatpush2.bf16.xpose.msra.mxu0 0
    %1023 = vmatprep.subr.bf16.mxu0 0
    %1024 = vmatpush2.bf16.xpose.msra.mxu0 0
    %1025 = vmatprep.subr.bf16.mxu0 0
    %1026 = vmatpush2.bf16.xpose.msra.mxu0 0
    %1027 = vmatprep.subr.bf16.mxu0 0
    %1028 = vmatpush2.bf16.xpose.msra.mxu0 0
    %1029 = vmatprep.subr.bf16.mxu0 0
    %1030 = vmatpush2.bf16.xpose.msra.mxu0 0
    %1031 = vmatprep.subr.bf16.mxu0 0
    %1032 = vmatpush2.bf16.xpose.msra.mxu0 0
    %1033 = vmatprep.subr.bf16.mxu0 0
    %1034 = vmatpush2.bf16.xpose.msra.mxu0 0
    %1035 = vmatprep.mubr.bf16.mxu0 0
    %1036 = vmatmul.mubr.bf16.gmra.mxu0 %v998
    %v1037 = vpop.f32.mrf.mxu0
    %v1038 = vadd.f32 0.0, %v1037
    %v1039 = vpop.f32.mrf.mxu0
    %v1040 = vpop.f32.mrf.mxu0
    %v1041 = vpop.f32.mrf.mxu0
    %1042 = vdwg.mxu0
    %v1043 = vsel %vm209, %v1038, -inf
    %1044 = vmax.xlane.f32.xlu0 %v1043
    %v1045 = vpop.xlane.xlu0 %1044
    %v1046 = vsub.f32 %v1038, %v1045
    %v1047 = vmul.f32 %v1046, 1.442695
    %v1048 = vpow.pop %v1047
    %v1049 = vsel %vm209, %v1048, 0.0
    %1050 = vadd.xlane.f32.xlu0 %v1049
    %v1051 = vpop.xlane.xlu0 %1050
    %v1052 = vrcp.pop %v1051
    %v1053 = vmul.f32 %v1048, %v1052
    %v1054 = vpack.c.bf16 %v1053, %v1053
    %1055 = vrot.lane.b32.xlu0 %v664, 40
    %v1056 = vpop.permute.xlu0 %1055
    %v1058 = vsel %vm209, %v1054, 0
    %v1061 = vsel %vm273, %v1056, 0
    %1063 = vmatprep.subr.bf16.mxu0 0
    %1064 = vmatpush1.bf16.msra.mxu0 0
    %1065 = vmatprep.subr.bf16.mxu0 0
    %1066 = vmatpush1.bf16.msra.mxu0 0
    %1067 = vmatprep.subr.bf16.mxu0 0
    %1068 = vmatpush1.bf16.msra.mxu0 0
    %1069 = vmatprep.subr.bf16.mxu0 0
    %1070 = vmatpush1.bf16.msra.mxu0 0
    %1071 = vmatprep.subr.bf16.mxu0 0
    %1072 = vmatpush1.bf16.msra.mxu0 0
    %1073 = vmatprep.subr.bf16.mxu0 0
    %1074 = vmatpush1.bf16.msra.mxu0 0
    %1075 = vmatprep.subr.bf16.mxu0 0
    %1076 = vmatpush1.bf16.msra.mxu0 0
    %1077 = vmatprep.subr.bf16.mxu0 0
    %1078 = vmatpush1.bf16.msra.mxu0 %v1061
    %1079 = vmatprep.subr.bf16.mxu0 0
    %1080 = vmatpush2.bf16.msra.mxu0 0
    %1081 = vmatprep.subr.bf16.mxu0 0
    %1082 = vmatpush2.bf16.msra.mxu0 0
    %1083 = vmatprep.subr.bf16.mxu0 0
    %1084 = vmatpush2.bf16.msra.mxu0 0
    %1085 = vmatprep.subr.bf16.mxu0 0
    %1086 = vmatpush2.bf16.msra.mxu0 0
    %1087 = vmatprep.subr.bf16.mxu0 0
    %1088 = vmatpush2.bf16.msra.mxu0 0
    %1089 = vmatprep.subr.bf16.mxu0 0
    %1090 = vmatpush2.bf16.msra.mxu0 0
    %1091 = vmatprep.subr.bf16.mxu0 0
    %1092 = vmatpush2.bf16.msra.mxu0 0
    %1093 = vmatprep.subr.bf16.mxu0 0
    %1094 = vmatpush2.bf16.msra.mxu0 0
    %1095 = vmatprep.mubr.bf16.mxu0 0
    %1096 = vmatmul.mubr.bf16.gmra.mxu0 %v1058
    %v1097 = vpop.f32.mrf.mxu0
    %v1098 = vadd.f32 0.0, %v1097
    %v1099 = vpop.f32.mrf.mxu0
    %v1100 = vpop.f32.mrf.mxu0
    %v1101 = vpop.f32.mrf.mxu0
    %1102 = vdwg.mxu0
    %1104 = vrot.lane.b32.xlu0 %v878, 8
    %v1105 = vpop.permute.xlu0 %1104
    %1108 = vrot.lane.b32.xlu0 %v988, 16
    %v1109 = vpop.permute.xlu0 %1108
    %1112 = vrot.lane.b32.xlu0 %v1098, 24
    %v1113 = vpop.permute.xlu0 %1112
    %v1115 = vsel %vm209, %v768, %v1105
    %v1116 = vsel %vm660, %v1115, %v1109
    %v1117 = vsel %vm662, %v1116, %v1113
    %1119 = vrot.lane.b32.xlu0 %v203, 96
    %v1120 = vpop.permute.xlu0 %1119
    %v1122 = vsel %vm209, %v203, 0
    %v1125 = vsel %vm209, %v1120, 0
    %1127 = vmatprep.subr.bf16.mxu0 0
    %1128 = vmatpush1.bf16.xpose.msra.mxu0 0
    %1129 = vmatprep.subr.bf16.mxu0 0
    %1130 = vmatpush1.bf16.xpose.msra.mxu0 0
    %1131 = vmatprep.subr.bf16.mxu0 0
    %1132 = vmatpush1.bf16.xpose.msra.mxu0 0
    %1133 = vmatprep.subr.bf16.mxu0 0
    %1134 = vmatpush1.bf16.xpose.msra.mxu0 0
    %1135 = vmatprep.subr.bf16.mxu0 0
    %1136 = vmatpush1.bf16.xpose.msra.mxu0 0
    %1137 = vmatprep.subr.bf16.mxu0 0
    %1138 = vmatpush1.bf16.xpose.msra.mxu0 0
    %1139 = vmatprep.subr.bf16.mxu0 0
    %1140 = vmatpush1.bf16.xpose.msra.mxu0 0
    %1141 = vmatprep.subr.bf16.mxu0 0
    %1142 = vmatpush1.bf16.xpose.msra.mxu0 %v1125
    %1143 = vmatprep.subr.bf16.mxu0 0
    %1144 = vmatpush2.bf16.xpose.msra.mxu0 0
    %1145 = vmatprep.subr.bf16.mxu0 0
    %1146 = vmatpush2.bf16.xpose.msra.mxu0 0
    %1147 = vmatprep.subr.bf16.mxu0 0
    %1148 = vmatpush2.bf16.xpose.msra.mxu0 0
    %1149 = vmatprep.subr.bf16.mxu0 0
    %1150 = vmatpush2.bf16.xpose.msra.mxu0 0
    %1151 = vmatprep.subr.bf16.mxu0 0
    %1152 = vmatpush2.bf16.xpose.msra.mxu0 0
    %1153 = vmatprep.subr.bf16.mxu0 0
    %1154 = vmatpush2.bf16.xpose.msra.mxu0 0
    %1155 = vmatprep.subr.bf16.mxu0 0
    %1156 = vmatpush2.bf16.xpose.msra.mxu0 0
    %1157 = vmatprep.subr.bf16.mxu0 0
    %1158 = vmatpush2.bf16.xpose.msra.mxu0 0
    %1159 = vmatprep.mubr.bf16.mxu0 0
    %1160 = vmatmul.mubr.bf16.gmra.mxu0 %v1122
    %v1161 = vpop.f32.mrf.mxu0
    %v1162 = vadd.f32 0.0, %v1161
    %v1163 = vpop.f32.mrf.mxu0
    %v1164 = vpop.f32.mrf.mxu0
    %v1165 = vpop.f32.mrf.mxu0
    %1166 = vdwg.mxu0
    %v1167 = vsel %vm209, %v1162, -inf
    %1168 = vmax.xlane.f32.xlu0 %v1167
    %v1169 = vpop.xlane.xlu0 %1168
    %v1170 = vsub.f32 %v1162, %v1169
    %v1171 = vmul.f32 %v1170, 1.442695
    %v1172 = vpow.pop %v1171
    %v1173 = vsel %vm209, %v1172, 0.0
    %1174 = vadd.xlane.f32.xlu0 %v1173
    %v1175 = vpop.xlane.xlu0 %1174
    %v1176 = vrcp.pop %v1175
    %v1177 = vmul.f32 %v1172, %v1176
    %v1178 = vpack.c.bf16 %v1177, %v1177
    %1179 = vrot.lane.b32.xlu0 %v203, 64
    %v1180 = vpop.permute.xlu0 %1179
    %v1182 = vsel %vm209, %v1178, 0
    %v1185 = vsel %vm273, %v1180, 0
    %1187 = vmatprep.subr.bf16.mxu0 0
    %1188 = vmatpush1.bf16.msra.mxu0 0
    %1189 = vmatprep.subr.bf16.mxu0 0
    %1190 = vmatpush1.bf16.msra.mxu0 0
    %1191 = vmatprep.subr.bf16.mxu0 0
    %1192 = vmatpush1.bf16.msra.mxu0 0
    %1193 = vmatprep.subr.bf16.mxu0 0
    %1194 = vmatpush1.bf16.msra.mxu0 0
    %1195 = vmatprep.subr.bf16.mxu0 0
    %1196 = vmatpush1.bf16.msra.mxu0 0
    %1197 = vmatprep.subr.bf16.mxu0 0
    %1198 = vmatpush1.bf16.msra.mxu0 0
    %1199 = vmatprep.subr.bf16.mxu0 0
    %1200 = vmatpush1.bf16.msra.mxu0 0
    %1201 = vmatprep.subr.bf16.mxu0 0
    %1202 = vmatpush1.bf16.msra.mxu0 %v1185
    %1203 = vmatprep.subr.bf16.mxu0 0
    %1204 = vmatpush2.bf16.msra.mxu0 0
    %1205 = vmatprep.subr.bf16.mxu0 0
    %1206 = vmatpush2.bf16.msra.mxu0 0
    %1207 = vmatprep.subr.bf16.mxu0 0
    %1208 = vmatpush2.bf16.msra.mxu0 0
    %1209 = vmatprep.subr.bf16.mxu0 0
    %1210 = vmatpush2.bf16.msra.mxu0 0
    %1211 = vmatprep.subr.bf16.mxu0 0
    %1212 = vmatpush2.bf16.msra.mxu0 0
    %1213 = vmatprep.subr.bf16.mxu0 0
    %1214 = vmatpush2.bf16.msra.mxu0 0
    %1215 = vmatprep.subr.bf16.mxu0 0
    %1216 = vmatpush2.bf16.msra.mxu0 0
    %1217 = vmatprep.subr.bf16.mxu0 0
    %1218 = vmatpush2.bf16.msra.mxu0 0
    %1219 = vmatprep.mubr.bf16.mxu0 0
    %1220 = vmatmul.mubr.bf16.gmra.mxu0 %v1182
    %v1221 = vpop.f32.mrf.mxu0
    %v1222 = vadd.f32 0.0, %v1221
    %v1223 = vpop.f32.mrf.mxu0
    %v1224 = vpop.f32.mrf.mxu0
    %v1225 = vpop.f32.mrf.mxu0
    %1226 = vdwg.mxu0
    %1227 = vrot.lane.b32.xlu0 %v203, 120
    %v1228 = vpop.permute.xlu0 %1227
    %1229 = vrot.lane.b32.xlu0 %v203, 88
    %v1230 = vpop.permute.xlu0 %1229
    %v1232 = vsel %vm209, %v1228, 0
    %v1235 = vsel %vm209, %v1230, 0
    %1237 = vmatprep.subr.bf16.mxu0 0
    %1238 = vmatpush1.bf16.xpose.msra.mxu0 0
    %1239 = vmatprep.subr.bf16.mxu0 0
    %1240 = vmatpush1.bf16.xpose.msra.mxu0 0
    %1241 = vmatprep.subr.bf16.mxu0 0
    %1242 = vmatpush1.bf16.xpose.msra.mxu0 0
    %1243 = vmatprep.subr.bf16.mxu0 0
    %1244 = vmatpush1.bf16.xpose.msra.mxu0 0
    %1245 = vmatprep.subr.bf16.mxu0 0
    %1246 = vmatpush1.bf16.xpose.msra.mxu0 0
    %1247 = vmatprep.subr.bf16.mxu0 0
    %1248 = vmatpush1.bf16.xpose.msra.mxu0 0
    %1249 = vmatprep.subr.bf16.mxu0 0
    %1250 = vmatpush1.bf16.xpose.msra.mxu0 0
    %1251 = vmatprep.subr.bf16.mxu0 0
    %1252 = vmatpush1.bf16.xpose.msra.mxu0 %v1235
    %1253 = vmatprep.subr.bf16.mxu0 0
    %1254 = vmatpush2.bf16.xpose.msra.mxu0 0
    %1255 = vmatprep.subr.bf16.mxu0 0
    %1256 = vmatpush2.bf16.xpose.msra.mxu0 0
    %1257 = vmatprep.subr.bf16.mxu0 0
    %1258 = vmatpush2.bf16.xpose.msra.mxu0 0
    %1259 = vmatprep.subr.bf16.mxu0 0
    %1260 = vmatpush2.bf16.xpose.msra.mxu0 0
    %1261 = vmatprep.subr.bf16.mxu0 0
    %1262 = vmatpush2.bf16.xpose.msra.mxu0 0
    %1263 = vmatprep.subr.bf16.mxu0 0
    %1264 = vmatpush2.bf16.xpose.msra.mxu0 0
    %1265 = vmatprep.subr.bf16.mxu0 0
    %1266 = vmatpush2.bf16.xpose.msra.mxu0 0
    %1267 = vmatprep.subr.bf16.mxu0 0
    %1268 = vmatpush2.bf16.xpose.msra.mxu0 0
    %1269 = vmatprep.mubr.bf16.mxu0 0
    %1270 = vmatmul.mubr.bf16.gmra.mxu0 %v1232
    %v1271 = vpop.f32.mrf.mxu0
    %v1272 = vadd.f32 0.0, %v1271
    %v1273 = vpop.f32.mrf.mxu0
    %v1274 = vpop.f32.mrf.mxu0
    %v1275 = vpop.f32.mrf.mxu0
    %1276 = vdwg.mxu0
    %v1277 = vsel %vm209, %v1272, -inf
    %1278 = vmax.xlane.f32.xlu0 %v1277
    %v1279 = vpop.xlane.xlu0 %1278
    %v1280 = vsub.f32 %v1272, %v1279
    %v1281 = vmul.f32 %v1280, 1.442695
    %v1282 = vpow.pop %v1281
    %v1283 = vsel %vm209, %v1282, 0.0
    %1284 = vadd.xlane.f32.xlu0 %v1283
    %v1285 = vpop.xlane.xlu0 %1284
    %v1286 = vrcp.pop %v1285
    %v1287 = vmul.f32 %v1282, %v1286
    %v1288 = vpack.c.bf16 %v1287, %v1287
    %1289 = vrot.lane.b32.xlu0 %v203, 56
    %v1290 = vpop.permute.xlu0 %1289
    %v1292 = vsel %vm209, %v1288, 0
    %v1295 = vsel %vm273, %v1290, 0
    %1297 = vmatprep.subr.bf16.mxu0 0
    %1298 = vmatpush1.bf16.msra.mxu0 0
    %1299 = vmatprep.subr.bf16.mxu0 0
    %1300 = vmatpush1.bf16.msra.mxu0 0
    %1301 = vmatprep.subr.bf16.mxu0 0
    %1302 = vmatpush1.bf16.msra.mxu0 0
    %1303 = vmatprep.subr.bf16.mxu0 0
    %1304 = vmatpush1.bf16.msra.mxu0 0
    %1305 = vmatprep.subr.bf16.mxu0 0
    %1306 = vmatpush1.bf16.msra.mxu0 0
    %1307 = vmatprep.subr.bf16.mxu0 0
    %1308 = vmatpush1.bf16.msra.mxu0 0
    %1309 = vmatprep.subr.bf16.mxu0 0
    %1310 = vmatpush1.bf16.msra.mxu0 0
    %1311 = vmatprep.subr.bf16.mxu0 0
    %1312 = vmatpush1.bf16.msra.mxu0 %v1295
    %1313 = vmatprep.subr.bf16.mxu0 0
    %1314 = vmatpush2.bf16.msra.mxu0 0
    %1315 = vmatprep.subr.bf16.mxu0 0
    %1316 = vmatpush2.bf16.msra.mxu0 0
    %1317 = vmatprep.subr.bf16.mxu0 0
    %1318 = vmatpush2.bf16.msra.mxu0 0
    %1319 = vmatprep.subr.bf16.mxu0 0
    %1320 = vmatpush2.bf16.msra.mxu0 0
    %1321 = vmatprep.subr.bf16.mxu0 0
    %1322 = vmatpush2.bf16.msra.mxu0 0
    %1323 = vmatprep.subr.bf16.mxu0 0
    %1324 = vmatpush2.bf16.msra.mxu0 0
    %1325 = vmatprep.subr.bf16.mxu0 0
    %1326 = vmatpush2.bf16.msra.mxu0 0
    %1327 = vmatprep.subr.bf16.mxu0 0
    %1328 = vmatpush2.bf16.msra.mxu0 0
    %1329 = vmatprep.mubr.bf16.mxu0 0
    %1330 = vmatmul.mubr.bf16.gmra.mxu0 %v1292
    %v1331 = vpop.f32.mrf.mxu0
    %v1332 = vadd.f32 0.0, %v1331
    %v1333 = vpop.f32.mrf.mxu0
    %v1334 = vpop.f32.mrf.mxu0
    %v1335 = vpop.f32.mrf.mxu0
    %1336 = vdwg.mxu0
    %1337 = vrot.lane.b32.xlu0 %v203, 112
    %v1338 = vpop.permute.xlu0 %1337
    %1339 = vrot.lane.b32.xlu0 %v203, 80
    %v1340 = vpop.permute.xlu0 %1339
    %v1342 = vsel %vm209, %v1338, 0
    %v1345 = vsel %vm209, %v1340, 0
    %1347 = vmatprep.subr.bf16.mxu0 0
    %1348 = vmatpush1.bf16.xpose.msra.mxu0 0
    %1349 = vmatprep.subr.bf16.mxu0 0
    %1350 = vmatpush1.bf16.xpose.msra.mxu0 0
    %1351 = vmatprep.subr.bf16.mxu0 0
    %1352 = vmatpush1.bf16.xpose.msra.mxu0 0
    %1353 = vmatprep.subr.bf16.mxu0 0
    %1354 = vmatpush1.bf16.xpose.msra.mxu0 0
    %1355 = vmatprep.subr.bf16.mxu0 0
    %1356 = vmatpush1.bf16.xpose.msra.mxu0 0
    %1357 = vmatprep.subr.bf16.mxu0 0
    %1358 = vmatpush1.bf16.xpose.msra.mxu0 0
    %1359 = vmatprep.subr.bf16.mxu0 0
    %1360 = vmatpush1.bf16.xpose.msra.mxu0 0
    %1361 = vmatprep.subr.bf16.mxu0 0
    %1362 = vmatpush1.bf16.xpose.msra.mxu0 %v1345
    %1363 = vmatprep.subr.bf16.mxu0 0
    %1364 = vmatpush2.bf16.xpose.msra.mxu0 0
    %1365 = vmatprep.subr.bf16.mxu0 0
    %1366 = vmatpush2.bf16.xpose.msra.mxu0 0
    %1367 = vmatprep.subr.bf16.mxu0 0
    %1368 = vmatpush2.bf16.xpose.msra.mxu0 0
    %1369 = vmatprep.subr.bf16.mxu0 0
    %1370 = vmatpush2.bf16.xpose.msra.mxu0 0
    %1371 = vmatprep.subr.bf16.mxu0 0
    %1372 = vmatpush2.bf16.xpose.msra.mxu0 0
    %1373 = vmatprep.subr.bf16.mxu0 0
    %1374 = vmatpush2.bf16.xpose.msra.mxu0 0
    %1375 = vmatprep.subr.bf16.mxu0 0
    %1376 = vmatpush2.bf16.xpose.msra.mxu0 0
    %1377 = vmatprep.subr.bf16.mxu0 0
    %1378 = vmatpush2.bf16.xpose.msra.mxu0 0
    %1379 = vmatprep.mubr.bf16.mxu0 0
    %1380 = vmatmul.mubr.bf16.gmra.mxu0 %v1342
    %v1381 = vpop.f32.mrf.mxu0
    %v1382 = vadd.f32 0.0, %v1381
    %v1383 = vpop.f32.mrf.mxu0
    %v1384 = vpop.f32.mrf.mxu0
    %v1385 = vpop.f32.mrf.mxu0
    %1386 = vdwg.mxu0
    %v1387 = vsel %vm209, %v1382, -inf
    %1388 = vmax.xlane.f32.xlu0 %v1387
    %v1389 = vpop.xlane.xlu0 %1388
    %v1390 = vsub.f32 %v1382, %v1389
    %v1391 = vmul.f32 %v1390, 1.442695
    %v1392 = vpow.pop %v1391
    %v1393 = vsel %vm209, %v1392, 0.0
    %1394 = vadd.xlane.f32.xlu0 %v1393
    %v1395 = vpop.xlane.xlu0 %1394
    %v1396 = vrcp.pop %v1395
    %v1397 = vmul.f32 %v1392, %v1396
    %v1398 = vpack.c.bf16 %v1397, %v1397
    %1399 = vrot.lane.b32.xlu0 %v203, 48
    %v1400 = vpop.permute.xlu0 %1399
    %v1402 = vsel %vm209, %v1398, 0
    %v1405 = vsel %vm273, %v1400, 0
    %1407 = vmatprep.subr.bf16.mxu0 0
    %1408 = vmatpush1.bf16.msra.mxu0 0
    %1409 = vmatprep.subr.bf16.mxu0 0
    %1410 = vmatpush1.bf16.msra.mxu0 0
    %1411 = vmatprep.subr.bf16.mxu0 0
    %1412 = vmatpush1.bf16.msra.mxu0 0
    %1413 = vmatprep.subr.bf16.mxu0 0
    %1414 = vmatpush1.bf16.msra.mxu0 0
    %1415 = vmatprep.subr.bf16.mxu0 0
    %1416 = vmatpush1.bf16.msra.mxu0 0
    %1417 = vmatprep.subr.bf16.mxu0 0
    %1418 = vmatpush1.bf16.msra.mxu0 0
    %1419 = vmatprep.subr.bf16.mxu0 0
    %1420 = vmatpush1.bf16.msra.mxu0 0
    %1421 = vmatprep.subr.bf16.mxu0 0
    %1422 = vmatpush1.bf16.msra.mxu0 %v1405
    %1423 = vmatprep.subr.bf16.mxu0 0
    %1424 = vmatpush2.bf16.msra.mxu0 0
    %1425 = vmatprep.subr.bf16.mxu0 0
    %1426 = vmatpush2.bf16.msra.mxu0 0
    %1427 = vmatprep.subr.bf16.mxu0 0
    %1428 = vmatpush2.bf16.msra.mxu0 0
    %1429 = vmatprep.subr.bf16.mxu0 0
    %1430 = vmatpush2.bf16.msra.mxu0 0
    %1431 = vmatprep.subr.bf16.mxu0 0
    %1432 = vmatpush2.bf16.msra.mxu0 0
    %1433 = vmatprep.subr.bf16.mxu0 0
    %1434 = vmatpush2.bf16.msra.mxu0 0
    %1435 = vmatprep.subr.bf16.mxu0 0
    %1436 = vmatpush2.bf16.msra.mxu0 0
    %1437 = vmatprep.subr.bf16.mxu0 0
    %1438 = vmatpush2.bf16.msra.mxu0 0
    %1439 = vmatprep.mubr.bf16.mxu0 0
    %1440 = vmatmul.mubr.bf16.gmra.mxu0 %v1402
    %v1441 = vpop.f32.mrf.mxu0
    %v1442 = vadd.f32 0.0, %v1441
    %v1443 = vpop.f32.mrf.mxu0
    %v1444 = vpop.f32.mrf.mxu0
    %v1445 = vpop.f32.mrf.mxu0
    %1446 = vdwg.mxu0
    %1447 = vrot.lane.b32.xlu0 %v203, 104
    %v1448 = vpop.permute.xlu0 %1447
    %1449 = vrot.lane.b32.xlu0 %v203, 72
    %v1450 = vpop.permute.xlu0 %1449
    %v1452 = vsel %vm209, %v1448, 0
    %v1455 = vsel %vm209, %v1450, 0
    %1457 = vmatprep.subr.bf16.mxu0 0
    %1458 = vmatpush1.bf16.xpose.msra.mxu0 0
    %1459 = vmatprep.subr.bf16.mxu0 0
    %1460 = vmatpush1.bf16.xpose.msra.mxu0 0
    %1461 = vmatprep.subr.bf16.mxu0 0
    %1462 = vmatpush1.bf16.xpose.msra.mxu0 0
    %1463 = vmatprep.subr.bf16.mxu0 0
    %1464 = vmatpush1.bf16.xpose.msra.mxu0 0
    %1465 = vmatprep.subr.bf16.mxu0 0
    %1466 = vmatpush1.bf16.xpose.msra.mxu0 0
    %1467 = vmatprep.subr.bf16.mxu0 0
    %1468 = vmatpush1.bf16.xpose.msra.mxu0 0
    %1469 = vmatprep.subr.bf16.mxu0 0
    %1470 = vmatpush1.bf16.xpose.msra.mxu0 0
    %1471 = vmatprep.subr.bf16.mxu0 0
    %1472 = vmatpush1.bf16.xpose.msra.mxu0 %v1455
    %1473 = vmatprep.subr.bf16.mxu0 0
    %1474 = vmatpush2.bf16.xpose.msra.mxu0 0
    %1475 = vmatprep.subr.bf16.mxu0 0
    %1476 = vmatpush2.bf16.xpose.msra.mxu0 0
    %1477 = vmatprep.subr.bf16.mxu0 0
    %1478 = vmatpush2.bf16.xpose.msra.mxu0 0
    %1479 = vmatprep.subr.bf16.mxu0 0
    %1480 = vmatpush2.bf16.xpose.msra.mxu0 0
    %1481 = vmatprep.subr.bf16.mxu0 0
    %1482 = vmatpush2.bf16.xpose.msra.mxu0 0
    %1483 = vmatprep.subr.bf16.mxu0 0
    %1484 = vmatpush2.bf16.xpose.msra.mxu0 0
    %1485 = vmatprep.subr.bf16.mxu0 0
    %1486 = vmatpush2.bf16.xpose.msra.mxu0 0
    %1487 = vmatprep.subr.bf16.mxu0 0
    %1488 = vmatpush2.bf16.xpose.msra.mxu0 0
    %1489 = vmatprep.mubr.bf16.mxu0 0
    %1490 = vmatmul.mubr.bf16.gmra.mxu0 %v1452
    %v1491 = vpop.f32.mrf.mxu0
    %v1492 = vadd.f32 0.0, %v1491
    %v1493 = vpop.f32.mrf.mxu0
    %v1494 = vpop.f32.mrf.mxu0
    %v1495 = vpop.f32.mrf.mxu0
    %1496 = vdwg.mxu0
    %v1497 = vsel %vm209, %v1492, -inf
    %1498 = vmax.xlane.f32.xlu0 %v1497
    %v1499 = vpop.xlane.xlu0 %1498
    %v1500 = vsub.f32 %v1492, %v1499
    %v1501 = vmul.f32 %v1500, 1.442695
    %v1502 = vpow.pop %v1501
    %v1503 = vsel %vm209, %v1502, 0.0
    %1504 = vadd.xlane.f32.xlu0 %v1503
    %v1505 = vpop.xlane.xlu0 %1504
    %v1506 = vrcp.pop %v1505
    %v1507 = vmul.f32 %v1502, %v1506
    %v1508 = vpack.c.bf16 %v1507, %v1507
    %1509 = vrot.lane.b32.xlu0 %v203, 40
    %v1510 = vpop.permute.xlu0 %1509
    %v1512 = vsel %vm209, %v1508, 0
    %v1515 = vsel %vm273, %v1510, 0
    %1517 = vmatprep.subr.bf16.mxu0 0
    %1518 = vmatpush1.bf16.msra.mxu0 0
    %1519 = vmatprep.subr.bf16.mxu0 0
    %1520 = vmatpush1.bf16.msra.mxu0 0
    %1521 = vmatprep.subr.bf16.mxu0 0
    %1522 = vmatpush1.bf16.msra.mxu0 0
    %1523 = vmatprep.subr.bf16.mxu0 0
    %1524 = vmatpush1.bf16.msra.mxu0 0
    %1525 = vmatprep.subr.bf16.mxu0 0
    %1526 = vmatpush1.bf16.msra.mxu0 0
    %1527 = vmatprep.subr.bf16.mxu0 0
    %1528 = vmatpush1.bf16.msra.mxu0 0
    %1529 = vmatprep.subr.bf16.mxu0 0
    %1530 = vmatpush1.bf16.msra.mxu0 0
    %1531 = vmatprep.subr.bf16.mxu0 0
    %1532 = vmatpush1.bf16.msra.mxu0 %v1515
    %1533 = vmatprep.subr.bf16.mxu0 0
    %1534 = vmatpush2.bf16.msra.mxu0 0
    %1535 = vmatprep.subr.bf16.mxu0 0
    %1536 = vmatpush2.bf16.msra.mxu0 0
    %1537 = vmatprep.subr.bf16.mxu0 0
    %1538 = vmatpush2.bf16.msra.mxu0 0
    %1539 = vmatprep.subr.bf16.mxu0 0
    %1540 = vmatpush2.bf16.msra.mxu0 0
    %1541 = vmatprep.subr.bf16.mxu0 0
    %1542 = vmatpush2.bf16.msra.mxu0 0
    %1543 = vmatprep.subr.bf16.mxu0 0
    %1544 = vmatpush2.bf16.msra.mxu0 0
    %1545 = vmatprep.subr.bf16.mxu0 0
    %1546 = vmatpush2.bf16.msra.mxu0 0
    %1547 = vmatprep.subr.bf16.mxu0 0
    %1548 = vmatpush2.bf16.msra.mxu0 0
    %1549 = vmatprep.mubr.bf16.mxu0 0
    %1550 = vmatmul.mubr.bf16.gmra.mxu0 %v1512
    %v1551 = vpop.f32.mrf.mxu0
    %v1552 = vadd.f32 0.0, %v1551
    %v1553 = vpop.f32.mrf.mxu0
    %v1554 = vpop.f32.mrf.mxu0
    %v1555 = vpop.f32.mrf.mxu0
    %1556 = vdwg.mxu0
    %1558 = vrot.lane.b32.xlu0 %v1332, 8
    %v1559 = vpop.permute.xlu0 %1558
    %1562 = vrot.lane.b32.xlu0 %v1442, 16
    %v1563 = vpop.permute.xlu0 %1562
    %1566 = vrot.lane.b32.xlu0 %v1552, 24
    %v1567 = vpop.permute.xlu0 %1566
    %v1569 = vsel %vm209, %v1222, %v1559
    %v1570 = vsel %vm660, %v1569, %v1563
    %v1571 = vsel %vm662, %v1570, %v1567
    %v1572 = vrot.slane %v203, 4
    %1573 = vrot.lane.b32.xlu0 %v1572, 96
    %v1574 = vpop.permute.xlu0 %1573
    %v1576 = vsel %vm209, %v1572, 0
    %v1579 = vsel %vm209, %v1574, 0
    %1581 = vmatprep.subr.bf16.mxu0 0
    %1582 = vmatpush1.bf16.xpose.msra.mxu0 0
    %1583 = vmatprep.subr.bf16.mxu0 0
    %1584 = vmatpush1.bf16.xpose.msra.mxu0 0
    %1585 = vmatprep.subr.bf16.mxu0 0
    %1586 = vmatpush1.bf16.xpose.msra.mxu0 0
    %1587 = vmatprep.subr.bf16.mxu0 0
    %1588 = vmatpush1.bf16.xpose.msra.mxu0 0
    %1589 = vmatprep.subr.bf16.mxu0 0
    %1590 = vmatpush1.bf16.xpose.msra.mxu0 0
    %1591 = vmatprep.subr.bf16.mxu0 0
    %1592 = vmatpush1.bf16.xpose.msra.mxu0 0
    %1593 = vmatprep.subr.bf16.mxu0 0
    %1594 = vmatpush1.bf16.xpose.msra.mxu0 0
    %1595 = vmatprep.subr.bf16.mxu0 0
    %1596 = vmatpush1.bf16.xpose.msra.mxu0 %v1579
    %1597 = vmatprep.subr.bf16.mxu0 0
    %1598 = vmatpush2.bf16.xpose.msra.mxu0 0
    %1599 = vmatprep.subr.bf16.mxu0 0
    %1600 = vmatpush2.bf16.xpose.msra.mxu0 0
    %1601 = vmatprep.subr.bf16.mxu0 0
    %1602 = vmatpush2.bf16.xpose.msra.mxu0 0
    %1603 = vmatprep.subr.bf16.mxu0 0
    %1604 = vmatpush2.bf16.xpose.msra.mxu0 0
    %1605 = vmatprep.subr.bf16.mxu0 0
    %1606 = vmatpush2.bf16.xpose.msra.mxu0 0
    %1607 = vmatprep.subr.bf16.mxu0 0
    %1608 = vmatpush2.bf16.xpose.msra.mxu0 0
    %1609 = vmatprep.subr.bf16.mxu0 0
    %1610 = vmatpush2.bf16.xpose.msra.mxu0 0
    %1611 = vmatprep.subr.bf16.mxu0 0
    %1612 = vmatpush2.bf16.xpose.msra.mxu0 0
    %1613 = vmatprep.mubr.bf16.mxu0 0
    %1614 = vmatmul.mubr.bf16.gmra.mxu0 %v1576
    %v1615 = vpop.f32.mrf.mxu0
    %v1616 = vadd.f32 0.0, %v1615
    %v1617 = vpop.f32.mrf.mxu0
    %v1618 = vpop.f32.mrf.mxu0
    %v1619 = vpop.f32.mrf.mxu0
    %1620 = vdwg.mxu0
    %v1621 = vsel %vm209, %v1616, -inf
    %1622 = vmax.xlane.f32.xlu0 %v1621
    %v1623 = vpop.xlane.xlu0 %1622
    %v1624 = vsub.f32 %v1616, %v1623
    %v1625 = vmul.f32 %v1624, 1.442695
    %v1626 = vpow.pop %v1625
    %v1627 = vsel %vm209, %v1626, 0.0
    %1628 = vadd.xlane.f32.xlu0 %v1627
    %v1629 = vpop.xlane.xlu0 %1628
    %v1630 = vrcp.pop %v1629
    %v1631 = vmul.f32 %v1626, %v1630
    %v1632 = vpack.c.bf16 %v1631, %v1631
    %1633 = vrot.lane.b32.xlu0 %v1572, 64
    %v1634 = vpop.permute.xlu0 %1633
    %v1636 = vsel %vm209, %v1632, 0
    %v1639 = vsel %vm273, %v1634, 0
    %1641 = vmatprep.subr.bf16.mxu0 0
    %1642 = vmatpush1.bf16.msra.mxu0 0
    %1643 = vmatprep.subr.bf16.mxu0 0
    %1644 = vmatpush1.bf16.msra.mxu0 0
    %1645 = vmatprep.subr.bf16.mxu0 0
    %1646 = vmatpush1.bf16.msra.mxu0 0
    %1647 = vmatprep.subr.bf16.mxu0 0
    %1648 = vmatpush1.bf16.msra.mxu0 0
    %1649 = vmatprep.subr.bf16.mxu0 0
    %1650 = vmatpush1.bf16.msra.mxu0 0
    %1651 = vmatprep.subr.bf16.mxu0 0
    %1652 = vmatpush1.bf16.msra.mxu0 0
    %1653 = vmatprep.subr.bf16.mxu0 0
    %1654 = vmatpush1.bf16.msra.mxu0 0
    %1655 = vmatprep.subr.bf16.mxu0 0
    %1656 = vmatpush1.bf16.msra.mxu0 %v1639
    %1657 = vmatprep.subr.bf16.mxu0 0
    %1658 = vmatpush2.bf16.msra.mxu0 0
    %1659 = vmatprep.subr.bf16.mxu0 0
    %1660 = vmatpush2.bf16.msra.mxu0 0
    %1661 = vmatprep.subr.bf16.mxu0 0
    %1662 = vmatpush2.bf16.msra.mxu0 0
    %1663 = vmatprep.subr.bf16.mxu0 0
    %1664 = vmatpush2.bf16.msra.mxu0 0
    %1665 = vmatprep.subr.bf16.mxu0 0
    %1666 = vmatpush2.bf16.msra.mxu0 0
    %1667 = vmatprep.subr.bf16.mxu0 0
    %1668 = vmatpush2.bf16.msra.mxu0 0
    %1669 = vmatprep.subr.bf16.mxu0 0
    %1670 = vmatpush2.bf16.msra.mxu0 0
    %1671 = vmatprep.subr.bf16.mxu0 0
    %1672 = vmatpush2.bf16.msra.mxu0 0
    %1673 = vmatprep.mubr.bf16.mxu0 0
    %1674 = vmatmul.mubr.bf16.gmra.mxu0 %v1636
    %v1675 = vpop.f32.mrf.mxu0
    %v1676 = vadd.f32 0.0, %v1675
    %v1677 = vpop.f32.mrf.mxu0
    %v1678 = vpop.f32.mrf.mxu0
    %v1679 = vpop.f32.mrf.mxu0
    %1680 = vdwg.mxu0
    %1681 = vrot.lane.b32.xlu0 %v1572, 120
    %v1682 = vpop.permute.xlu0 %1681
    %1683 = vrot.lane.b32.xlu0 %v1572, 88
    %v1684 = vpop.permute.xlu0 %1683
    %v1686 = vsel %vm209, %v1682, 0
    %v1689 = vsel %vm209, %v1684, 0
    %1691 = vmatprep.subr.bf16.mxu0 0
    %1692 = vmatpush1.bf16.xpose.msra.mxu0 0
    %1693 = vmatprep.subr.bf16.mxu0 0
    %1694 = vmatpush1.bf16.xpose.msra.mxu0 0
    %1695 = vmatprep.subr.bf16.mxu0 0
    %1696 = vmatpush1.bf16.xpose.msra.mxu0 0
    %1697 = vmatprep.subr.bf16.mxu0 0
    %1698 = vmatpush1.bf16.xpose.msra.mxu0 0
    %1699 = vmatprep.subr.bf16.mxu0 0
    %1700 = vmatpush1.bf16.xpose.msra.mxu0 0
    %1701 = vmatprep.subr.bf16.mxu0 0
    %1702 = vmatpush1.bf16.xpose.msra.mxu0 0
    %1703 = vmatprep.subr.bf16.mxu0 0
    %1704 = vmatpush1.bf16.xpose.msra.mxu0 0
    %1705 = vmatprep.subr.bf16.mxu0 0
    %1706 = vmatpush1.bf16.xpose.msra.mxu0 %v1689
    %1707 = vmatprep.subr.bf16.mxu0 0
    %1708 = vmatpush2.bf16.xpose.msra.mxu0 0
    %1709 = vmatprep.subr.bf16.mxu0 0
    %1710 = vmatpush2.bf16.xpose.msra.mxu0 0
    %1711 = vmatprep.subr.bf16.mxu0 0
    %1712 = vmatpush2.bf16.xpose.msra.mxu0 0
    %1713 = vmatprep.subr.bf16.mxu0 0
    %1714 = vmatpush2.bf16.xpose.msra.mxu0 0
    %1715 = vmatprep.subr.bf16.mxu0 0
    %1716 = vmatpush2.bf16.xpose.msra.mxu0 0
    %1717 = vmatprep.subr.bf16.mxu0 0
    %1718 = vmatpush2.bf16.xpose.msra.mxu0 0
    %1719 = vmatprep.subr.bf16.mxu0 0
    %1720 = vmatpush2.bf16.xpose.msra.mxu0 0
    %1721 = vmatprep.subr.bf16.mxu0 0
    %1722 = vmatpush2.bf16.xpose.msra.mxu0 0
    %1723 = vmatprep.mubr.bf16.mxu0 0
    %1724 = vmatmul.mubr.bf16.gmra.mxu0 %v1686
    %v1725 = vpop.f32.mrf.mxu0
    %v1726 = vadd.f32 0.0, %v1725
    %v1727 = vpop.f32.mrf.mxu0
    %v1728 = vpop.f32.mrf.mxu0
    %v1729 = vpop.f32.mrf.mxu0
    %1730 = vdwg.mxu0
    %v1731 = vsel %vm209, %v1726, -inf
    %1732 = vmax.xlane.f32.xlu0 %v1731
    %v1733 = vpop.xlane.xlu0 %1732
    %v1734 = vsub.f32 %v1726, %v1733
    %v1735 = vmul.f32 %v1734, 1.442695
    %v1736 = vpow.pop %v1735
    %v1737 = vsel %vm209, %v1736, 0.0
    %1738 = vadd.xlane.f32.xlu0 %v1737
    %v1739 = vpop.xlane.xlu0 %1738
    %v1740 = vrcp.pop %v1739
    %v1741 = vmul.f32 %v1736, %v1740
    %v1742 = vpack.c.bf16 %v1741, %v1741
    %1743 = vrot.lane.b32.xlu0 %v1572, 56
    %v1744 = vpop.permute.xlu0 %1743
    %v1746 = vsel %vm209, %v1742, 0
    %v1749 = vsel %vm273, %v1744, 0
    %1751 = vmatprep.subr.bf16.mxu0 0
    %1752 = vmatpush1.bf16.msra.mxu0 0
    %1753 = vmatprep.subr.bf16.mxu0 0
    %1754 = vmatpush1.bf16.msra.mxu0 0
    %1755 = vmatprep.subr.bf16.mxu0 0
    %1756 = vmatpush1.bf16.msra.mxu0 0
    %1757 = vmatprep.subr.bf16.mxu0 0
    %1758 = vmatpush1.bf16.msra.mxu0 0
    %1759 = vmatprep.subr.bf16.mxu0 0
    %1760 = vmatpush1.bf16.msra.mxu0 0
    %1761 = vmatprep.subr.bf16.mxu0 0
    %1762 = vmatpush1.bf16.msra.mxu0 0
    %1763 = vmatprep.subr.bf16.mxu0 0
    %1764 = vmatpush1.bf16.msra.mxu0 0
    %1765 = vmatprep.subr.bf16.mxu0 0
    %1766 = vmatpush1.bf16.msra.mxu0 %v1749
    %1767 = vmatprep.subr.bf16.mxu0 0
    %1768 = vmatpush2.bf16.msra.mxu0 0
    %1769 = vmatprep.subr.bf16.mxu0 0
    %1770 = vmatpush2.bf16.msra.mxu0 0
    %1771 = vmatprep.subr.bf16.mxu0 0
    %1772 = vmatpush2.bf16.msra.mxu0 0
    %1773 = vmatprep.subr.bf16.mxu0 0
    %1774 = vmatpush2.bf16.msra.mxu0 0
    %1775 = vmatprep.subr.bf16.mxu0 0
    %1776 = vmatpush2.bf16.msra.mxu0 0
    %1777 = vmatprep.subr.bf16.mxu0 0
    %1778 = vmatpush2.bf16.msra.mxu0 0
    %1779 = vmatprep.subr.bf16.mxu0 0
    %1780 = vmatpush2.bf16.msra.mxu0 0
    %1781 = vmatprep.subr.bf16.mxu0 0
    %1782 = vmatpush2.bf16.msra.mxu0 0
    %1783 = vmatprep.mubr.bf16.mxu0 0
    %1784 = vmatmul.mubr.bf16.gmra.mxu0 %v1746
    %v1785 = vpop.f32.mrf.mxu0
    %v1786 = vadd.f32 0.0, %v1785
    %v1787 = vpop.f32.mrf.mxu0
    %v1788 = vpop.f32.mrf.mxu0
    %v1789 = vpop.f32.mrf.mxu0
    %1790 = vdwg.mxu0
    %1791 = vrot.lane.b32.xlu0 %v1572, 112
    %v1792 = vpop.permute.xlu0 %1791
    %1793 = vrot.lane.b32.xlu0 %v1572, 80
    %v1794 = vpop.permute.xlu0 %1793
    %v1796 = vsel %vm209, %v1792, 0
    %v1799 = vsel %vm209, %v1794, 0
    %1801 = vmatprep.subr.bf16.mxu0 0
    %1802 = vmatpush1.bf16.xpose.msra.mxu0 0
    %1803 = vmatprep.subr.bf16.mxu0 0
    %1804 = vmatpush1.bf16.xpose.msra.mxu0 0
    %1805 = vmatprep.subr.bf16.mxu0 0
    %1806 = vmatpush1.bf16.xpose.msra.mxu0 0
    %1807 = vmatprep.subr.bf16.mxu0 0
    %1808 = vmatpush1.bf16.xpose.msra.mxu0 0
    %1809 = vmatprep.subr.bf16.mxu0 0
    %1810 = vmatpush1.bf16.xpose.msra.mxu0 0
    %1811 = vmatprep.subr.bf16.mxu0 0
    %1812 = vmatpush1.bf16.xpose.msra.mxu0 0
    %1813 = vmatprep.subr.bf16.mxu0 0
    %1814 = vmatpush1.bf16.xpose.msra.mxu0 0
    %1815 = vmatprep.subr.bf16.mxu0 0
    %1816 = vmatpush1.bf16.xpose.msra.mxu0 %v1799
    %1817 = vmatprep.subr.bf16.mxu0 0
    %1818 = vmatpush2.bf16.xpose.msra.mxu0 0
    %1819 = vmatprep.subr.bf16.mxu0 0
    %1820 = vmatpush2.bf16.xpose.msra.mxu0 0
    %1821 = vmatprep.subr.bf16.mxu0 0
    %1822 = vmatpush2.bf16.xpose.msra.mxu0 0
    %1823 = vmatprep.subr.bf16.mxu0 0
    %1824 = vmatpush2.bf16.xpose.msra.mxu0 0
    %1825 = vmatprep.subr.bf16.mxu0 0
    %1826 = vmatpush2.bf16.xpose.msra.mxu0 0
    %1827 = vmatprep.subr.bf16.mxu0 0
    %1828 = vmatpush2.bf16.xpose.msra.mxu0 0
    %1829 = vmatprep.subr.bf16.mxu0 0
    %1830 = vmatpush2.bf16.xpose.msra.mxu0 0
    %1831 = vmatprep.subr.bf16.mxu0 0
    %1832 = vmatpush2.bf16.xpose.msra.mxu0 0
    %1833 = vmatprep.mubr.bf16.mxu0 0
    %1834 = vmatmul.mubr.bf16.gmra.mxu0 %v1796
    %v1835 = vpop.f32.mrf.mxu0
    %v1836 = vadd.f32 0.0, %v1835
    %v1837 = vpop.f32.mrf.mxu0
    %v1838 = vpop.f32.mrf.mxu0
    %v1839 = vpop.f32.mrf.mxu0
    %1840 = vdwg.mxu0
    %v1841 = vsel %vm209, %v1836, -inf
    %1842 = vmax.xlane.f32.xlu0 %v1841
    %v1843 = vpop.xlane.xlu0 %1842
    %v1844 = vsub.f32 %v1836, %v1843
    %v1845 = vmul.f32 %v1844, 1.442695
    %v1846 = vpow.pop %v1845
    %v1847 = vsel %vm209, %v1846, 0.0
    %1848 = vadd.xlane.f32.xlu0 %v1847
    %v1849 = vpop.xlane.xlu0 %1848
    %v1850 = vrcp.pop %v1849
    %v1851 = vmul.f32 %v1846, %v1850
    %v1852 = vpack.c.bf16 %v1851, %v1851
    %1853 = vrot.lane.b32.xlu0 %v1572, 48
    %v1854 = vpop.permute.xlu0 %1853
    %v1856 = vsel %vm209, %v1852, 0
    %v1859 = vsel %vm273, %v1854, 0
    %1861 = vmatprep.subr.bf16.mxu0 0
    %1862 = vmatpush1.bf16.msra.mxu0 0
    %1863 = vmatprep.subr.bf16.mxu0 0
    %1864 = vmatpush1.bf16.msra.mxu0 0
    %1865 = vmatprep.subr.bf16.mxu0 0
    %1866 = vmatpush1.bf16.msra.mxu0 0
    %1867 = vmatprep.subr.bf16.mxu0 0
    %1868 = vmatpush1.bf16.msra.mxu0 0
    %1869 = vmatprep.subr.bf16.mxu0 0
    %1870 = vmatpush1.bf16.msra.mxu0 0
    %1871 = vmatprep.subr.bf16.mxu0 0
    %1872 = vmatpush1.bf16.msra.mxu0 0
    %1873 = vmatprep.subr.bf16.mxu0 0
    %1874 = vmatpush1.bf16.msra.mxu0 0
    %1875 = vmatprep.subr.bf16.mxu0 0
    %1876 = vmatpush1.bf16.msra.mxu0 %v1859
    %1877 = vmatprep.subr.bf16.mxu0 0
    %1878 = vmatpush2.bf16.msra.mxu0 0
    %1879 = vmatprep.subr.bf16.mxu0 0
    %1880 = vmatpush2.bf16.msra.mxu0 0
    %1881 = vmatprep.subr.bf16.mxu0 0
    %1882 = vmatpush2.bf16.msra.mxu0 0
    %1883 = vmatprep.subr.bf16.mxu0 0
    %1884 = vmatpush2.bf16.msra.mxu0 0
    %1885 = vmatprep.subr.bf16.mxu0 0
    %1886 = vmatpush2.bf16.msra.mxu0 0
    %1887 = vmatprep.subr.bf16.mxu0 0
    %1888 = vmatpush2.bf16.msra.mxu0 0
    %1889 = vmatprep.subr.bf16.mxu0 0
    %1890 = vmatpush2.bf16.msra.mxu0 0
    %1891 = vmatprep.subr.bf16.mxu0 0
    %1892 = vmatpush2.bf16.msra.mxu0 0
    %1893 = vmatprep.mubr.bf16.mxu0 0
    %1894 = vmatmul.mubr.bf16.gmra.mxu0 %v1856
    %v1895 = vpop.f32.mrf.mxu0
    %v1896 = vadd.f32 0.0, %v1895
    %v1897 = vpop.f32.mrf.mxu0
    %v1898 = vpop.f32.mrf.mxu0
    %v1899 = vpop.f32.mrf.mxu0
    %1900 = vdwg.mxu0
    %1901 = vrot.lane.b32.xlu0 %v1572, 104
    %v1902 = vpop.permute.xlu0 %1901
    %1903 = vrot.lane.b32.xlu0 %v1572, 72
    %v1904 = vpop.permute.xlu0 %1903
    %v1906 = vsel %vm209, %v1902, 0
    %v1909 = vsel %vm209, %v1904, 0
    %1911 = vmatprep.subr.bf16.mxu0 0
    %1912 = vmatpush1.bf16.xpose.msra.mxu0 0
    %1913 = vmatprep.subr.bf16.mxu0 0
    %1914 = vmatpush1.bf16.xpose.msra.mxu0 0
    %1915 = vmatprep.subr.bf16.mxu0 0
    %1916 = vmatpush1.bf16.xpose.msra.mxu0 0
    %1917 = vmatprep.subr.bf16.mxu0 0
    %1918 = vmatpush1.bf16.xpose.msra.mxu0 0
    %1919 = vmatprep.subr.bf16.mxu0 0
    %1920 = vmatpush1.bf16.xpose.msra.mxu0 0
    %1921 = vmatprep.subr.bf16.mxu0 0
    %1922 = vmatpush1.bf16.xpose.msra.mxu0 0
    %1923 = vmatprep.subr.bf16.mxu0 0
    %1924 = vmatpush1.bf16.xpose.msra.mxu0 0
    %1925 = vmatprep.subr.bf16.mxu0 0
    %1926 = vmatpush1.bf16.xpose.msra.mxu0 %v1909
    %1927 = vmatprep.subr.bf16.mxu0 0
    %1928 = vmatpush2.bf16.xpose.msra.mxu0 0
    %1929 = vmatprep.subr.bf16.mxu0 0
    %1930 = vmatpush2.bf16.xpose.msra.mxu0 0
    %1931 = vmatprep.subr.bf16.mxu0 0
    %1932 = vmatpush2.bf16.xpose.msra.mxu0 0
    %1933 = vmatprep.subr.bf16.mxu0 0
    %1934 = vmatpush2.bf16.xpose.msra.mxu0 0
    %1935 = vmatprep.subr.bf16.mxu0 0
    %1936 = vmatpush2.bf16.xpose.msra.mxu0 0
    %1937 = vmatprep.subr.bf16.mxu0 0
    %1938 = vmatpush2.bf16.xpose.msra.mxu0 0
    %1939 = vmatprep.subr.bf16.mxu0 0
    %1940 = vmatpush2.bf16.xpose.msra.mxu0 0
    %1941 = vmatprep.subr.bf16.mxu0 0
    %1942 = vmatpush2.bf16.xpose.msra.mxu0 0
    %1943 = vmatprep.mubr.bf16.mxu0 0
    %1944 = vmatmul.mubr.bf16.gmra.mxu0 %v1906
    %v1945 = vpop.f32.mrf.mxu0
    %v1946 = vadd.f32 0.0, %v1945
    %v1947 = vpop.f32.mrf.mxu0
    %v1948 = vpop.f32.mrf.mxu0
    %v1949 = vpop.f32.mrf.mxu0
    %1950 = vdwg.mxu0
    %v1951 = vsel %vm209, %v1946, -inf
    %1952 = vmax.xlane.f32.xlu0 %v1951
    %v1953 = vpop.xlane.xlu0 %1952
    %v1954 = vsub.f32 %v1946, %v1953
    %v1955 = vmul.f32 %v1954, 1.442695
    %v1956 = vpow.pop %v1955
    %v1957 = vsel %vm209, %v1956, 0.0
    %1958 = vadd.xlane.f32.xlu0 %v1957
    %v1959 = vpop.xlane.xlu0 %1958
    %v1960 = vrcp.pop %v1959
    %v1961 = vmul.f32 %v1956, %v1960
    %v1962 = vpack.c.bf16 %v1961, %v1961
    %1963 = vrot.lane.b32.xlu0 %v1572, 40
    %v1964 = vpop.permute.xlu0 %1963
    %v1966 = vsel %vm209, %v1962, 0
    %v1969 = vsel %vm273, %v1964, 0
    %1971 = vmatprep.subr.bf16.mxu0 0
    %1972 = vmatpush1.bf16.msra.mxu0 0
    %1973 = vmatprep.subr.bf16.mxu0 0
    %1974 = vmatpush1.bf16.msra.mxu0 0
    %1975 = vmatprep.subr.bf16.mxu0 0
    %1976 = vmatpush1.bf16.msra.mxu0 0
    %1977 = vmatprep.subr.bf16.mxu0 0
    %1978 = vmatpush1.bf16.msra.mxu0 0
    %1979 = vmatprep.subr.bf16.mxu0 0
    %1980 = vmatpush1.bf16.msra.mxu0 0
    %1981 = vmatprep.subr.bf16.mxu0 0
    %1982 = vmatpush1.bf16.msra.mxu0 0
    %1983 = vmatprep.subr.bf16.mxu0 0
    %1984 = vmatpush1.bf16.msra.mxu0 0
    %1985 = vmatprep.subr.bf16.mxu0 0
    %1986 = vmatpush1.bf16.msra.mxu0 %v1969
    %1987 = vmatprep.subr.bf16.mxu0 0
    %1988 = vmatpush2.bf16.msra.mxu0 0
    %1989 = vmatprep.subr.bf16.mxu0 0
    %1990 = vmatpush2.bf16.msra.mxu0 0
    %1991 = vmatprep.subr.bf16.mxu0 0
    %1992 = vmatpush2.bf16.msra.mxu0 0
    %1993 = vmatprep.subr.bf16.mxu0 0
    %1994 = vmatpush2.bf16.msra.mxu0 0
    %1995 = vmatprep.subr.bf16.mxu0 0
    %1996 = vmatpush2.bf16.msra.mxu0 0
    %1997 = vmatprep.subr.bf16.mxu0 0
    %1998 = vmatpush2.bf16.msra.mxu0 0
    %1999 = vmatprep.subr.bf16.mxu0 0
    %2000 = vmatpush2.bf16.msra.mxu0 0
    %2001 = vmatprep.subr.bf16.mxu0 0
    %2002 = vmatpush2.bf16.msra.mxu0 0
    %2003 = vmatprep.mubr.bf16.mxu0 0
    %2004 = vmatmul.mubr.bf16.gmra.mxu0 %v1966
    %v2005 = vpop.f32.mrf.mxu0
    %v2006 = vadd.f32 0.0, %v2005
    %v2007 = vpop.f32.mrf.mxu0
    %v2008 = vpop.f32.mrf.mxu0
    %v2009 = vpop.f32.mrf.mxu0
    %2010 = vdwg.mxu0
    %2012 = vrot.lane.b32.xlu0 %v1786, 8
    %v2013 = vpop.permute.xlu0 %2012
    %2016 = vrot.lane.b32.xlu0 %v1896, 16
    %v2017 = vpop.permute.xlu0 %2016
    %2020 = vrot.lane.b32.xlu0 %v2006, 24
    %v2021 = vpop.permute.xlu0 %2020
    %v2023 = vsel %vm209, %v1676, %v2013
    %v2024 = vsel %vm660, %v2023, %v2017
    %v2025 = vsel %vm662, %v2024, %v2021
    %2027 = vrot.lane.b32.xlu0 %v204, 96
    %v2028 = vpop.permute.xlu0 %2027
    %v2030 = vsel %vm209, %v204, 0
    %v2033 = vsel %vm209, %v2028, 0
    %2035 = vmatprep.subr.bf16.mxu0 0
    %2036 = vmatpush1.bf16.xpose.msra.mxu0 0
    %2037 = vmatprep.subr.bf16.mxu0 0
    %2038 = vmatpush1.bf16.xpose.msra.mxu0 0
    %2039 = vmatprep.subr.bf16.mxu0 0
    %2040 = vmatpush1.bf16.xpose.msra.mxu0 0
    %2041 = vmatprep.subr.bf16.mxu0 0
    %2042 = vmatpush1.bf16.xpose.msra.mxu0 0
    %2043 = vmatprep.subr.bf16.mxu0 0
    %2044 = vmatpush1.bf16.xpose.msra.mxu0 0
    %2045 = vmatprep.subr.bf16.mxu0 0
    %2046 = vmatpush1.bf16.xpose.msra.mxu0 0
    %2047 = vmatprep.subr.bf16.mxu0 0
    %2048 = vmatpush1.bf16.xpose.msra.mxu0 0
    %2049 = vmatprep.subr.bf16.mxu0 0
    %2050 = vmatpush1.bf16.xpose.msra.mxu0 %v2033
    %2051 = vmatprep.subr.bf16.mxu0 0
    %2052 = vmatpush2.bf16.xpose.msra.mxu0 0
    %2053 = vmatprep.subr.bf16.mxu0 0
    %2054 = vmatpush2.bf16.xpose.msra.mxu0 0
    %2055 = vmatprep.subr.bf16.mxu0 0
    %2056 = vmatpush2.bf16.xpose.msra.mxu0 0
    %2057 = vmatprep.subr.bf16.mxu0 0
    %2058 = vmatpush2.bf16.xpose.msra.mxu0 0
    %2059 = vmatprep.subr.bf16.mxu0 0
    %2060 = vmatpush2.bf16.xpose.msra.mxu0 0
    %2061 = vmatprep.subr.bf16.mxu0 0
    %2062 = vmatpush2.bf16.xpose.msra.mxu0 0
    %2063 = vmatprep.subr.bf16.mxu0 0
    %2064 = vmatpush2.bf16.xpose.msra.mxu0 0
    %2065 = vmatprep.subr.bf16.mxu0 0
    %2066 = vmatpush2.bf16.xpose.msra.mxu0 0
    %2067 = vmatprep.mubr.bf16.mxu0 0
    %2068 = vmatmul.mubr.bf16.gmra.mxu0 %v2030
    %v2069 = vpop.f32.mrf.mxu0
    %v2070 = vadd.f32 0.0, %v2069
    %v2071 = vpop.f32.mrf.mxu0
    %v2072 = vpop.f32.mrf.mxu0
    %v2073 = vpop.f32.mrf.mxu0
    %2074 = vdwg.mxu0
    %v2075 = vsel %vm209, %v2070, -inf
    %2076 = vmax.xlane.f32.xlu0 %v2075
    %v2077 = vpop.xlane.xlu0 %2076
    %v2078 = vsub.f32 %v2070, %v2077
    %v2079 = vmul.f32 %v2078, 1.442695
    %v2080 = vpow.pop %v2079
    %v2081 = vsel %vm209, %v2080, 0.0
    %2082 = vadd.xlane.f32.xlu0 %v2081
    %v2083 = vpop.xlane.xlu0 %2082
    %v2084 = vrcp.pop %v2083
    %v2085 = vmul.f32 %v2080, %v2084
    %v2086 = vpack.c.bf16 %v2085, %v2085
    %2087 = vrot.lane.b32.xlu0 %v204, 64
    %v2088 = vpop.permute.xlu0 %2087
    %v2090 = vsel %vm209, %v2086, 0
    %v2093 = vsel %vm273, %v2088, 0
    %2095 = vmatprep.subr.bf16.mxu0 0
    %2096 = vmatpush1.bf16.msra.mxu0 0
    %2097 = vmatprep.subr.bf16.mxu0 0
    %2098 = vmatpush1.bf16.msra.mxu0 0
    %2099 = vmatprep.subr.bf16.mxu0 0
    %2100 = vmatpush1.bf16.msra.mxu0 0
    %2101 = vmatprep.subr.bf16.mxu0 0
    %2102 = vmatpush1.bf16.msra.mxu0 0
    %2103 = vmatprep.subr.bf16.mxu0 0
    %2104 = vmatpush1.bf16.msra.mxu0 0
    %2105 = vmatprep.subr.bf16.mxu0 0
    %2106 = vmatpush1.bf16.msra.mxu0 0
    %2107 = vmatprep.subr.bf16.mxu0 0
    %2108 = vmatpush1.bf16.msra.mxu0 0
    %2109 = vmatprep.subr.bf16.mxu0 0
    %2110 = vmatpush1.bf16.msra.mxu0 %v2093
    %2111 = vmatprep.subr.bf16.mxu0 0
    %2112 = vmatpush2.bf16.msra.mxu0 0
    %2113 = vmatprep.subr.bf16.mxu0 0
    %2114 = vmatpush2.bf16.msra.mxu0 0
    %2115 = vmatprep.subr.bf16.mxu0 0
    %2116 = vmatpush2.bf16.msra.mxu0 0
    %2117 = vmatprep.subr.bf16.mxu0 0
    %2118 = vmatpush2.bf16.msra.mxu0 0
    %2119 = vmatprep.subr.bf16.mxu0 0
    %2120 = vmatpush2.bf16.msra.mxu0 0
    %2121 = vmatprep.subr.bf16.mxu0 0
    %2122 = vmatpush2.bf16.msra.mxu0 0
    %2123 = vmatprep.subr.bf16.mxu0 0
    %2124 = vmatpush2.bf16.msra.mxu0 0
    %2125 = vmatprep.subr.bf16.mxu0 0
    %2126 = vmatpush2.bf16.msra.mxu0 0
    %2127 = vmatprep.mubr.bf16.mxu0 0
    %2128 = vmatmul.mubr.bf16.gmra.mxu0 %v2090
    %v2129 = vpop.f32.mrf.mxu0
    %v2130 = vadd.f32 0.0, %v2129
    %v2131 = vpop.f32.mrf.mxu0
    %v2132 = vpop.f32.mrf.mxu0
    %v2133 = vpop.f32.mrf.mxu0
    %2134 = vdwg.mxu0
    %2135 = vrot.lane.b32.xlu0 %v204, 120
    %v2136 = vpop.permute.xlu0 %2135
    %2137 = vrot.lane.b32.xlu0 %v204, 88
    %v2138 = vpop.permute.xlu0 %2137
    %v2140 = vsel %vm209, %v2136, 0
    %v2143 = vsel %vm209, %v2138, 0
    %2145 = vmatprep.subr.bf16.mxu0 0
    %2146 = vmatpush1.bf16.xpose.msra.mxu0 0
    %2147 = vmatprep.subr.bf16.mxu0 0
    %2148 = vmatpush1.bf16.xpose.msra.mxu0 0
    %2149 = vmatprep.subr.bf16.mxu0 0
    %2150 = vmatpush1.bf16.xpose.msra.mxu0 0
    %2151 = vmatprep.subr.bf16.mxu0 0
    %2152 = vmatpush1.bf16.xpose.msra.mxu0 0
    %2153 = vmatprep.subr.bf16.mxu0 0
    %2154 = vmatpush1.bf16.xpose.msra.mxu0 0
    %2155 = vmatprep.subr.bf16.mxu0 0
    %2156 = vmatpush1.bf16.xpose.msra.mxu0 0
    %2157 = vmatprep.subr.bf16.mxu0 0
    %2158 = vmatpush1.bf16.xpose.msra.mxu0 0
    %2159 = vmatprep.subr.bf16.mxu0 0
    %2160 = vmatpush1.bf16.xpose.msra.mxu0 %v2143
    %2161 = vmatprep.subr.bf16.mxu0 0
    %2162 = vmatpush2.bf16.xpose.msra.mxu0 0
    %2163 = vmatprep.subr.bf16.mxu0 0
    %2164 = vmatpush2.bf16.xpose.msra.mxu0 0
    %2165 = vmatprep.subr.bf16.mxu0 0
    %2166 = vmatpush2.bf16.xpose.msra.mxu0 0
    %2167 = vmatprep.subr.bf16.mxu0 0
    %2168 = vmatpush2.bf16.xpose.msra.mxu0 0
    %2169 = vmatprep.subr.bf16.mxu0 0
    %2170 = vmatpush2.bf16.xpose.msra.mxu0 0
    %2171 = vmatprep.subr.bf16.mxu0 0
    %2172 = vmatpush2.bf16.xpose.msra.mxu0 0
    %2173 = vmatprep.subr.bf16.mxu0 0
    %2174 = vmatpush2.bf16.xpose.msra.mxu0 0
    %2175 = vmatprep.subr.bf16.mxu0 0
    %2176 = vmatpush2.bf16.xpose.msra.mxu0 0
    %2177 = vmatprep.mubr.bf16.mxu0 0
    %2178 = vmatmul.mubr.bf16.gmra.mxu0 %v2140
    %v2179 = vpop.f32.mrf.mxu0
    %v2180 = vadd.f32 0.0, %v2179
    %v2181 = vpop.f32.mrf.mxu0
    %v2182 = vpop.f32.mrf.mxu0
    %v2183 = vpop.f32.mrf.mxu0
    %2184 = vdwg.mxu0
    %v2185 = vsel %vm209, %v2180, -inf
    %2186 = vmax.xlane.f32.xlu0 %v2185
    %v2187 = vpop.xlane.xlu0 %2186
    %v2188 = vsub.f32 %v2180, %v2187
    %v2189 = vmul.f32 %v2188, 1.442695
    %v2190 = vpow.pop %v2189
    %v2191 = vsel %vm209, %v2190, 0.0
    %2192 = vadd.xlane.f32.xlu0 %v2191
    %v2193 = vpop.xlane.xlu0 %2192
    %v2194 = vrcp.pop %v2193
    %v2195 = vmul.f32 %v2190, %v2194
    %v2196 = vpack.c.bf16 %v2195, %v2195
    %2197 = vrot.lane.b32.xlu0 %v204, 56
    %v2198 = vpop.permute.xlu0 %2197
    %v2200 = vsel %vm209, %v2196, 0
    %v2203 = vsel %vm273, %v2198, 0
    %2205 = vmatprep.subr.bf16.mxu0 0
    %2206 = vmatpush1.bf16.msra.mxu0 0
    %2207 = vmatprep.subr.bf16.mxu0 0
    %2208 = vmatpush1.bf16.msra.mxu0 0
    %2209 = vmatprep.subr.bf16.mxu0 0
    %2210 = vmatpush1.bf16.msra.mxu0 0
    %2211 = vmatprep.subr.bf16.mxu0 0
    %2212 = vmatpush1.bf16.msra.mxu0 0
    %2213 = vmatprep.subr.bf16.mxu0 0
    %2214 = vmatpush1.bf16.msra.mxu0 0
    %2215 = vmatprep.subr.bf16.mxu0 0
    %2216 = vmatpush1.bf16.msra.mxu0 0
    %2217 = vmatprep.subr.bf16.mxu0 0
    %2218 = vmatpush1.bf16.msra.mxu0 0
    %2219 = vmatprep.subr.bf16.mxu0 0
    %2220 = vmatpush1.bf16.msra.mxu0 %v2203
    %2221 = vmatprep.subr.bf16.mxu0 0
    %2222 = vmatpush2.bf16.msra.mxu0 0
    %2223 = vmatprep.subr.bf16.mxu0 0
    %2224 = vmatpush2.bf16.msra.mxu0 0
    %2225 = vmatprep.subr.bf16.mxu0 0
    %2226 = vmatpush2.bf16.msra.mxu0 0
    %2227 = vmatprep.subr.bf16.mxu0 0
    %2228 = vmatpush2.bf16.msra.mxu0 0
    %2229 = vmatprep.subr.bf16.mxu0 0
    %2230 = vmatpush2.bf16.msra.mxu0 0
    %2231 = vmatprep.subr.bf16.mxu0 0
    %2232 = vmatpush2.bf16.msra.mxu0 0
    %2233 = vmatprep.subr.bf16.mxu0 0
    %2234 = vmatpush2.bf16.msra.mxu0 0
    %2235 = vmatprep.subr.bf16.mxu0 0
    %2236 = vmatpush2.bf16.msra.mxu0 0
    %2237 = vmatprep.mubr.bf16.mxu0 0
    %2238 = vmatmul.mubr.bf16.gmra.mxu0 %v2200
    %v2239 = vpop.f32.mrf.mxu0
    %v2240 = vadd.f32 0.0, %v2239
    %v2241 = vpop.f32.mrf.mxu0
    %v2242 = vpop.f32.mrf.mxu0
    %v2243 = vpop.f32.mrf.mxu0
    %2244 = vdwg.mxu0
    %2245 = vrot.lane.b32.xlu0 %v204, 112
    %v2246 = vpop.permute.xlu0 %2245
    %2247 = vrot.lane.b32.xlu0 %v204, 80
    %v2248 = vpop.permute.xlu0 %2247
    %v2250 = vsel %vm209, %v2246, 0
    %v2253 = vsel %vm209, %v2248, 0
    %2255 = vmatprep.subr.bf16.mxu0 0
    %2256 = vmatpush1.bf16.xpose.msra.mxu0 0
    %2257 = vmatprep.subr.bf16.mxu0 0
    %2258 = vmatpush1.bf16.xpose.msra.mxu0 0
    %2259 = vmatprep.subr.bf16.mxu0 0
    %2260 = vmatpush1.bf16.xpose.msra.mxu0 0
    %2261 = vmatprep.subr.bf16.mxu0 0
    %2262 = vmatpush1.bf16.xpose.msra.mxu0 0
    %2263 = vmatprep.subr.bf16.mxu0 0
    %2264 = vmatpush1.bf16.xpose.msra.mxu0 0
    %2265 = vmatprep.subr.bf16.mxu0 0
    %2266 = vmatpush1.bf16.xpose.msra.mxu0 0
    %2267 = vmatprep.subr.bf16.mxu0 0
    %2268 = vmatpush1.bf16.xpose.msra.mxu0 0
    %2269 = vmatprep.subr.bf16.mxu0 0
    %2270 = vmatpush1.bf16.xpose.msra.mxu0 %v2253
    %2271 = vmatprep.subr.bf16.mxu0 0
    %2272 = vmatpush2.bf16.xpose.msra.mxu0 0
    %2273 = vmatprep.subr.bf16.mxu0 0
    %2274 = vmatpush2.bf16.xpose.msra.mxu0 0
    %2275 = vmatprep.subr.bf16.mxu0 0
    %2276 = vmatpush2.bf16.xpose.msra.mxu0 0
    %2277 = vmatprep.subr.bf16.mxu0 0
    %2278 = vmatpush2.bf16.xpose.msra.mxu0 0
    %2279 = vmatprep.subr.bf16.mxu0 0
    %2280 = vmatpush2.bf16.xpose.msra.mxu0 0
    %2281 = vmatprep.subr.bf16.mxu0 0
    %2282 = vmatpush2.bf16.xpose.msra.mxu0 0
    %2283 = vmatprep.subr.bf16.mxu0 0
    %2284 = vmatpush2.bf16.xpose.msra.mxu0 0
    %2285 = vmatprep.subr.bf16.mxu0 0
    %2286 = vmatpush2.bf16.xpose.msra.mxu0 0
    %2287 = vmatprep.mubr.bf16.mxu0 0
    %2288 = vmatmul.mubr.bf16.gmra.mxu0 %v2250
    %v2289 = vpop.f32.mrf.mxu0
    %v2290 = vadd.f32 0.0, %v2289
    %v2291 = vpop.f32.mrf.mxu0
    %v2292 = vpop.f32.mrf.mxu0
    %v2293 = vpop.f32.mrf.mxu0
    %2294 = vdwg.mxu0
    %v2295 = vsel %vm209, %v2290, -inf
    %2296 = vmax.xlane.f32.xlu0 %v2295
    %v2297 = vpop.xlane.xlu0 %2296
    %v2298 = vsub.f32 %v2290, %v2297
    %v2299 = vmul.f32 %v2298, 1.442695
    %v2300 = vpow.pop %v2299
    %v2301 = vsel %vm209, %v2300, 0.0
    %2302 = vadd.xlane.f32.xlu0 %v2301
    %v2303 = vpop.xlane.xlu0 %2302
    %v2304 = vrcp.pop %v2303
    %v2305 = vmul.f32 %v2300, %v2304
    %v2306 = vpack.c.bf16 %v2305, %v2305
    %2307 = vrot.lane.b32.xlu0 %v204, 48
    %v2308 = vpop.permute.xlu0 %2307
    %v2310 = vsel %vm209, %v2306, 0
    %v2313 = vsel %vm273, %v2308, 0
    %2315 = vmatprep.subr.bf16.mxu0 0
    %2316 = vmatpush1.bf16.msra.mxu0 0
    %2317 = vmatprep.subr.bf16.mxu0 0
    %2318 = vmatpush1.bf16.msra.mxu0 0
    %2319 = vmatprep.subr.bf16.mxu0 0
    %2320 = vmatpush1.bf16.msra.mxu0 0
    %2321 = vmatprep.subr.bf16.mxu0 0
    %2322 = vmatpush1.bf16.msra.mxu0 0
    %2323 = vmatprep.subr.bf16.mxu0 0
    %2324 = vmatpush1.bf16.msra.mxu0 0
    %2325 = vmatprep.subr.bf16.mxu0 0
    %2326 = vmatpush1.bf16.msra.mxu0 0
    %2327 = vmatprep.subr.bf16.mxu0 0
    %2328 = vmatpush1.bf16.msra.mxu0 0
    %2329 = vmatprep.subr.bf16.mxu0 0
    %2330 = vmatpush1.bf16.msra.mxu0 %v2313
    %2331 = vmatprep.subr.bf16.mxu0 0
    %2332 = vmatpush2.bf16.msra.mxu0 0
    %2333 = vmatprep.subr.bf16.mxu0 0
    %2334 = vmatpush2.bf16.msra.mxu0 0
    %2335 = vmatprep.subr.bf16.mxu0 0
    %2336 = vmatpush2.bf16.msra.mxu0 0
    %2337 = vmatprep.subr.bf16.mxu0 0
    %2338 = vmatpush2.bf16.msra.mxu0 0
    %2339 = vmatprep.subr.bf16.mxu0 0
    %2340 = vmatpush2.bf16.msra.mxu0 0
    %2341 = vmatprep.subr.bf16.mxu0 0
    %2342 = vmatpush2.bf16.msra.mxu0 0
    %2343 = vmatprep.subr.bf16.mxu0 0
    %2344 = vmatpush2.bf16.msra.mxu0 0
    %2345 = vmatprep.subr.bf16.mxu0 0
    %2346 = vmatpush2.bf16.msra.mxu0 0
    %2347 = vmatprep.mubr.bf16.mxu0 0
    %2348 = vmatmul.mubr.bf16.gmra.mxu0 %v2310
    %v2349 = vpop.f32.mrf.mxu0
    %v2350 = vadd.f32 0.0, %v2349
    %v2351 = vpop.f32.mrf.mxu0
    %v2352 = vpop.f32.mrf.mxu0
    %v2353 = vpop.f32.mrf.mxu0
    %2354 = vdwg.mxu0
    %2355 = vrot.lane.b32.xlu0 %v204, 104
    %v2356 = vpop.permute.xlu0 %2355
    %2357 = vrot.lane.b32.xlu0 %v204, 72
    %v2358 = vpop.permute.xlu0 %2357
    %v2360 = vsel %vm209, %v2356, 0
    %v2363 = vsel %vm209, %v2358, 0
    %2365 = vmatprep.subr.bf16.mxu0 0
    %2366 = vmatpush1.bf16.xpose.msra.mxu0 0
    %2367 = vmatprep.subr.bf16.mxu0 0
    %2368 = vmatpush1.bf16.xpose.msra.mxu0 0
    %2369 = vmatprep.subr.bf16.mxu0 0
    %2370 = vmatpush1.bf16.xpose.msra.mxu0 0
    %2371 = vmatprep.subr.bf16.mxu0 0
    %2372 = vmatpush1.bf16.xpose.msra.mxu0 0
    %2373 = vmatprep.subr.bf16.mxu0 0
    %2374 = vmatpush1.bf16.xpose.msra.mxu0 0
    %2375 = vmatprep.subr.bf16.mxu0 0
    %2376 = vmatpush1.bf16.xpose.msra.mxu0 0
    %2377 = vmatprep.subr.bf16.mxu0 0
    %2378 = vmatpush1.bf16.xpose.msra.mxu0 0
    %2379 = vmatprep.subr.bf16.mxu0 0
    %2380 = vmatpush1.bf16.xpose.msra.mxu0 %v2363
    %2381 = vmatprep.subr.bf16.mxu0 0
    %2382 = vmatpush2.bf16.xpose.msra.mxu0 0
    %2383 = vmatprep.subr.bf16.mxu0 0
    %2384 = vmatpush2.bf16.xpose.msra.mxu0 0
    %2385 = vmatprep.subr.bf16.mxu0 0
    %2386 = vmatpush2.bf16.xpose.msra.mxu0 0
    %2387 = vmatprep.subr.bf16.mxu0 0
    %2388 = vmatpush2.bf16.xpose.msra.mxu0 0
    %2389 = vmatprep.subr.bf16.mxu0 0
    %2390 = vmatpush2.bf16.xpose.msra.mxu0 0
    %2391 = vmatprep.subr.bf16.mxu0 0
    %2392 = vmatpush2.bf16.xpose.msra.mxu0 0
    %2393 = vmatprep.subr.bf16.mxu0 0
    %2394 = vmatpush2.bf16.xpose.msra.mxu0 0
    %2395 = vmatprep.subr.bf16.mxu0 0
    %2396 = vmatpush2.bf16.xpose.msra.mxu0 0
    %2397 = vmatprep.mubr.bf16.mxu0 0
    %2398 = vmatmul.mubr.bf16.gmra.mxu0 %v2360
    %v2399 = vpop.f32.mrf.mxu0
    %v2400 = vadd.f32 0.0, %v2399
    %v2401 = vpop.f32.mrf.mxu0
    %v2402 = vpop.f32.mrf.mxu0
    %v2403 = vpop.f32.mrf.mxu0
    %2404 = vdwg.mxu0
    %v2405 = vsel %vm209, %v2400, -inf
    %2406 = vmax.xlane.f32.xlu0 %v2405
    %v2407 = vpop.xlane.xlu0 %2406
    %v2408 = vsub.f32 %v2400, %v2407
    %v2409 = vmul.f32 %v2408, 1.442695
    %v2410 = vpow.pop %v2409
    %v2411 = vsel %vm209, %v2410, 0.0
    %2412 = vadd.xlane.f32.xlu0 %v2411
    %v2413 = vpop.xlane.xlu0 %2412
    %v2414 = vrcp.pop %v2413
    %v2415 = vmul.f32 %v2410, %v2414
    %v2416 = vpack.c.bf16 %v2415, %v2415
    %2417 = vrot.lane.b32.xlu0 %v204, 40
    %v2418 = vpop.permute.xlu0 %2417
    %v2420 = vsel %vm209, %v2416, 0
    %v2423 = vsel %vm273, %v2418, 0
    %2425 = vmatprep.subr.bf16.mxu0 0
    %2426 = vmatpush1.bf16.msra.mxu0 0
    %2427 = vmatprep.subr.bf16.mxu0 0
    %2428 = vmatpush1.bf16.msra.mxu0 0
    %2429 = vmatprep.subr.bf16.mxu0 0
    %2430 = vmatpush1.bf16.msra.mxu0 0
    %2431 = vmatprep.subr.bf16.mxu0 0
    %2432 = vmatpush1.bf16.msra.mxu0 0
    %2433 = vmatprep.subr.bf16.mxu0 0
    %2434 = vmatpush1.bf16.msra.mxu0 0
    %2435 = vmatprep.subr.bf16.mxu0 0
    %2436 = vmatpush1.bf16.msra.mxu0 0
    %2437 = vmatprep.subr.bf16.mxu0 0
    %2438 = vmatpush1.bf16.msra.mxu0 0
    %2439 = vmatprep.subr.bf16.mxu0 0
    %2440 = vmatpush1.bf16.msra.mxu0 %v2423
    %2441 = vmatprep.subr.bf16.mxu0 0
    %2442 = vmatpush2.bf16.msra.mxu0 0
    %2443 = vmatprep.subr.bf16.mxu0 0
    %2444 = vmatpush2.bf16.msra.mxu0 0
    %2445 = vmatprep.subr.bf16.mxu0 0
    %2446 = vmatpush2.bf16.msra.mxu0 0
    %2447 = vmatprep.subr.bf16.mxu0 0
    %2448 = vmatpush2.bf16.msra.mxu0 0
    %2449 = vmatprep.subr.bf16.mxu0 0
    %2450 = vmatpush2.bf16.msra.mxu0 0
    %2451 = vmatprep.subr.bf16.mxu0 0
    %2452 = vmatpush2.bf16.msra.mxu0 0
    %2453 = vmatprep.subr.bf16.mxu0 0
    %2454 = vmatpush2.bf16.msra.mxu0 0
    %2455 = vmatprep.subr.bf16.mxu0 0
    %2456 = vmatpush2.bf16.msra.mxu0 0
    %2457 = vmatprep.mubr.bf16.mxu0 0
    %2458 = vmatmul.mubr.bf16.gmra.mxu0 %v2420
    %v2459 = vpop.f32.mrf.mxu0
    %v2460 = vadd.f32 0.0, %v2459
    %v2461 = vpop.f32.mrf.mxu0
    %v2462 = vpop.f32.mrf.mxu0
    %v2463 = vpop.f32.mrf.mxu0
    %2464 = vdwg.mxu0
    %2466 = vrot.lane.b32.xlu0 %v2240, 8
    %v2467 = vpop.permute.xlu0 %2466
    %2470 = vrot.lane.b32.xlu0 %v2350, 16
    %v2471 = vpop.permute.xlu0 %2470
    %2474 = vrot.lane.b32.xlu0 %v2460, 24
    %v2475 = vpop.permute.xlu0 %2474
    %v2477 = vsel %vm209, %v2130, %v2467
    %v2478 = vsel %vm660, %v2477, %v2471
    %v2479 = vsel %vm662, %v2478, %v2475
    %v2480 = vrot.slane %v204, 4
    %2481 = vrot.lane.b32.xlu0 %v2480, 96
    %v2482 = vpop.permute.xlu0 %2481
    %v2484 = vsel %vm209, %v2480, 0
    %v2487 = vsel %vm209, %v2482, 0
    %2489 = vmatprep.subr.bf16.mxu0 0
    %2490 = vmatpush1.bf16.xpose.msra.mxu0 0
    %2491 = vmatprep.subr.bf16.mxu0 0
    %2492 = vmatpush1.bf16.xpose.msra.mxu0 0
    %2493 = vmatprep.subr.bf16.mxu0 0
    %2494 = vmatpush1.bf16.xpose.msra.mxu0 0
    %2495 = vmatprep.subr.bf16.mxu0 0
    %2496 = vmatpush1.bf16.xpose.msra.mxu0 0
    %2497 = vmatprep.subr.bf16.mxu0 0
    %2498 = vmatpush1.bf16.xpose.msra.mxu0 0
    %2499 = vmatprep.subr.bf16.mxu0 0
    %2500 = vmatpush1.bf16.xpose.msra.mxu0 0
    %2501 = vmatprep.subr.bf16.mxu0 0
    %2502 = vmatpush1.bf16.xpose.msra.mxu0 0
    %2503 = vmatprep.subr.bf16.mxu0 0
    %2504 = vmatpush1.bf16.xpose.msra.mxu0 %v2487
    %2505 = vmatprep.subr.bf16.mxu0 0
    %2506 = vmatpush2.bf16.xpose.msra.mxu0 0
    %2507 = vmatprep.subr.bf16.mxu0 0
    %2508 = vmatpush2.bf16.xpose.msra.mxu0 0
    %2509 = vmatprep.subr.bf16.mxu0 0
    %2510 = vmatpush2.bf16.xpose.msra.mxu0 0
    %2511 = vmatprep.subr.bf16.mxu0 0
    %2512 = vmatpush2.bf16.xpose.msra.mxu0 0
    %2513 = vmatprep.subr.bf16.mxu0 0
    %2514 = vmatpush2.bf16.xpose.msra.mxu0 0
    %2515 = vmatprep.subr.bf16.mxu0 0
    %2516 = vmatpush2.bf16.xpose.msra.mxu0 0
    %2517 = vmatprep.subr.bf16.mxu0 0
    %2518 = vmatpush2.bf16.xpose.msra.mxu0 0
    %2519 = vmatprep.subr.bf16.mxu0 0
    %2520 = vmatpush2.bf16.xpose.msra.mxu0 0
    %2521 = vmatprep.mubr.bf16.mxu0 0
    %2522 = vmatmul.mubr.bf16.gmra.mxu0 %v2484
    %v2523 = vpop.f32.mrf.mxu0
    %v2524 = vadd.f32 0.0, %v2523
    %v2525 = vpop.f32.mrf.mxu0
    %v2526 = vpop.f32.mrf.mxu0
    %v2527 = vpop.f32.mrf.mxu0
    %2528 = vdwg.mxu0
    %v2529 = vsel %vm209, %v2524, -inf
    %2530 = vmax.xlane.f32.xlu0 %v2529
    %v2531 = vpop.xlane.xlu0 %2530
    %v2532 = vsub.f32 %v2524, %v2531
    %v2533 = vmul.f32 %v2532, 1.442695
    %v2534 = vpow.pop %v2533
    %v2535 = vsel %vm209, %v2534, 0.0
    %2536 = vadd.xlane.f32.xlu0 %v2535
    %v2537 = vpop.xlane.xlu0 %2536
    %v2538 = vrcp.pop %v2537
    %v2539 = vmul.f32 %v2534, %v2538
    %v2540 = vpack.c.bf16 %v2539, %v2539
    %2541 = vrot.lane.b32.xlu0 %v2480, 64
    %v2542 = vpop.permute.xlu0 %2541
    %v2544 = vsel %vm209, %v2540, 0
    %v2547 = vsel %vm273, %v2542, 0
    %2549 = vmatprep.subr.bf16.mxu0 0
    %2550 = vmatpush1.bf16.msra.mxu0 0
    %2551 = vmatprep.subr.bf16.mxu0 0
    %2552 = vmatpush1.bf16.msra.mxu0 0
    %2553 = vmatprep.subr.bf16.mxu0 0
    %2554 = vmatpush1.bf16.msra.mxu0 0
    %2555 = vmatprep.subr.bf16.mxu0 0
    %2556 = vmatpush1.bf16.msra.mxu0 0
    %2557 = vmatprep.subr.bf16.mxu0 0
    %2558 = vmatpush1.bf16.msra.mxu0 0
    %2559 = vmatprep.subr.bf16.mxu0 0
    %2560 = vmatpush1.bf16.msra.mxu0 0
    %2561 = vmatprep.subr.bf16.mxu0 0
    %2562 = vmatpush1.bf16.msra.mxu0 0
    %2563 = vmatprep.subr.bf16.mxu0 0
    %2564 = vmatpush1.bf16.msra.mxu0 %v2547
    %2565 = vmatprep.subr.bf16.mxu0 0
    %2566 = vmatpush2.bf16.msra.mxu0 0
    %2567 = vmatprep.subr.bf16.mxu0 0
    %2568 = vmatpush2.bf16.msra.mxu0 0
    %2569 = vmatprep.subr.bf16.mxu0 0
    %2570 = vmatpush2.bf16.msra.mxu0 0
    %2571 = vmatprep.subr.bf16.mxu0 0
    %2572 = vmatpush2.bf16.msra.mxu0 0
    %2573 = vmatprep.subr.bf16.mxu0 0
    %2574 = vmatpush2.bf16.msra.mxu0 0
    %2575 = vmatprep.subr.bf16.mxu0 0
    %2576 = vmatpush2.bf16.msra.mxu0 0
    %2577 = vmatprep.subr.bf16.mxu0 0
    %2578 = vmatpush2.bf16.msra.mxu0 0
    %2579 = vmatprep.subr.bf16.mxu0 0
    %2580 = vmatpush2.bf16.msra.mxu0 0
    %2581 = vmatprep.mubr.bf16.mxu0 0
    %2582 = vmatmul.mubr.bf16.gmra.mxu0 %v2544
    %v2583 = vpop.f32.mrf.mxu0
    %v2584 = vadd.f32 0.0, %v2583
    %v2585 = vpop.f32.mrf.mxu0
    %v2586 = vpop.f32.mrf.mxu0
    %v2587 = vpop.f32.mrf.mxu0
    %2588 = vdwg.mxu0
    %2589 = vrot.lane.b32.xlu0 %v2480, 120
    %v2590 = vpop.permute.xlu0 %2589
    %2591 = vrot.lane.b32.xlu0 %v2480, 88
    %v2592 = vpop.permute.xlu0 %2591
    %v2594 = vsel %vm209, %v2590, 0
    %v2597 = vsel %vm209, %v2592, 0
    %2599 = vmatprep.subr.bf16.mxu0 0
    %2600 = vmatpush1.bf16.xpose.msra.mxu0 0
    %2601 = vmatprep.subr.bf16.mxu0 0
    %2602 = vmatpush1.bf16.xpose.msra.mxu0 0
    %2603 = vmatprep.subr.bf16.mxu0 0
    %2604 = vmatpush1.bf16.xpose.msra.mxu0 0
    %2605 = vmatprep.subr.bf16.mxu0 0
    %2606 = vmatpush1.bf16.xpose.msra.mxu0 0
    %2607 = vmatprep.subr.bf16.mxu0 0
    %2608 = vmatpush1.bf16.xpose.msra.mxu0 0
    %2609 = vmatprep.subr.bf16.mxu0 0
    %2610 = vmatpush1.bf16.xpose.msra.mxu0 0
    %2611 = vmatprep.subr.bf16.mxu0 0
    %2612 = vmatpush1.bf16.xpose.msra.mxu0 0
    %2613 = vmatprep.subr.bf16.mxu0 0
    %2614 = vmatpush1.bf16.xpose.msra.mxu0 %v2597
    %2615 = vmatprep.subr.bf16.mxu0 0
    %2616 = vmatpush2.bf16.xpose.msra.mxu0 0
    %2617 = vmatprep.subr.bf16.mxu0 0
    %2618 = vmatpush2.bf16.xpose.msra.mxu0 0
    %2619 = vmatprep.subr.bf16.mxu0 0
    %2620 = vmatpush2.bf16.xpose.msra.mxu0 0
    %2621 = vmatprep.subr.bf16.mxu0 0
    %2622 = vmatpush2.bf16.xpose.msra.mxu0 0
    %2623 = vmatprep.subr.bf16.mxu0 0
    %2624 = vmatpush2.bf16.xpose.msra.mxu0 0
    %2625 = vmatprep.subr.bf16.mxu0 0
    %2626 = vmatpush2.bf16.xpose.msra.mxu0 0
    %2627 = vmatprep.subr.bf16.mxu0 0
    %2628 = vmatpush2.bf16.xpose.msra.mxu0 0
    %2629 = vmatprep.subr.bf16.mxu0 0
    %2630 = vmatpush2.bf16.xpose.msra.mxu0 0
    %2631 = vmatprep.mubr.bf16.mxu0 0
    %2632 = vmatmul.mubr.bf16.gmra.mxu0 %v2594
    %v2633 = vpop.f32.mrf.mxu0
    %v2634 = vadd.f32 0.0, %v2633
    %v2635 = vpop.f32.mrf.mxu0
    %v2636 = vpop.f32.mrf.mxu0
    %v2637 = vpop.f32.mrf.mxu0
    %2638 = vdwg.mxu0
    %v2639 = vsel %vm209, %v2634, -inf
    %2640 = vmax.xlane.f32.xlu0 %v2639
    %v2641 = vpop.xlane.xlu0 %2640
    %v2642 = vsub.f32 %v2634, %v2641
    %v2643 = vmul.f32 %v2642, 1.442695
    %v2644 = vpow.pop %v2643
    %v2645 = vsel %vm209, %v2644, 0.0
    %2646 = vadd.xlane.f32.xlu0 %v2645
    %v2647 = vpop.xlane.xlu0 %2646
    %v2648 = vrcp.pop %v2647
    %v2649 = vmul.f32 %v2644, %v2648
    %v2650 = vpack.c.bf16 %v2649, %v2649
    %2651 = vrot.lane.b32.xlu0 %v2480, 56
    %v2652 = vpop.permute.xlu0 %2651
    %v2654 = vsel %vm209, %v2650, 0
    %v2657 = vsel %vm273, %v2652, 0
    %2659 = vmatprep.subr.bf16.mxu0 0
    %2660 = vmatpush1.bf16.msra.mxu0 0
    %2661 = vmatprep.subr.bf16.mxu0 0
    %2662 = vmatpush1.bf16.msra.mxu0 0
    %2663 = vmatprep.subr.bf16.mxu0 0
    %2664 = vmatpush1.bf16.msra.mxu0 0
    %2665 = vmatprep.subr.bf16.mxu0 0
    %2666 = vmatpush1.bf16.msra.mxu0 0
    %2667 = vmatprep.subr.bf16.mxu0 0
    %2668 = vmatpush1.bf16.msra.mxu0 0
    %2669 = vmatprep.subr.bf16.mxu0 0
    %2670 = vmatpush1.bf16.msra.mxu0 0
    %2671 = vmatprep.subr.bf16.mxu0 0
    %2672 = vmatpush1.bf16.msra.mxu0 0
    %2673 = vmatprep.subr.bf16.mxu0 0
    %2674 = vmatpush1.bf16.msra.mxu0 %v2657
    %2675 = vmatprep.subr.bf16.mxu0 0
    %2676 = vmatpush2.bf16.msra.mxu0 0
    %2677 = vmatprep.subr.bf16.mxu0 0
    %2678 = vmatpush2.bf16.msra.mxu0 0
    %2679 = vmatprep.subr.bf16.mxu0 0
    %2680 = vmatpush2.bf16.msra.mxu0 0
    %2681 = vmatprep.subr.bf16.mxu0 0
    %2682 = vmatpush2.bf16.msra.mxu0 0
    %2683 = vmatprep.subr.bf16.mxu0 0
    %2684 = vmatpush2.bf16.msra.mxu0 0
    %2685 = vmatprep.subr.bf16.mxu0 0
    %2686 = vmatpush2.bf16.msra.mxu0 0
    %2687 = vmatprep.subr.bf16.mxu0 0
    %2688 = vmatpush2.bf16.msra.mxu0 0
    %2689 = vmatprep.subr.bf16.mxu0 0
    %2690 = vmatpush2.bf16.msra.mxu0 0
    %2691 = vmatprep.mubr.bf16.mxu0 0
    %2692 = vmatmul.mubr.bf16.gmra.mxu0 %v2654
    %v2693 = vpop.f32.mrf.mxu0
    %v2694 = vadd.f32 0.0, %v2693
    %v2695 = vpop.f32.mrf.mxu0
    %v2696 = vpop.f32.mrf.mxu0
    %v2697 = vpop.f32.mrf.mxu0
    %2698 = vdwg.mxu0
    %2699 = vrot.lane.b32.xlu0 %v2480, 112
    %v2700 = vpop.permute.xlu0 %2699
    %2701 = vrot.lane.b32.xlu0 %v2480, 80
    %v2702 = vpop.permute.xlu0 %2701
    %v2704 = vsel %vm209, %v2700, 0
    %v2707 = vsel %vm209, %v2702, 0
    %2709 = vmatprep.subr.bf16.mxu0 0
    %2710 = vmatpush1.bf16.xpose.msra.mxu0 0
    %2711 = vmatprep.subr.bf16.mxu0 0
    %2712 = vmatpush1.bf16.xpose.msra.mxu0 0
    %2713 = vmatprep.subr.bf16.mxu0 0
    %2714 = vmatpush1.bf16.xpose.msra.mxu0 0
    %2715 = vmatprep.subr.bf16.mxu0 0
    %2716 = vmatpush1.bf16.xpose.msra.mxu0 0
    %2717 = vmatprep.subr.bf16.mxu0 0
    %2718 = vmatpush1.bf16.xpose.msra.mxu0 0
    %2719 = vmatprep.subr.bf16.mxu0 0
    %2720 = vmatpush1.bf16.xpose.msra.mxu0 0
    %2721 = vmatprep.subr.bf16.mxu0 0
    %2722 = vmatpush1.bf16.xpose.msra.mxu0 0
    %2723 = vmatprep.subr.bf16.mxu0 0
    %2724 = vmatpush1.bf16.xpose.msra.mxu0 %v2707
    %2725 = vmatprep.subr.bf16.mxu0 0
    %2726 = vmatpush2.bf16.xpose.msra.mxu0 0
    %2727 = vmatprep.subr.bf16.mxu0 0
    %2728 = vmatpush2.bf16.xpose.msra.mxu0 0
    %2729 = vmatprep.subr.bf16.mxu0 0
    %2730 = vmatpush2.bf16.xpose.msra.mxu0 0
    %2731 = vmatprep.subr.bf16.mxu0 0
    %2732 = vmatpush2.bf16.xpose.msra.mxu0 0
    %2733 = vmatprep.subr.bf16.mxu0 0
    %2734 = vmatpush2.bf16.xpose.msra.mxu0 0
    %2735 = vmatprep.subr.bf16.mxu0 0
    %2736 = vmatpush2.bf16.xpose.msra.mxu0 0
    %2737 = vmatprep.subr.bf16.mxu0 0
    %2738 = vmatpush2.bf16.xpose.msra.mxu0 0
    %2739 = vmatprep.subr.bf16.mxu0 0
    %2740 = vmatpush2.bf16.xpose.msra.mxu0 0
    %2741 = vmatprep.mubr.bf16.mxu0 0
    %2742 = vmatmul.mubr.bf16.gmra.mxu0 %v2704
    %v2743 = vpop.f32.mrf.mxu0
    %v2744 = vadd.f32 0.0, %v2743
    %v2745 = vpop.f32.mrf.mxu0
    %v2746 = vpop.f32.mrf.mxu0
    %v2747 = vpop.f32.mrf.mxu0
    %2748 = vdwg.mxu0
    %v2749 = vsel %vm209, %v2744, -inf
    %2750 = vmax.xlane.f32.xlu0 %v2749
    %v2751 = vpop.xlane.xlu0 %2750
    %v2752 = vsub.f32 %v2744, %v2751
    %v2753 = vmul.f32 %v2752, 1.442695
    %v2754 = vpow.pop %v2753
    %v2755 = vsel %vm209, %v2754, 0.0
    %2756 = vadd.xlane.f32.xlu0 %v2755
    %v2757 = vpop.xlane.xlu0 %2756
    %v2758 = vrcp.pop %v2757
    %v2759 = vmul.f32 %v2754, %v2758
    %v2760 = vpack.c.bf16 %v2759, %v2759
    %2761 = vrot.lane.b32.xlu0 %v2480, 48
    %v2762 = vpop.permute.xlu0 %2761
    %v2764 = vsel %vm209, %v2760, 0
    %v2767 = vsel %vm273, %v2762, 0
    %2769 = vmatprep.subr.bf16.mxu0 0
    %2770 = vmatpush1.bf16.msra.mxu0 0
    %2771 = vmatprep.subr.bf16.mxu0 0
    %2772 = vmatpush1.bf16.msra.mxu0 0
    %2773 = vmatprep.subr.bf16.mxu0 0
    %2774 = vmatpush1.bf16.msra.mxu0 0
    %2775 = vmatprep.subr.bf16.mxu0 0
    %2776 = vmatpush1.bf16.msra.mxu0 0
    %2777 = vmatprep.subr.bf16.mxu0 0
    %2778 = vmatpush1.bf16.msra.mxu0 0
    %2779 = vmatprep.subr.bf16.mxu0 0
    %2780 = vmatpush1.bf16.msra.mxu0 0
    %2781 = vmatprep.subr.bf16.mxu0 0
    %2782 = vmatpush1.bf16.msra.mxu0 0
    %2783 = vmatprep.subr.bf16.mxu0 0
    %2784 = vmatpush1.bf16.msra.mxu0 %v2767
    %2785 = vmatprep.subr.bf16.mxu0 0
    %2786 = vmatpush2.bf16.msra.mxu0 0
    %2787 = vmatprep.subr.bf16.mxu0 0
    %2788 = vmatpush2.bf16.msra.mxu0 0
    %2789 = vmatprep.subr.bf16.mxu0 0
    %2790 = vmatpush2.bf16.msra.mxu0 0
    %2791 = vmatprep.subr.bf16.mxu0 0
    %2792 = vmatpush2.bf16.msra.mxu0 0
    %2793 = vmatprep.subr.bf16.mxu0 0
    %2794 = vmatpush2.bf16.msra.mxu0 0
    %2795 = vmatprep.subr.bf16.mxu0 0
    %2796 = vmatpush2.bf16.msra.mxu0 0
    %2797 = vmatprep.subr.bf16.mxu0 0
    %2798 = vmatpush2.bf16.msra.mxu0 0
    %2799 = vmatprep.subr.bf16.mxu0 0
    %2800 = vmatpush2.bf16.msra.mxu0 0
    %2801 = vmatprep.mubr.bf16.mxu0 0
    %2802 = vmatmul.mubr.bf16.gmra.mxu0 %v2764
    %v2803 = vpop.f32.mrf.mxu0
    %v2804 = vadd.f32 0.0, %v2803
    %v2805 = vpop.f32.mrf.mxu0
    %v2806 = vpop.f32.mrf.mxu0
    %v2807 = vpop.f32.mrf.mxu0
    %2808 = vdwg.mxu0
    %2809 = vrot.lane.b32.xlu0 %v2480, 104
    %v2810 = vpop.permute.xlu0 %2809
    %2811 = vrot.lane.b32.xlu0 %v2480, 72
    %v2812 = vpop.permute.xlu0 %2811
    %v2814 = vsel %vm209, %v2810, 0
    %v2817 = vsel %vm209, %v2812, 0
    %2819 = vmatprep.subr.bf16.mxu0 0
    %2820 = vmatpush1.bf16.xpose.msra.mxu0 0
    %2821 = vmatprep.subr.bf16.mxu0 0
    %2822 = vmatpush1.bf16.xpose.msra.mxu0 0
    %2823 = vmatprep.subr.bf16.mxu0 0
    %2824 = vmatpush1.bf16.xpose.msra.mxu0 0
    %2825 = vmatprep.subr.bf16.mxu0 0
    %2826 = vmatpush1.bf16.xpose.msra.mxu0 0
    %2827 = vmatprep.subr.bf16.mxu0 0
    %2828 = vmatpush1.bf16.xpose.msra.mxu0 0
    %2829 = vmatprep.subr.bf16.mxu0 0
    %2830 = vmatpush1.bf16.xpose.msra.mxu0 0
    %2831 = vmatprep.subr.bf16.mxu0 0
    %2832 = vmatpush1.bf16.xpose.msra.mxu0 0
    %2833 = vmatprep.subr.bf16.mxu0 0
    %2834 = vmatpush1.bf16.xpose.msra.mxu0 %v2817
    %2835 = vmatprep.subr.bf16.mxu0 0
    %2836 = vmatpush2.bf16.xpose.msra.mxu0 0
    %2837 = vmatprep.subr.bf16.mxu0 0
    %2838 = vmatpush2.bf16.xpose.msra.mxu0 0
    %2839 = vmatprep.subr.bf16.mxu0 0
    %2840 = vmatpush2.bf16.xpose.msra.mxu0 0
    %2841 = vmatprep.subr.bf16.mxu0 0
    %2842 = vmatpush2.bf16.xpose.msra.mxu0 0
    %2843 = vmatprep.subr.bf16.mxu0 0
    %2844 = vmatpush2.bf16.xpose.msra.mxu0 0
    %2845 = vmatprep.subr.bf16.mxu0 0
    %2846 = vmatpush2.bf16.xpose.msra.mxu0 0
    %2847 = vmatprep.subr.bf16.mxu0 0
    %2848 = vmatpush2.bf16.xpose.msra.mxu0 0
    %2849 = vmatprep.subr.bf16.mxu0 0
    %2850 = vmatpush2.bf16.xpose.msra.mxu0 0
    %2851 = vmatprep.mubr.bf16.mxu0 0
    %2852 = vmatmul.mubr.bf16.gmra.mxu0 %v2814
    %v2853 = vpop.f32.mrf.mxu0
    %v2854 = vadd.f32 0.0, %v2853
    %v2855 = vpop.f32.mrf.mxu0
    %v2856 = vpop.f32.mrf.mxu0
    %v2857 = vpop.f32.mrf.mxu0
    %2858 = vdwg.mxu0
    %v2859 = vsel %vm209, %v2854, -inf
    %2860 = vmax.xlane.f32.xlu0 %v2859
    %v2861 = vpop.xlane.xlu0 %2860
    %v2862 = vsub.f32 %v2854, %v2861
    %v2863 = vmul.f32 %v2862, 1.442695
    %v2864 = vpow.pop %v2863
    %v2865 = vsel %vm209, %v2864, 0.0
    %2866 = vadd.xlane.f32.xlu0 %v2865
    %v2867 = vpop.xlane.xlu0 %2866
    %v2868 = vrcp.pop %v2867
    %v2869 = vmul.f32 %v2864, %v2868
    %v2870 = vpack.c.bf16 %v2869, %v2869
    %2871 = vrot.lane.b32.xlu0 %v2480, 40
    %v2872 = vpop.permute.xlu0 %2871
    %v2874 = vsel %vm209, %v2870, 0
    %v2877 = vsel %vm273, %v2872, 0
    %2879 = vmatprep.subr.bf16.mxu0 0
    %2880 = vmatpush1.bf16.msra.mxu0 0
    %2881 = vmatprep.subr.bf16.mxu0 0
    %2882 = vmatpush1.bf16.msra.mxu0 0
    %2883 = vmatprep.subr.bf16.mxu0 0
    %2884 = vmatpush1.bf16.msra.mxu0 0
    %2885 = vmatprep.subr.bf16.mxu0 0
    %2886 = vmatpush1.bf16.msra.mxu0 0
    %2887 = vmatprep.subr.bf16.mxu0 0
    %2888 = vmatpush1.bf16.msra.mxu0 0
    %2889 = vmatprep.subr.bf16.mxu0 0
    %2890 = vmatpush1.bf16.msra.mxu0 0
    %2891 = vmatprep.subr.bf16.mxu0 0
    %2892 = vmatpush1.bf16.msra.mxu0 0
    %2893 = vmatprep.subr.bf16.mxu0 0
    %2894 = vmatpush1.bf16.msra.mxu0 %v2877
    %2895 = vmatprep.subr.bf16.mxu0 0
    %2896 = vmatpush2.bf16.msra.mxu0 0
    %2897 = vmatprep.subr.bf16.mxu0 0
    %2898 = vmatpush2.bf16.msra.mxu0 0
    %2899 = vmatprep.subr.bf16.mxu0 0
    %2900 = vmatpush2.bf16.msra.mxu0 0
    %2901 = vmatprep.subr.bf16.mxu0 0
    %2902 = vmatpush2.bf16.msra.mxu0 0
    %2903 = vmatprep.subr.bf16.mxu0 0
    %2904 = vmatpush2.bf16.msra.mxu0 0
    %2905 = vmatprep.subr.bf16.mxu0 0
    %2906 = vmatpush2.bf16.msra.mxu0 0
    %2907 = vmatprep.subr.bf16.mxu0 0
    %2908 = vmatpush2.bf16.msra.mxu0 0
    %2909 = vmatprep.subr.bf16.mxu0 0
    %2910 = vmatpush2.bf16.msra.mxu0 0
    %2911 = vmatprep.mubr.bf16.mxu0 0
    %2912 = vmatmul.mubr.bf16.gmra.mxu0 %v2874
    %v2913 = vpop.f32.mrf.mxu0
    %v2914 = vadd.f32 0.0, %v2913
    %v2915 = vpop.f32.mrf.mxu0
    %v2916 = vpop.f32.mrf.mxu0
    %v2917 = vpop.f32.mrf.mxu0
    %2918 = vdwg.mxu0
    %2920 = vrot.lane.b32.xlu0 %v2694, 8
    %v2921 = vpop.permute.xlu0 %2920
    %2924 = vrot.lane.b32.xlu0 %v2804, 16
    %v2925 = vpop.permute.xlu0 %2924
    %2928 = vrot.lane.b32.xlu0 %v2914, 24
    %v2929 = vpop.permute.xlu0 %2928
    %v2931 = vsel %vm209, %v2584, %v2921
    %v2932 = vsel %vm660, %v2931, %v2925
    %v2933 = vsel %vm662, %v2932, %v2929
    %2935 = vrot.lane.b32.xlu0 %v205, 96
    %v2936 = vpop.permute.xlu0 %2935
    %v2938 = vsel %vm209, %v205, 0
    %v2941 = vsel %vm209, %v2936, 0
    %2943 = vmatprep.subr.bf16.mxu0 0
    %2944 = vmatpush1.bf16.xpose.msra.mxu0 0
    %2945 = vmatprep.subr.bf16.mxu0 0
    %2946 = vmatpush1.bf16.xpose.msra.mxu0 0
    %2947 = vmatprep.subr.bf16.mxu0 0
    %2948 = vmatpush1.bf16.xpose.msra.mxu0 0
    %2949 = vmatprep.subr.bf16.mxu0 0
    %2950 = vmatpush1.bf16.xpose.msra.mxu0 0
    %2951 = vmatprep.subr.bf16.mxu0 0
    %2952 = vmatpush1.bf16.xpose.msra.mxu0 0
    %2953 = vmatprep.subr.bf16.mxu0 0
    %2954 = vmatpush1.bf16.xpose.msra.mxu0 0
    %2955 = vmatprep.subr.bf16.mxu0 0
    %2956 = vmatpush1.bf16.xpose.msra.mxu0 0
    %2957 = vmatprep.subr.bf16.mxu0 0
    %2958 = vmatpush1.bf16.xpose.msra.mxu0 %v2941
    %2959 = vmatprep.subr.bf16.mxu0 0
    %2960 = vmatpush2.bf16.xpose.msra.mxu0 0
    %2961 = vmatprep.subr.bf16.mxu0 0
    %2962 = vmatpush2.bf16.xpose.msra.mxu0 0
    %2963 = vmatprep.subr.bf16.mxu0 0
    %2964 = vmatpush2.bf16.xpose.msra.mxu0 0
    %2965 = vmatprep.subr.bf16.mxu0 0
    %2966 = vmatpush2.bf16.xpose.msra.mxu0 0
    %2967 = vmatprep.subr.bf16.mxu0 0
    %2968 = vmatpush2.bf16.xpose.msra.mxu0 0
    %2969 = vmatprep.subr.bf16.mxu0 0
    %2970 = vmatpush2.bf16.xpose.msra.mxu0 0
    %2971 = vmatprep.subr.bf16.mxu0 0
    %2972 = vmatpush2.bf16.xpose.msra.mxu0 0
    %2973 = vmatprep.subr.bf16.mxu0 0
    %2974 = vmatpush2.bf16.xpose.msra.mxu0 0
    %2975 = vmatprep.mubr.bf16.mxu0 0
    %2976 = vmatmul.mubr.bf16.gmra.mxu0 %v2938
    %v2977 = vpop.f32.mrf.mxu0
    %v2978 = vadd.f32 0.0, %v2977
    %v2979 = vpop.f32.mrf.mxu0
    %v2980 = vpop.f32.mrf.mxu0
    %v2981 = vpop.f32.mrf.mxu0
    %2982 = vdwg.mxu0
    %v2983 = vsel %vm209, %v2978, -inf
    %2984 = vmax.xlane.f32.xlu0 %v2983
    %v2985 = vpop.xlane.xlu0 %2984
    %v2986 = vsub.f32 %v2978, %v2985
    %v2987 = vmul.f32 %v2986, 1.442695
    %v2988 = vpow.pop %v2987
    %v2989 = vsel %vm209, %v2988, 0.0
    %2990 = vadd.xlane.f32.xlu0 %v2989
    %v2991 = vpop.xlane.xlu0 %2990
    %v2992 = vrcp.pop %v2991
    %v2993 = vmul.f32 %v2988, %v2992
    %v2994 = vpack.c.bf16 %v2993, %v2993
    %2995 = vrot.lane.b32.xlu0 %v205, 64
    %v2996 = vpop.permute.xlu0 %2995
    %v2998 = vsel %vm209, %v2994, 0
    %v3001 = vsel %vm273, %v2996, 0
    %3003 = vmatprep.subr.bf16.mxu0 0
    %3004 = vmatpush1.bf16.msra.mxu0 0
    %3005 = vmatprep.subr.bf16.mxu0 0
    %3006 = vmatpush1.bf16.msra.mxu0 0
    %3007 = vmatprep.subr.bf16.mxu0 0
    %3008 = vmatpush1.bf16.msra.mxu0 0
    %3009 = vmatprep.subr.bf16.mxu0 0
    %3010 = vmatpush1.bf16.msra.mxu0 0
    %3011 = vmatprep.subr.bf16.mxu0 0
    %3012 = vmatpush1.bf16.msra.mxu0 0
    %3013 = vmatprep.subr.bf16.mxu0 0
    %3014 = vmatpush1.bf16.msra.mxu0 0
    %3015 = vmatprep.subr.bf16.mxu0 0
    %3016 = vmatpush1.bf16.msra.mxu0 0
    %3017 = vmatprep.subr.bf16.mxu0 0
    %3018 = vmatpush1.bf16.msra.mxu0 %v3001
    %3019 = vmatprep.subr.bf16.mxu0 0
    %3020 = vmatpush2.bf16.msra.mxu0 0
    %3021 = vmatprep.subr.bf16.mxu0 0
    %3022 = vmatpush2.bf16.msra.mxu0 0
    %3023 = vmatprep.subr.bf16.mxu0 0
    %3024 = vmatpush2.bf16.msra.mxu0 0
    %3025 = vmatprep.subr.bf16.mxu0 0
    %3026 = vmatpush2.bf16.msra.mxu0 0
    %3027 = vmatprep.subr.bf16.mxu0 0
    %3028 = vmatpush2.bf16.msra.mxu0 0
    %3029 = vmatprep.subr.bf16.mxu0 0
    %3030 = vmatpush2.bf16.msra.mxu0 0
    %3031 = vmatprep.subr.bf16.mxu0 0
    %3032 = vmatpush2.bf16.msra.mxu0 0
    %3033 = vmatprep.subr.bf16.mxu0 0
    %3034 = vmatpush2.bf16.msra.mxu0 0
    %3035 = vmatprep.mubr.bf16.mxu0 0
    %3036 = vmatmul.mubr.bf16.gmra.mxu0 %v2998
    %v3037 = vpop.f32.mrf.mxu0
    %v3038 = vadd.f32 0.0, %v3037
    %v3039 = vpop.f32.mrf.mxu0
    %v3040 = vpop.f32.mrf.mxu0
    %v3041 = vpop.f32.mrf.mxu0
    %3042 = vdwg.mxu0
    %3043 = vrot.lane.b32.xlu0 %v205, 120
    %v3044 = vpop.permute.xlu0 %3043
    %3045 = vrot.lane.b32.xlu0 %v205, 88
    %v3046 = vpop.permute.xlu0 %3045
    %v3048 = vsel %vm209, %v3044, 0
    %v3051 = vsel %vm209, %v3046, 0
    %3053 = vmatprep.subr.bf16.mxu0 0
    %3054 = vmatpush1.bf16.xpose.msra.mxu0 0
    %3055 = vmatprep.subr.bf16.mxu0 0
    %3056 = vmatpush1.bf16.xpose.msra.mxu0 0
    %3057 = vmatprep.subr.bf16.mxu0 0
    %3058 = vmatpush1.bf16.xpose.msra.mxu0 0
    %3059 = vmatprep.subr.bf16.mxu0 0
    %3060 = vmatpush1.bf16.xpose.msra.mxu0 0
    %3061 = vmatprep.subr.bf16.mxu0 0
    %3062 = vmatpush1.bf16.xpose.msra.mxu0 0
    %3063 = vmatprep.subr.bf16.mxu0 0
    %3064 = vmatpush1.bf16.xpose.msra.mxu0 0
    %3065 = vmatprep.subr.bf16.mxu0 0
    %3066 = vmatpush1.bf16.xpose.msra.mxu0 0
    %3067 = vmatprep.subr.bf16.mxu0 0
    %3068 = vmatpush1.bf16.xpose.msra.mxu0 %v3051
    %3069 = vmatprep.subr.bf16.mxu0 0
    %3070 = vmatpush2.bf16.xpose.msra.mxu0 0
    %3071 = vmatprep.subr.bf16.mxu0 0
    %3072 = vmatpush2.bf16.xpose.msra.mxu0 0
    %3073 = vmatprep.subr.bf16.mxu0 0
    %3074 = vmatpush2.bf16.xpose.msra.mxu0 0
    %3075 = vmatprep.subr.bf16.mxu0 0
    %3076 = vmatpush2.bf16.xpose.msra.mxu0 0
    %3077 = vmatprep.subr.bf16.mxu0 0
    %3078 = vmatpush2.bf16.xpose.msra.mxu0 0
    %3079 = vmatprep.subr.bf16.mxu0 0
    %3080 = vmatpush2.bf16.xpose.msra.mxu0 0
    %3081 = vmatprep.subr.bf16.mxu0 0
    %3082 = vmatpush2.bf16.xpose.msra.mxu0 0
    %3083 = vmatprep.subr.bf16.mxu0 0
    %3084 = vmatpush2.bf16.xpose.msra.mxu0 0
    %3085 = vmatprep.mubr.bf16.mxu0 0
    %3086 = vmatmul.mubr.bf16.gmra.mxu0 %v3048
    %v3087 = vpop.f32.mrf.mxu0
    %v3088 = vadd.f32 0.0, %v3087
    %v3089 = vpop.f32.mrf.mxu0
    %v3090 = vpop.f32.mrf.mxu0
    %v3091 = vpop.f32.mrf.mxu0
    %3092 = vdwg.mxu0
    %v3093 = vsel %vm209, %v3088, -inf
    %3094 = vmax.xlane.f32.xlu0 %v3093
    %v3095 = vpop.xlane.xlu0 %3094
    %v3096 = vsub.f32 %v3088, %v3095
    %v3097 = vmul.f32 %v3096, 1.442695
    %v3098 = vpow.pop %v3097
    %v3099 = vsel %vm209, %v3098, 0.0
    %3100 = vadd.xlane.f32.xlu0 %v3099
    %v3101 = vpop.xlane.xlu0 %3100
    %v3102 = vrcp.pop %v3101
    %v3103 = vmul.f32 %v3098, %v3102
    %v3104 = vpack.c.bf16 %v3103, %v3103
    %3105 = vrot.lane.b32.xlu0 %v205, 56
    %v3106 = vpop.permute.xlu0 %3105
    %v3108 = vsel %vm209, %v3104, 0
    %v3111 = vsel %vm273, %v3106, 0
    %3113 = vmatprep.subr.bf16.mxu0 0
    %3114 = vmatpush1.bf16.msra.mxu0 0
    %3115 = vmatprep.subr.bf16.mxu0 0
    %3116 = vmatpush1.bf16.msra.mxu0 0
    %3117 = vmatprep.subr.bf16.mxu0 0
    %3118 = vmatpush1.bf16.msra.mxu0 0
    %3119 = vmatprep.subr.bf16.mxu0 0
    %3120 = vmatpush1.bf16.msra.mxu0 0
    %3121 = vmatprep.subr.bf16.mxu0 0
    %3122 = vmatpush1.bf16.msra.mxu0 0
    %3123 = vmatprep.subr.bf16.mxu0 0
    %3124 = vmatpush1.bf16.msra.mxu0 0
    %3125 = vmatprep.subr.bf16.mxu0 0
    %3126 = vmatpush1.bf16.msra.mxu0 0
    %3127 = vmatprep.subr.bf16.mxu0 0
    %3128 = vmatpush1.bf16.msra.mxu0 %v3111
    %3129 = vmatprep.subr.bf16.mxu0 0
    %3130 = vmatpush2.bf16.msra.mxu0 0
    %3131 = vmatprep.subr.bf16.mxu0 0
    %3132 = vmatpush2.bf16.msra.mxu0 0
    %3133 = vmatprep.subr.bf16.mxu0 0
    %3134 = vmatpush2.bf16.msra.mxu0 0
    %3135 = vmatprep.subr.bf16.mxu0 0
    %3136 = vmatpush2.bf16.msra.mxu0 0
    %3137 = vmatprep.subr.bf16.mxu0 0
    %3138 = vmatpush2.bf16.msra.mxu0 0
    %3139 = vmatprep.subr.bf16.mxu0 0
    %3140 = vmatpush2.bf16.msra.mxu0 0
    %3141 = vmatprep.subr.bf16.mxu0 0
    %3142 = vmatpush2.bf16.msra.mxu0 0
    %3143 = vmatprep.subr.bf16.mxu0 0
    %3144 = vmatpush2.bf16.msra.mxu0 0
    %3145 = vmatprep.mubr.bf16.mxu0 0
    %3146 = vmatmul.mubr.bf16.gmra.mxu0 %v3108
    %v3147 = vpop.f32.mrf.mxu0
    %v3148 = vadd.f32 0.0, %v3147
    %v3149 = vpop.f32.mrf.mxu0
    %v3150 = vpop.f32.mrf.mxu0
    %v3151 = vpop.f32.mrf.mxu0
    %3152 = vdwg.mxu0
    %3153 = vrot.lane.b32.xlu0 %v205, 112
    %v3154 = vpop.permute.xlu0 %3153
    %3155 = vrot.lane.b32.xlu0 %v205, 80
    %v3156 = vpop.permute.xlu0 %3155
    %v3158 = vsel %vm209, %v3154, 0
    %v3161 = vsel %vm209, %v3156, 0
    %3163 = vmatprep.subr.bf16.mxu0 0
    %3164 = vmatpush1.bf16.xpose.msra.mxu0 0
    %3165 = vmatprep.subr.bf16.mxu0 0
    %3166 = vmatpush1.bf16.xpose.msra.mxu0 0
    %3167 = vmatprep.subr.bf16.mxu0 0
    %3168 = vmatpush1.bf16.xpose.msra.mxu0 0
    %3169 = vmatprep.subr.bf16.mxu0 0
    %3170 = vmatpush1.bf16.xpose.msra.mxu0 0
    %3171 = vmatprep.subr.bf16.mxu0 0
    %3172 = vmatpush1.bf16.xpose.msra.mxu0 0
    %3173 = vmatprep.subr.bf16.mxu0 0
    %3174 = vmatpush1.bf16.xpose.msra.mxu0 0
    %3175 = vmatprep.subr.bf16.mxu0 0
    %3176 = vmatpush1.bf16.xpose.msra.mxu0 0
    %3177 = vmatprep.subr.bf16.mxu0 0
    %3178 = vmatpush1.bf16.xpose.msra.mxu0 %v3161
    %3179 = vmatprep.subr.bf16.mxu0 0
    %3180 = vmatpush2.bf16.xpose.msra.mxu0 0
    %3181 = vmatprep.subr.bf16.mxu0 0
    %3182 = vmatpush2.bf16.xpose.msra.mxu0 0
    %3183 = vmatprep.subr.bf16.mxu0 0
    %3184 = vmatpush2.bf16.xpose.msra.mxu0 0
    %3185 = vmatprep.subr.bf16.mxu0 0
    %3186 = vmatpush2.bf16.xpose.msra.mxu0 0
    %3187 = vmatprep.subr.bf16.mxu0 0
    %3188 = vmatpush2.bf16.xpose.msra.mxu0 0
    %3189 = vmatprep.subr.bf16.mxu0 0
    %3190 = vmatpush2.bf16.xpose.msra.mxu0 0
    %3191 = vmatprep.subr.bf16.mxu0 0
    %3192 = vmatpush2.bf16.xpose.msra.mxu0 0
    %3193 = vmatprep.subr.bf16.mxu0 0
    %3194 = vmatpush2.bf16.xpose.msra.mxu0 0
    %3195 = vmatprep.mubr.bf16.mxu0 0
    %3196 = vmatmul.mubr.bf16.gmra.mxu0 %v3158
    %v3197 = vpop.f32.mrf.mxu0
    %v3198 = vadd.f32 0.0, %v3197
    %v3199 = vpop.f32.mrf.mxu0
    %v3200 = vpop.f32.mrf.mxu0
    %v3201 = vpop.f32.mrf.mxu0
    %3202 = vdwg.mxu0
    %v3203 = vsel %vm209, %v3198, -inf
    %3204 = vmax.xlane.f32.xlu0 %v3203
    %v3205 = vpop.xlane.xlu0 %3204
    %v3206 = vsub.f32 %v3198, %v3205
    %v3207 = vmul.f32 %v3206, 1.442695
    %v3208 = vpow.pop %v3207
    %v3209 = vsel %vm209, %v3208, 0.0
    %3210 = vadd.xlane.f32.xlu0 %v3209
    %v3211 = vpop.xlane.xlu0 %3210
    %v3212 = vrcp.pop %v3211
    %v3213 = vmul.f32 %v3208, %v3212
    %v3214 = vpack.c.bf16 %v3213, %v3213
    %3215 = vrot.lane.b32.xlu0 %v205, 48
    %v3216 = vpop.permute.xlu0 %3215
    %v3218 = vsel %vm209, %v3214, 0
    %v3221 = vsel %vm273, %v3216, 0
    %3223 = vmatprep.subr.bf16.mxu0 0
    %3224 = vmatpush1.bf16.msra.mxu0 0
    %3225 = vmatprep.subr.bf16.mxu0 0
    %3226 = vmatpush1.bf16.msra.mxu0 0
    %3227 = vmatprep.subr.bf16.mxu0 0
    %3228 = vmatpush1.bf16.msra.mxu0 0
    %3229 = vmatprep.subr.bf16.mxu0 0
    %3230 = vmatpush1.bf16.msra.mxu0 0
    %3231 = vmatprep.subr.bf16.mxu0 0
    %3232 = vmatpush1.bf16.msra.mxu0 0
    %3233 = vmatprep.subr.bf16.mxu0 0
    %3234 = vmatpush1.bf16.msra.mxu0 0
    %3235 = vmatprep.subr.bf16.mxu0 0
    %3236 = vmatpush1.bf16.msra.mxu0 0
    %3237 = vmatprep.subr.bf16.mxu0 0
    %3238 = vmatpush1.bf16.msra.mxu0 %v3221
    %3239 = vmatprep.subr.bf16.mxu0 0
    %3240 = vmatpush2.bf16.msra.mxu0 0
    %3241 = vmatprep.subr.bf16.mxu0 0
    %3242 = vmatpush2.bf16.msra.mxu0 0
    %3243 = vmatprep.subr.bf16.mxu0 0
    %3244 = vmatpush2.bf16.msra.mxu0 0
    %3245 = vmatprep.subr.bf16.mxu0 0
    %3246 = vmatpush2.bf16.msra.mxu0 0
    %3247 = vmatprep.subr.bf16.mxu0 0
    %3248 = vmatpush2.bf16.msra.mxu0 0
    %3249 = vmatprep.subr.bf16.mxu0 0
    %3250 = vmatpush2.bf16.msra.mxu0 0
    %3251 = vmatprep.subr.bf16.mxu0 0
    %3252 = vmatpush2.bf16.msra.mxu0 0
    %3253 = vmatprep.subr.bf16.mxu0 0
    %3254 = vmatpush2.bf16.msra.mxu0 0
    %3255 = vmatprep.mubr.bf16.mxu0 0
    %3256 = vmatmul.mubr.bf16.gmra.mxu0 %v3218
    %v3257 = vpop.f32.mrf.mxu0
    %v3258 = vadd.f32 0.0, %v3257
    %v3259 = vpop.f32.mrf.mxu0
    %v3260 = vpop.f32.mrf.mxu0
    %v3261 = vpop.f32.mrf.mxu0
    %3262 = vdwg.mxu0
    %3263 = vrot.lane.b32.xlu0 %v205, 104
    %v3264 = vpop.permute.xlu0 %3263
    %3265 = vrot.lane.b32.xlu0 %v205, 72
    %v3266 = vpop.permute.xlu0 %3265
    %v3268 = vsel %vm209, %v3264, 0
    %v3271 = vsel %vm209, %v3266, 0
    %3273 = vmatprep.subr.bf16.mxu0 0
    %3274 = vmatpush1.bf16.xpose.msra.mxu0 0
    %3275 = vmatprep.subr.bf16.mxu0 0
    %3276 = vmatpush1.bf16.xpose.msra.mxu0 0
    %3277 = vmatprep.subr.bf16.mxu0 0
    %3278 = vmatpush1.bf16.xpose.msra.mxu0 0
    %3279 = vmatprep.subr.bf16.mxu0 0
    %3280 = vmatpush1.bf16.xpose.msra.mxu0 0
    %3281 = vmatprep.subr.bf16.mxu0 0
    %3282 = vmatpush1.bf16.xpose.msra.mxu0 0
    %3283 = vmatprep.subr.bf16.mxu0 0
    %3284 = vmatpush1.bf16.xpose.msra.mxu0 0
    %3285 = vmatprep.subr.bf16.mxu0 0
    %3286 = vmatpush1.bf16.xpose.msra.mxu0 0
    %3287 = vmatprep.subr.bf16.mxu0 0
    %3288 = vmatpush1.bf16.xpose.msra.mxu0 %v3271
    %3289 = vmatprep.subr.bf16.mxu0 0
    %3290 = vmatpush2.bf16.xpose.msra.mxu0 0
    %3291 = vmatprep.subr.bf16.mxu0 0
    %3292 = vmatpush2.bf16.xpose.msra.mxu0 0
    %3293 = vmatprep.subr.bf16.mxu0 0
    %3294 = vmatpush2.bf16.xpose.msra.mxu0 0
    %3295 = vmatprep.subr.bf16.mxu0 0
    %3296 = vmatpush2.bf16.xpose.msra.mxu0 0
    %3297 = vmatprep.subr.bf16.mxu0 0
    %3298 = vmatpush2.bf16.xpose.msra.mxu0 0
    %3299 = vmatprep.subr.bf16.mxu0 0
    %3300 = vmatpush2.bf16.xpose.msra.mxu0 0
    %3301 = vmatprep.subr.bf16.mxu0 0
    %3302 = vmatpush2.bf16.xpose.msra.mxu0 0
    %3303 = vmatprep.subr.bf16.mxu0 0
    %3304 = vmatpush2.bf16.xpose.msra.mxu0 0
    %3305 = vmatprep.mubr.bf16.mxu0 0
    %3306 = vmatmul.mubr.bf16.gmra.mxu0 %v3268
    %v3307 = vpop.f32.mrf.mxu0
    %v3308 = vadd.f32 0.0, %v3307
    %v3309 = vpop.f32.mrf.mxu0
    %v3310 = vpop.f32.mrf.mxu0
    %v3311 = vpop.f32.mrf.mxu0
    %3312 = vdwg.mxu0
    %v3313 = vsel %vm209, %v3308, -inf
    %3314 = vmax.xlane.f32.xlu0 %v3313
    %v3315 = vpop.xlane.xlu0 %3314
    %v3316 = vsub.f32 %v3308, %v3315
    %v3317 = vmul.f32 %v3316, 1.442695
    %v3318 = vpow.pop %v3317
    %v3319 = vsel %vm209, %v3318, 0.0
    %3320 = vadd.xlane.f32.xlu0 %v3319
    %v3321 = vpop.xlane.xlu0 %3320
    %v3322 = vrcp.pop %v3321
    %v3323 = vmul.f32 %v3318, %v3322
    %v3324 = vpack.c.bf16 %v3323, %v3323
    %3325 = vrot.lane.b32.xlu0 %v205, 40
    %v3326 = vpop.permute.xlu0 %3325
    %v3328 = vsel %vm209, %v3324, 0
    %v3331 = vsel %vm273, %v3326, 0
    %3333 = vmatprep.subr.bf16.mxu0 0
    %3334 = vmatpush1.bf16.msra.mxu0 0
    %3335 = vmatprep.subr.bf16.mxu0 0
    %3336 = vmatpush1.bf16.msra.mxu0 0
    %3337 = vmatprep.subr.bf16.mxu0 0
    %3338 = vmatpush1.bf16.msra.mxu0 0
    %3339 = vmatprep.subr.bf16.mxu0 0
    %3340 = vmatpush1.bf16.msra.mxu0 0
    %3341 = vmatprep.subr.bf16.mxu0 0
    %3342 = vmatpush1.bf16.msra.mxu0 0
    %3343 = vmatprep.subr.bf16.mxu0 0
    %3344 = vmatpush1.bf16.msra.mxu0 0
    %3345 = vmatprep.subr.bf16.mxu0 0
    %3346 = vmatpush1.bf16.msra.mxu0 0
    %3347 = vmatprep.subr.bf16.mxu0 0
    %3348 = vmatpush1.bf16.msra.mxu0 %v3331
    %3349 = vmatprep.subr.bf16.mxu0 0
    %3350 = vmatpush2.bf16.msra.mxu0 0
    %3351 = vmatprep.subr.bf16.mxu0 0
    %3352 = vmatpush2.bf16.msra.mxu0 0
    %3353 = vmatprep.subr.bf16.mxu0 0
    %3354 = vmatpush2.bf16.msra.mxu0 0
    %3355 = vmatprep.subr.bf16.mxu0 0
    %3356 = vmatpush2.bf16.msra.mxu0 0
    %3357 = vmatprep.subr.bf16.mxu0 0
    %3358 = vmatpush2.bf16.msra.mxu0 0
    %3359 = vmatprep.subr.bf16.mxu0 0
    %3360 = vmatpush2.bf16.msra.mxu0 0
    %3361 = vmatprep.subr.bf16.mxu0 0
    %3362 = vmatpush2.bf16.msra.mxu0 0
    %3363 = vmatprep.subr.bf16.mxu0 0
    %3364 = vmatpush2.bf16.msra.mxu0 0
    %3365 = vmatprep.mubr.bf16.mxu0 0
    %3366 = vmatmul.mubr.bf16.gmra.mxu0 %v3328
    %v3367 = vpop.f32.mrf.mxu0
    %v3368 = vadd.f32 0.0, %v3367
    %v3369 = vpop.f32.mrf.mxu0
    %v3370 = vpop.f32.mrf.mxu0
    %v3371 = vpop.f32.mrf.mxu0
    %3372 = vdwg.mxu0
    %3374 = vrot.lane.b32.xlu0 %v3148, 8
    %v3375 = vpop.permute.xlu0 %3374
    %3378 = vrot.lane.b32.xlu0 %v3258, 16
    %v3379 = vpop.permute.xlu0 %3378
    %3382 = vrot.lane.b32.xlu0 %v3368, 24
    %v3383 = vpop.permute.xlu0 %3382
    %v3385 = vsel %vm209, %v3038, %v3375
    %v3386 = vsel %vm660, %v3385, %v3379
    %v3387 = vsel %vm662, %v3386, %v3383
    %v3388 = vrot.slane %v205, 4
    %3389 = vrot.lane.b32.xlu0 %v3388, 96
    %v3390 = vpop.permute.xlu0 %3389
    %v3392 = vsel %vm209, %v3388, 0
    %v3395 = vsel %vm209, %v3390, 0
    %3397 = vmatprep.subr.bf16.mxu0 0
    %3398 = vmatpush1.bf16.xpose.msra.mxu0 0
    %3399 = vmatprep.subr.bf16.mxu0 0
    %3400 = vmatpush1.bf16.xpose.msra.mxu0 0
    %3401 = vmatprep.subr.bf16.mxu0 0
    %3402 = vmatpush1.bf16.xpose.msra.mxu0 0
    %3403 = vmatprep.subr.bf16.mxu0 0
    %3404 = vmatpush1.bf16.xpose.msra.mxu0 0
    %3405 = vmatprep.subr.bf16.mxu0 0
    %3406 = vmatpush1.bf16.xpose.msra.mxu0 0
    %3407 = vmatprep.subr.bf16.mxu0 0
    %3408 = vmatpush1.bf16.xpose.msra.mxu0 0
    %3409 = vmatprep.subr.bf16.mxu0 0
    %3410 = vmatpush1.bf16.xpose.msra.mxu0 0
    %3411 = vmatprep.subr.bf16.mxu0 0
    %3412 = vmatpush1.bf16.xpose.msra.mxu0 %v3395
    %3413 = vmatprep.subr.bf16.mxu0 0
    %3414 = vmatpush2.bf16.xpose.msra.mxu0 0
    %3415 = vmatprep.subr.bf16.mxu0 0
    %3416 = vmatpush2.bf16.xpose.msra.mxu0 0
    %3417 = vmatprep.subr.bf16.mxu0 0
    %3418 = vmatpush2.bf16.xpose.msra.mxu0 0
    %3419 = vmatprep.subr.bf16.mxu0 0
    %3420 = vmatpush2.bf16.xpose.msra.mxu0 0
    %3421 = vmatprep.subr.bf16.mxu0 0
    %3422 = vmatpush2.bf16.xpose.msra.mxu0 0
    %3423 = vmatprep.subr.bf16.mxu0 0
    %3424 = vmatpush2.bf16.xpose.msra.mxu0 0
    %3425 = vmatprep.subr.bf16.mxu0 0
    %3426 = vmatpush2.bf16.xpose.msra.mxu0 0
    %3427 = vmatprep.subr.bf16.mxu0 0
    %3428 = vmatpush2.bf16.xpose.msra.mxu0 0
    %3429 = vmatprep.mubr.bf16.mxu0 0
    %3430 = vmatmul.mubr.bf16.gmra.mxu0 %v3392
    %v3431 = vpop.f32.mrf.mxu0
    %v3432 = vadd.f32 0.0, %v3431
    %v3433 = vpop.f32.mrf.mxu0
    %v3434 = vpop.f32.mrf.mxu0
    %v3435 = vpop.f32.mrf.mxu0
    %3436 = vdwg.mxu0
    %v3437 = vsel %vm209, %v3432, -inf
    %3438 = vmax.xlane.f32.xlu0 %v3437
    %v3439 = vpop.xlane.xlu0 %3438
    %v3440 = vsub.f32 %v3432, %v3439
    %v3441 = vmul.f32 %v3440, 1.442695
    %v3442 = vpow.pop %v3441
    %v3443 = vsel %vm209, %v3442, 0.0
    %3444 = vadd.xlane.f32.xlu0 %v3443
    %v3445 = vpop.xlane.xlu0 %3444
    %v3446 = vrcp.pop %v3445
    %v3447 = vmul.f32 %v3442, %v3446
    %v3448 = vpack.c.bf16 %v3447, %v3447
    %3449 = vrot.lane.b32.xlu0 %v3388, 64
    %v3450 = vpop.permute.xlu0 %3449
    %v3452 = vsel %vm209, %v3448, 0
    %v3455 = vsel %vm273, %v3450, 0
    %3457 = vmatprep.subr.bf16.mxu0 0
    %3458 = vmatpush1.bf16.msra.mxu0 0
    %3459 = vmatprep.subr.bf16.mxu0 0
    %3460 = vmatpush1.bf16.msra.mxu0 0
    %3461 = vmatprep.subr.bf16.mxu0 0
    %3462 = vmatpush1.bf16.msra.mxu0 0
    %3463 = vmatprep.subr.bf16.mxu0 0
    %3464 = vmatpush1.bf16.msra.mxu0 0
    %3465 = vmatprep.subr.bf16.mxu0 0
    %3466 = vmatpush1.bf16.msra.mxu0 0
    %3467 = vmatprep.subr.bf16.mxu0 0
    %3468 = vmatpush1.bf16.msra.mxu0 0
    %3469 = vmatprep.subr.bf16.mxu0 0
    %3470 = vmatpush1.bf16.msra.mxu0 0
    %3471 = vmatprep.subr.bf16.mxu0 0
    %3472 = vmatpush1.bf16.msra.mxu0 %v3455
    %3473 = vmatprep.subr.bf16.mxu0 0
    %3474 = vmatpush2.bf16.msra.mxu0 0
    %3475 = vmatprep.subr.bf16.mxu0 0
    %3476 = vmatpush2.bf16.msra.mxu0 0
    %3477 = vmatprep.subr.bf16.mxu0 0
    %3478 = vmatpush2.bf16.msra.mxu0 0
    %3479 = vmatprep.subr.bf16.mxu0 0
    %3480 = vmatpush2.bf16.msra.mxu0 0
    %3481 = vmatprep.subr.bf16.mxu0 0
    %3482 = vmatpush2.bf16.msra.mxu0 0
    %3483 = vmatprep.subr.bf16.mxu0 0
    %3484 = vmatpush2.bf16.msra.mxu0 0
    %3485 = vmatprep.subr.bf16.mxu0 0
    %3486 = vmatpush2.bf16.msra.mxu0 0
    %3487 = vmatprep.subr.bf16.mxu0 0
    %3488 = vmatpush2.bf16.msra.mxu0 0
    %3489 = vmatprep.mubr.bf16.mxu0 0
    %3490 = vmatmul.mubr.bf16.gmra.mxu0 %v3452
    %v3491 = vpop.f32.mrf.mxu0
    %v3492 = vadd.f32 0.0, %v3491
    %v3493 = vpop.f32.mrf.mxu0
    %v3494 = vpop.f32.mrf.mxu0
    %v3495 = vpop.f32.mrf.mxu0
    %3496 = vdwg.mxu0
    %3497 = vrot.lane.b32.xlu0 %v3388, 120
    %v3498 = vpop.permute.xlu0 %3497
    %3499 = vrot.lane.b32.xlu0 %v3388, 88
    %v3500 = vpop.permute.xlu0 %3499
    %v3502 = vsel %vm209, %v3498, 0
    %v3505 = vsel %vm209, %v3500, 0
    %3507 = vmatprep.subr.bf16.mxu0 0
    %3508 = vmatpush1.bf16.xpose.msra.mxu0 0
    %3509 = vmatprep.subr.bf16.mxu0 0
    %3510 = vmatpush1.bf16.xpose.msra.mxu0 0
    %3511 = vmatprep.subr.bf16.mxu0 0
    %3512 = vmatpush1.bf16.xpose.msra.mxu0 0
    %3513 = vmatprep.subr.bf16.mxu0 0
    %3514 = vmatpush1.bf16.xpose.msra.mxu0 0
    %3515 = vmatprep.subr.bf16.mxu0 0
    %3516 = vmatpush1.bf16.xpose.msra.mxu0 0
    %3517 = vmatprep.subr.bf16.mxu0 0
    %3518 = vmatpush1.bf16.xpose.msra.mxu0 0
    %3519 = vmatprep.subr.bf16.mxu0 0
    %3520 = vmatpush1.bf16.xpose.msra.mxu0 0
    %3521 = vmatprep.subr.bf16.mxu0 0
    %3522 = vmatpush1.bf16.xpose.msra.mxu0 %v3505
    %3523 = vmatprep.subr.bf16.mxu0 0
    %3524 = vmatpush2.bf16.xpose.msra.mxu0 0
    %3525 = vmatprep.subr.bf16.mxu0 0
    %3526 = vmatpush2.bf16.xpose.msra.mxu0 0
    %3527 = vmatprep.subr.bf16.mxu0 0
    %3528 = vmatpush2.bf16.xpose.msra.mxu0 0
    %3529 = vmatprep.subr.bf16.mxu0 0
    %3530 = vmatpush2.bf16.xpose.msra.mxu0 0
    %3531 = vmatprep.subr.bf16.mxu0 0
    %3532 = vmatpush2.bf16.xpose.msra.mxu0 0
    %3533 = vmatprep.subr.bf16.mxu0 0
    %3534 = vmatpush2.bf16.xpose.msra.mxu0 0
    %3535 = vmatprep.subr.bf16.mxu0 0
    %3536 = vmatpush2.bf16.xpose.msra.mxu0 0
    %3537 = vmatprep.subr.bf16.mxu0 0
    %3538 = vmatpush2.bf16.xpose.msra.mxu0 0
    %3539 = vmatprep.mubr.bf16.mxu0 0
    %3540 = vmatmul.mubr.bf16.gmra.mxu0 %v3502
    %v3541 = vpop.f32.mrf.mxu0
    %v3542 = vadd.f32 0.0, %v3541
    %v3543 = vpop.f32.mrf.mxu0
    %v3544 = vpop.f32.mrf.mxu0
    %v3545 = vpop.f32.mrf.mxu0
    %3546 = vdwg.mxu0
    %v3547 = vsel %vm209, %v3542, -inf
    %3548 = vmax.xlane.f32.xlu0 %v3547
    %v3549 = vpop.xlane.xlu0 %3548
    %v3550 = vsub.f32 %v3542, %v3549
    %v3551 = vmul.f32 %v3550, 1.442695
    %v3552 = vpow.pop %v3551
    %v3553 = vsel %vm209, %v3552, 0.0
    %3554 = vadd.xlane.f32.xlu0 %v3553
    %v3555 = vpop.xlane.xlu0 %3554
    %v3556 = vrcp.pop %v3555
    %v3557 = vmul.f32 %v3552, %v3556
    %v3558 = vpack.c.bf16 %v3557, %v3557
    %3559 = vrot.lane.b32.xlu0 %v3388, 56
    %v3560 = vpop.permute.xlu0 %3559
    %v3562 = vsel %vm209, %v3558, 0
    %v3565 = vsel %vm273, %v3560, 0
    %3567 = vmatprep.subr.bf16.mxu0 0
    %3568 = vmatpush1.bf16.msra.mxu0 0
    %3569 = vmatprep.subr.bf16.mxu0 0
    %3570 = vmatpush1.bf16.msra.mxu0 0
    %3571 = vmatprep.subr.bf16.mxu0 0
    %3572 = vmatpush1.bf16.msra.mxu0 0
    %3573 = vmatprep.subr.bf16.mxu0 0
    %3574 = vmatpush1.bf16.msra.mxu0 0
    %3575 = vmatprep.subr.bf16.mxu0 0
    %3576 = vmatpush1.bf16.msra.mxu0 0
    %3577 = vmatprep.subr.bf16.mxu0 0
    %3578 = vmatpush1.bf16.msra.mxu0 0
    %3579 = vmatprep.subr.bf16.mxu0 0
    %3580 = vmatpush1.bf16.msra.mxu0 0
    %3581 = vmatprep.subr.bf16.mxu0 0
    %3582 = vmatpush1.bf16.msra.mxu0 %v3565
    %3583 = vmatprep.subr.bf16.mxu0 0
    %3584 = vmatpush2.bf16.msra.mxu0 0
    %3585 = vmatprep.subr.bf16.mxu0 0
    %3586 = vmatpush2.bf16.msra.mxu0 0
    %3587 = vmatprep.subr.bf16.mxu0 0
    %3588 = vmatpush2.bf16.msra.mxu0 0
    %3589 = vmatprep.subr.bf16.mxu0 0
    %3590 = vmatpush2.bf16.msra.mxu0 0
    %3591 = vmatprep.subr.bf16.mxu0 0
    %3592 = vmatpush2.bf16.msra.mxu0 0
    %3593 = vmatprep.subr.bf16.mxu0 0
    %3594 = vmatpush2.bf16.msra.mxu0 0
    %3595 = vmatprep.subr.bf16.mxu0 0
    %3596 = vmatpush2.bf16.msra.mxu0 0
    %3597 = vmatprep.subr.bf16.mxu0 0
    %3598 = vmatpush2.bf16.msra.mxu0 0
    %3599 = vmatprep.mubr.bf16.mxu0 0
    %3600 = vmatmul.mubr.bf16.gmra.mxu0 %v3562
    %v3601 = vpop.f32.mrf.mxu0
    %v3602 = vadd.f32 0.0, %v3601
    %v3603 = vpop.f32.mrf.mxu0
    %v3604 = vpop.f32.mrf.mxu0
    %v3605 = vpop.f32.mrf.mxu0
    %3606 = vdwg.mxu0
    %3607 = vrot.lane.b32.xlu0 %v3388, 112
    %v3608 = vpop.permute.xlu0 %3607
    %3609 = vrot.lane.b32.xlu0 %v3388, 80
    %v3610 = vpop.permute.xlu0 %3609
    %v3612 = vsel %vm209, %v3608, 0
    %v3615 = vsel %vm209, %v3610, 0
    %3617 = vmatprep.subr.bf16.mxu0 0
    %3618 = vmatpush1.bf16.xpose.msra.mxu0 0
    %3619 = vmatprep.subr.bf16.mxu0 0
    %3620 = vmatpush1.bf16.xpose.msra.mxu0 0
    %3621 = vmatprep.subr.bf16.mxu0 0
    %3622 = vmatpush1.bf16.xpose.msra.mxu0 0
    %3623 = vmatprep.subr.bf16.mxu0 0
    %3624 = vmatpush1.bf16.xpose.msra.mxu0 0
    %3625 = vmatprep.subr.bf16.mxu0 0
    %3626 = vmatpush1.bf16.xpose.msra.mxu0 0
    %3627 = vmatprep.subr.bf16.mxu0 0
    %3628 = vmatpush1.bf16.xpose.msra.mxu0 0
    %3629 = vmatprep.subr.bf16.mxu0 0
    %3630 = vmatpush1.bf16.xpose.msra.mxu0 0
    %3631 = vmatprep.subr.bf16.mxu0 0
    %3632 = vmatpush1.bf16.xpose.msra.mxu0 %v3615
    %3633 = vmatprep.subr.bf16.mxu0 0
    %3634 = vmatpush2.bf16.xpose.msra.mxu0 0
    %3635 = vmatprep.subr.bf16.mxu0 0
    %3636 = vmatpush2.bf16.xpose.msra.mxu0 0
    %3637 = vmatprep.subr.bf16.mxu0 0
    %3638 = vmatpush2.bf16.xpose.msra.mxu0 0
    %3639 = vmatprep.subr.bf16.mxu0 0
    %3640 = vmatpush2.bf16.xpose.msra.mxu0 0
    %3641 = vmatprep.subr.bf16.mxu0 0
    %3642 = vmatpush2.bf16.xpose.msra.mxu0 0
    %3643 = vmatprep.subr.bf16.mxu0 0
    %3644 = vmatpush2.bf16.xpose.msra.mxu0 0
    %3645 = vmatprep.subr.bf16.mxu0 0
    %3646 = vmatpush2.bf16.xpose.msra.mxu0 0
    %3647 = vmatprep.subr.bf16.mxu0 0
    %3648 = vmatpush2.bf16.xpose.msra.mxu0 0
    %3649 = vmatprep.mubr.bf16.mxu0 0
    %3650 = vmatmul.mubr.bf16.gmra.mxu0 %v3612
    %v3651 = vpop.f32.mrf.mxu0
    %v3652 = vadd.f32 0.0, %v3651
    %v3653 = vpop.f32.mrf.mxu0
    %v3654 = vpop.f32.mrf.mxu0
    %v3655 = vpop.f32.mrf.mxu0
    %3656 = vdwg.mxu0
    %v3657 = vsel %vm209, %v3652, -inf
    %3658 = vmax.xlane.f32.xlu0 %v3657
    %v3659 = vpop.xlane.xlu0 %3658
    %v3660 = vsub.f32 %v3652, %v3659
    %v3661 = vmul.f32 %v3660, 1.442695
    %v3662 = vpow.pop %v3661
    %v3663 = vsel %vm209, %v3662, 0.0
    %3664 = vadd.xlane.f32.xlu0 %v3663
    %v3665 = vpop.xlane.xlu0 %3664
    %v3666 = vrcp.pop %v3665
    %v3667 = vmul.f32 %v3662, %v3666
    %v3668 = vpack.c.bf16 %v3667, %v3667
    %3669 = vrot.lane.b32.xlu0 %v3388, 48
    %v3670 = vpop.permute.xlu0 %3669
    %v3672 = vsel %vm209, %v3668, 0
    %v3675 = vsel %vm273, %v3670, 0
    %3677 = vmatprep.subr.bf16.mxu0 0
    %3678 = vmatpush1.bf16.msra.mxu0 0
    %3679 = vmatprep.subr.bf16.mxu0 0
    %3680 = vmatpush1.bf16.msra.mxu0 0
    %3681 = vmatprep.subr.bf16.mxu0 0
    %3682 = vmatpush1.bf16.msra.mxu0 0
    %3683 = vmatprep.subr.bf16.mxu0 0
    %3684 = vmatpush1.bf16.msra.mxu0 0
    %3685 = vmatprep.subr.bf16.mxu0 0
    %3686 = vmatpush1.bf16.msra.mxu0 0
    %3687 = vmatprep.subr.bf16.mxu0 0
    %3688 = vmatpush1.bf16.msra.mxu0 0
    %3689 = vmatprep.subr.bf16.mxu0 0
    %3690 = vmatpush1.bf16.msra.mxu0 0
    %3691 = vmatprep.subr.bf16.mxu0 0
    %3692 = vmatpush1.bf16.msra.mxu0 %v3675
    %3693 = vmatprep.subr.bf16.mxu0 0
    %3694 = vmatpush2.bf16.msra.mxu0 0
    %3695 = vmatprep.subr.bf16.mxu0 0
    %3696 = vmatpush2.bf16.msra.mxu0 0
    %3697 = vmatprep.subr.bf16.mxu0 0
    %3698 = vmatpush2.bf16.msra.mxu0 0
    %3699 = vmatprep.subr.bf16.mxu0 0
    %3700 = vmatpush2.bf16.msra.mxu0 0
    %3701 = vmatprep.subr.bf16.mxu0 0
    %3702 = vmatpush2.bf16.msra.mxu0 0
    %3703 = vmatprep.subr.bf16.mxu0 0
    %3704 = vmatpush2.bf16.msra.mxu0 0
    %3705 = vmatprep.subr.bf16.mxu0 0
    %3706 = vmatpush2.bf16.msra.mxu0 0
    %3707 = vmatprep.subr.bf16.mxu0 0
    %3708 = vmatpush2.bf16.msra.mxu0 0
    %3709 = vmatprep.mubr.bf16.mxu0 0
    %3710 = vmatmul.mubr.bf16.gmra.mxu0 %v3672
    %v3711 = vpop.f32.mrf.mxu0
    %v3712 = vadd.f32 0.0, %v3711
    %v3713 = vpop.f32.mrf.mxu0
    %v3714 = vpop.f32.mrf.mxu0
    %v3715 = vpop.f32.mrf.mxu0
    %3716 = vdwg.mxu0
    %3717 = vrot.lane.b32.xlu0 %v3388, 104
    %v3718 = vpop.permute.xlu0 %3717
    %3719 = vrot.lane.b32.xlu0 %v3388, 72
    %v3720 = vpop.permute.xlu0 %3719
    %v3722 = vsel %vm209, %v3718, 0
    %v3725 = vsel %vm209, %v3720, 0
    %3727 = vmatprep.subr.bf16.mxu0 0
    %3728 = vmatpush1.bf16.xpose.msra.mxu0 0
    %3729 = vmatprep.subr.bf16.mxu0 0
    %3730 = vmatpush1.bf16.xpose.msra.mxu0 0
    %3731 = vmatprep.subr.bf16.mxu0 0
    %3732 = vmatpush1.bf16.xpose.msra.mxu0 0
    %3733 = vmatprep.subr.bf16.mxu0 0
    %3734 = vmatpush1.bf16.xpose.msra.mxu0 0
    %3735 = vmatprep.subr.bf16.mxu0 0
    %3736 = vmatpush1.bf16.xpose.msra.mxu0 0
    %3737 = vmatprep.subr.bf16.mxu0 0
    %3738 = vmatpush1.bf16.xpose.msra.mxu0 0
    %3739 = vmatprep.subr.bf16.mxu0 0
    %3740 = vmatpush1.bf16.xpose.msra.mxu0 0
    %3741 = vmatprep.subr.bf16.mxu0 0
    %3742 = vmatpush1.bf16.xpose.msra.mxu0 %v3725
    %3743 = vmatprep.subr.bf16.mxu0 0
    %3744 = vmatpush2.bf16.xpose.msra.mxu0 0
    %3745 = vmatprep.subr.bf16.mxu0 0
    %3746 = vmatpush2.bf16.xpose.msra.mxu0 0
    %3747 = vmatprep.subr.bf16.mxu0 0
    %3748 = vmatpush2.bf16.xpose.msra.mxu0 0
    %3749 = vmatprep.subr.bf16.mxu0 0
    %3750 = vmatpush2.bf16.xpose.msra.mxu0 0
    %3751 = vmatprep.subr.bf16.mxu0 0
    %3752 = vmatpush2.bf16.xpose.msra.mxu0 0
    %3753 = vmatprep.subr.bf16.mxu0 0
    %3754 = vmatpush2.bf16.xpose.msra.mxu0 0
    %3755 = vmatprep.subr.bf16.mxu0 0
    %3756 = vmatpush2.bf16.xpose.msra.mxu0 0
    %3757 = vmatprep.subr.bf16.mxu0 0
    %3758 = vmatpush2.bf16.xpose.msra.mxu0 0
    %3759 = vmatprep.mubr.bf16.mxu0 0
    %3760 = vmatmul.mubr.bf16.gmra.mxu0 %v3722
    %v3761 = vpop.f32.mrf.mxu0
    %v3762 = vadd.f32 0.0, %v3761
    %v3763 = vpop.f32.mrf.mxu0
    %v3764 = vpop.f32.mrf.mxu0
    %v3765 = vpop.f32.mrf.mxu0
    %3766 = vdwg.mxu0
    %v3767 = vsel %vm209, %v3762, -inf
    %3768 = vmax.xlane.f32.xlu0 %v3767
    %v3769 = vpop.xlane.xlu0 %3768
    %v3770 = vsub.f32 %v3762, %v3769
    %v3771 = vmul.f32 %v3770, 1.442695
    %v3772 = vpow.pop %v3771
    %v3773 = vsel %vm209, %v3772, 0.0
    %3774 = vadd.xlane.f32.xlu0 %v3773
    %v3775 = vpop.xlane.xlu0 %3774
    %v3776 = vrcp.pop %v3775
    %v3777 = vmul.f32 %v3772, %v3776
    %v3778 = vpack.c.bf16 %v3777, %v3777
    %3779 = vrot.lane.b32.xlu0 %v3388, 40
    %v3780 = vpop.permute.xlu0 %3779
    %v3782 = vsel %vm209, %v3778, 0
    %v3785 = vsel %vm273, %v3780, 0
    %3787 = vmatprep.subr.bf16.mxu0 0
    %3788 = vmatpush1.bf16.msra.mxu0 0
    %3789 = vmatprep.subr.bf16.mxu0 0
    %3790 = vmatpush1.bf16.msra.mxu0 0
    %3791 = vmatprep.subr.bf16.mxu0 0
    %3792 = vmatpush1.bf16.msra.mxu0 0
    %3793 = vmatprep.subr.bf16.mxu0 0
    %3794 = vmatpush1.bf16.msra.mxu0 0
    %3795 = vmatprep.subr.bf16.mxu0 0
    %3796 = vmatpush1.bf16.msra.mxu0 0
    %3797 = vmatprep.subr.bf16.mxu0 0
    %3798 = vmatpush1.bf16.msra.mxu0 0
    %3799 = vmatprep.subr.bf16.mxu0 0
    %3800 = vmatpush1.bf16.msra.mxu0 0
    %3801 = vmatprep.subr.bf16.mxu0 0
    %3802 = vmatpush1.bf16.msra.mxu0 %v3785
    %3803 = vmatprep.subr.bf16.mxu0 0
    %3804 = vmatpush2.bf16.msra.mxu0 0
    %3805 = vmatprep.subr.bf16.mxu0 0
    %3806 = vmatpush2.bf16.msra.mxu0 0
    %3807 = vmatprep.subr.bf16.mxu0 0
    %3808 = vmatpush2.bf16.msra.mxu0 0
    %3809 = vmatprep.subr.bf16.mxu0 0
    %3810 = vmatpush2.bf16.msra.mxu0 0
    %3811 = vmatprep.subr.bf16.mxu0 0
    %3812 = vmatpush2.bf16.msra.mxu0 0
    %3813 = vmatprep.subr.bf16.mxu0 0
    %3814 = vmatpush2.bf16.msra.mxu0 0
    %3815 = vmatprep.subr.bf16.mxu0 0
    %3816 = vmatpush2.bf16.msra.mxu0 0
    %3817 = vmatprep.subr.bf16.mxu0 0
    %3818 = vmatpush2.bf16.msra.mxu0 0
    %3819 = vmatprep.mubr.bf16.mxu0 0
    %3820 = vmatmul.mubr.bf16.gmra.mxu0 %v3782
    %v3821 = vpop.f32.mrf.mxu0
    %v3822 = vadd.f32 0.0, %v3821
    %v3823 = vpop.f32.mrf.mxu0
    %v3824 = vpop.f32.mrf.mxu0
    %v3825 = vpop.f32.mrf.mxu0
    %3826 = vdwg.mxu0
    %3828 = vrot.lane.b32.xlu0 %v3602, 8
    %v3829 = vpop.permute.xlu0 %3828
    %3832 = vrot.lane.b32.xlu0 %v3712, 16
    %v3833 = vpop.permute.xlu0 %3832
    %3836 = vrot.lane.b32.xlu0 %v3822, 24
    %v3837 = vpop.permute.xlu0 %3836
    %v3839 = vsel %vm209, %v3492, %v3829
    %v3840 = vsel %vm660, %v3839, %v3833
    %v3841 = vsel %vm662, %v3840, %v3837
    %3843 = vrot.lane.b32.xlu0 %v377, 8
    %v3844 = vpop.permute.xlu0 %3843
    %3847 = vrot.lane.b32.xlu0 %v487, 16
    %v3848 = vpop.permute.xlu0 %3847
    %3851 = vrot.lane.b32.xlu0 %v597, 24
    %v3852 = vpop.permute.xlu0 %3851
    %3855 = vrot.lane.b32.xlu0 %v723, 32
    %v3856 = vpop.permute.xlu0 %3855
    %3859 = vrot.lane.b32.xlu0 %v833, 40
    %v3860 = vpop.permute.xlu0 %3859
    %3863 = vrot.lane.b32.xlu0 %v943, 48
    %v3864 = vpop.permute.xlu0 %3863
    %3867 = vrot.lane.b32.xlu0 %v1053, 56
    %v3868 = vpop.permute.xlu0 %3867
    %3871 = vrot.lane.b32.xlu0 %v1177, 64
    %v3872 = vpop.permute.xlu0 %3871
    %3875 = vrot.lane.b32.xlu0 %v1287, 72
    %v3876 = vpop.permute.xlu0 %3875
    %3879 = vrot.lane.b32.xlu0 %v1397, 80
    %v3880 = vpop.permute.xlu0 %3879
    %3883 = vrot.lane.b32.xlu0 %v1507, 88
    %v3884 = vpop.permute.xlu0 %3883
    %3887 = vrot.lane.b32.xlu0 %v1631, 96
    %v3888 = vpop.permute.xlu0 %3887
    %3891 = vrot.lane.b32.xlu0 %v1741, 104
    %v3892 = vpop.permute.xlu0 %3891
    %3895 = vrot.lane.b32.xlu0 %v1851, 112
    %v3896 = vpop.permute.xlu0 %3895
    %3899 = vrot.lane.b32.xlu0 %v1961, 120
    %v3900 = vpop.permute.xlu0 %3899
    %v3902 = vsel %vm209, %v266, %v3844
    %v3903 = vsel %vm660, %v3902, %v3848
    %v3904 = vsel %vm662, %v3903, %v3852
    %v3905 = vsel %vm115, %v3904, %v3856
    %vm3906 = vcmask 326656
    %v3907 = vsel %vm3906, %v3905, %v3860
    %vm3908 = vcmask 392192
    %v3909 = vsel %vm3908, %v3907, %v3864
    %vm3910 = vcmask 457728
    %v3911 = vsel %vm3910, %v3909, %v3868
    %vm3912 = vcmask 523264
    %v3913 = vsel %vm3912, %v3911, %v3872
    %vm3914 = vcmask 588800
    %v3915 = vsel %vm3914, %v3913, %v3876
    %vm3916 = vcmask 654336
    %v3917 = vsel %vm3916, %v3915, %v3880
    %vm3918 = vcmask 719872
    %v3919 = vsel %vm3918, %v3917, %v3884
    %vm3920 = vcmask 785408
    %v3921 = vsel %vm3920, %v3919, %v3888
    %vm3922 = vcmask 850944
    %v3923 = vsel %vm3922, %v3921, %v3892
    %vm3924 = vcmask 916480
    %v3925 = vsel %vm3924, %v3923, %v3896
    %vm3926 = vcmask 982016
    %v3927 = vsel %vm3926, %v3925, %v3900
    %3929 = vrot.lane.b32.xlu0 %v2195, 8
    %v3930 = vpop.permute.xlu0 %3929
    %3933 = vrot.lane.b32.xlu0 %v2305, 16
    %v3934 = vpop.permute.xlu0 %3933
    %3937 = vrot.lane.b32.xlu0 %v2415, 24
    %v3938 = vpop.permute.xlu0 %3937
    %3941 = vrot.lane.b32.xlu0 %v2539, 32
    %v3942 = vpop.permute.xlu0 %3941
    %3945 = vrot.lane.b32.xlu0 %v2649, 40
    %v3946 = vpop.permute.xlu0 %3945
    %3949 = vrot.lane.b32.xlu0 %v2759, 48
    %v3950 = vpop.permute.xlu0 %3949
    %3953 = vrot.lane.b32.xlu0 %v2869, 56
    %v3954 = vpop.permute.xlu0 %3953
    %3957 = vrot.lane.b32.xlu0 %v2993, 64
    %v3958 = vpop.permute.xlu0 %3957
    %3961 = vrot.lane.b32.xlu0 %v3103, 72
    %v3962 = vpop.permute.xlu0 %3961
    %3965 = vrot.lane.b32.xlu0 %v3213, 80
    %v3966 = vpop.permute.xlu0 %3965
    %3969 = vrot.lane.b32.xlu0 %v3323, 88
    %v3970 = vpop.permute.xlu0 %3969
    %3973 = vrot.lane.b32.xlu0 %v3447, 96
    %v3974 = vpop.permute.xlu0 %3973
    %3977 = vrot.lane.b32.xlu0 %v3557, 104
    %v3978 = vpop.permute.xlu0 %3977
    %3981 = vrot.lane.b32.xlu0 %v3667, 112
    %v3982 = vpop.permute.xlu0 %3981
    %3985 = vrot.lane.b32.xlu0 %v3777, 120
    %v3986 = vpop.permute.xlu0 %3985
    %v3988 = vsel %vm209, %v2085, %v3930
    %v3989 = vsel %vm660, %v3988, %v3934
    %v3990 = vsel %vm662, %v3989, %v3938
    %v3991 = vsel %vm115, %v3990, %v3942
    %v3992 = vsel %vm3906, %v3991, %v3946
    %v3993 = vsel %vm3908, %v3992, %v3950
    %v3994 = vsel %vm3910, %v3993, %v3954
    %v3995 = vsel %vm3912, %v3994, %v3958
    %v3996 = vsel %vm3914, %v3995, %v3962
    %v3997 = vsel %vm3916, %v3996, %v3966
    %v3998 = vsel %vm3918, %v3997, %v3970
    %v3999 = vsel %vm3920, %v3998, %v3974
    %v4000 = vsel %vm3922, %v3999, %v3978
    %v4001 = vsel %vm3924, %v4000, %v3982
    %v4002 = vsel %vm3926, %v4001, %v3986
    %4003 = vst [vmem:[#allocation10] sm:$0xff] %v3927
    %4004 = vst [vmem:[#allocation10 + $0x8] sm:$0xff] %v4002
    %v4005 = vpack.c.bf16 %v1117, %v663
    %v4006 = vpack.c.bf16 %v2025, %v1571
    %v4007 = vpack.c.bf16 %v2933, %v2479
    %v4008 = vpack.c.bf16 %v3841, %v3387
    %v4009 = vld [vmem:[#allocation7] sm:$0xf]
    %v4010 = vld [vmem:[#allocation7 + $0x4] sm:$0xf]
    %v4011 = vld [vmem:[#allocation7 + $0x8] sm:$0xf]
    %v4012 = vld [vmem:[#allocation7 + $0xc] sm:$0xf]
    %v4013 = vld [vmem:[#allocation8] sm:$0x1]
    %v4015 = vlaneseq
    %v4016 = vshrl.u32 %v4015, 7
    %v4017 = vsub.s32 0, %v4016
    %v4018 = vrot.slane %v4013, %v4017
    %v4024 = vunpack.c.l.b16 %v4009
    %v4025 = vunpack.c.l.b16 %v4010
    %v4026 = vunpack.c.l.b16 %v4011
    %v4027 = vunpack.c.l.b16 %v4012
    %v4028 = vpack.c.b16 %v4025, %v4024
    %v4029 = vpack.c.b16 %v4027, %v4026
    %v4033 = vsel %vm115, %v4005, 0
    %v4036 = vsel %vm115, %v4006, 0
    %v4039 = vsel %vm115, %v4007, 0
    %v4042 = vsel %vm115, %v4008, 0
    %4044 = vmatprep.subr.bf16.mxu0 0
    %4045 = vmatpush1.bf16.msra.mxu0 0
    %4046 = vmatprep.subr.bf16.mxu0 0
    %4047 = vmatpush1.bf16.msra.mxu0 0
    %4048 = vmatprep.subr.bf16.mxu0 0
    %4049 = vmatpush1.bf16.msra.mxu0 0
    %4050 = vmatprep.subr.bf16.mxu0 0
    %4051 = vmatpush1.bf16.msra.mxu0 0
    %4052 = vmatprep.subr.bf16.mxu0 0
    %4053 = vmatpush1.bf16.msra.mxu0 0
    %4054 = vmatprep.subr.bf16.mxu0 0
    %4055 = vmatpush1.bf16.msra.mxu0 0
    %4056 = vmatprep.subr.bf16.mxu0 0
    %4057 = vmatpush1.bf16.msra.mxu0 %v4029
    %4058 = vmatprep.subr.bf16.mxu0 0
    %4059 = vmatpush1.bf16.msra.mxu0 %v4028
    %4060 = vmatprep.subr.bf16.mxu0 0
    %4061 = vmatpush2.bf16.msra.mxu0 0
    %4062 = vmatprep.subr.bf16.mxu0 0
    %4063 = vmatpush2.bf16.msra.mxu0 0
    %4064 = vmatprep.subr.bf16.mxu0 0
    %4065 = vmatpush2.bf16.msra.mxu0 0
    %4066 = vmatprep.subr.bf16.mxu0 0
    %4067 = vmatpush2.bf16.msra.mxu0 0
    %4068 = vmatprep.subr.bf16.mxu0 0
    %4069 = vmatpush2.bf16.msra.mxu0 0
    %4070 = vmatprep.subr.bf16.mxu0 0
    %4071 = vmatpush2.bf16.msra.mxu0 0
    %4072 = vmatprep.subr.bf16.mxu0 0
    %4073 = vmatpush2.bf16.msra.mxu0 0
    %4074 = vmatprep.subr.bf16.mxu0 0
    %4075 = vmatpush2.bf16.msra.mxu0 0
    %4076 = vmatprep.mubr.bf16.mxu0 0
    %4077 = vmatmul.mubr.bf16.gmra.mxu0 %v4033
    %v4078 = vpop.f32.mrf.mxu0
    %v4079 = vadd.f32 %v4018, %v4078
    %v4080 = vpop.f32.mrf.mxu0
    %v4081 = vpop.f32.mrf.mxu0
    %v4082 = vadd.f32 %v4018, %v4081
    %v4083 = vpop.f32.mrf.mxu0
    %4084 = vmatprep.mubr.bf16.mxu0 0
    %4085 = vmatmul.mubr.bf16.gmra.mxu0 %v4036
    %v4086 = vpop.f32.mrf.mxu0
    %v4087 = vadd.f32 %v4018, %v4086
    %v4088 = vpop.f32.mrf.mxu0
    %v4089 = vpop.f32.mrf.mxu0
    %v4090 = vadd.f32 %v4018, %v4089
    %v4091 = vpop.f32.mrf.mxu0
    %4092 = vmatprep.mubr.bf16.mxu0 0
    %4093 = vmatmul.mubr.bf16.gmra.mxu0 %v4039
    %v4094 = vpop.f32.mrf.mxu0
    %v4095 = vadd.f32 %v4018, %v4094
    %v4096 = vpop.f32.mrf.mxu0
    %v4097 = vpop.f32.mrf.mxu0
    %v4098 = vadd.f32 %v4018, %v4097
    %v4099 = vpop.f32.mrf.mxu0
    %4100 = vmatprep.mubr.bf16.mxu0 0
    %4101 = vmatmul.mubr.bf16.gmra.mxu0 %v4042
    %v4102 = vpop.f32.mrf.mxu0
    %v4103 = vadd.f32 %v4018, %v4102
    %v4104 = vpop.f32.mrf.mxu0
    %v4105 = vpop.f32.mrf.mxu0
    %v4106 = vadd.f32 %v4018, %v4105
    %v4107 = vpop.f32.mrf.mxu0
    %4108 = vdwg.mxu0
    %4109 = vst.msk [vmem:[%s6] sm:$0xff] %vm115, %v4079
    %4110 = vst.msk [vmem:[%s6 + $0x8] sm:$0xff] %vm115, %v4082
    %4111 = vst.msk [vmem:[%s6 + $0x10] sm:$0xff] %vm115, %v4087
    %4112 = vst.msk [vmem:[%s6 + $0x18] sm:$0xff] %vm115, %v4090
    %4113 = vst.msk [vmem:[%s6 + $0x20] sm:$0xff] %vm115, %v4095
    %4114 = vst.msk [vmem:[%s6 + $0x28] sm:$0xff] %vm115, %v4098
    %4115 = vst.msk [vmem:[%s6 + $0x30] sm:$0xff] %vm115, %v4103
    %4116 = vst.msk [vmem:[%s6 + $0x38] sm:$0xff] %vm115, %v4106
    // Predicated region
    $region42: #{tpu_custom_call.1} parent=1 // pred_check
      _
    $region43: #{tpu_custom_call.1} parent=1 // pred_check_branch
      %4118 = sbr.rel (0) target = $region45
    $region44: #{tpu_custom_call.1} parent=1 // pred_region
      _
    $region45: #{tpu_custom_call.1} parent=1 // pred_fallthru
      _
    // Predicated region
    $region46: #{tpu_custom_call.1} parent=1 // pred_check
      _
    $region47: #{tpu_custom_call.1} parent=1 // pred_check_branch
      %4120 = sbr.rel (0) target = $region49
    $region48: #{tpu_custom_call.1} parent=1 // pred_region
      %s4122 = ssub.s32 256, 256
      %4123 = vsyncadd [#allocation4], %s4122
      %s4125 = sshll.u32 [#allocation10], 4
      %s4126 = int_to_ptr.vmem [resolvable:$true] %s4125
      %4128 = dma.vmem_to_hbm [thread:$0]  %s4126, 256, %s7, [#allocation4]
    $region49: #{tpu_custom_call.1} parent=1 // pred_fallthru
      _
    // Predicated region
    $region50: #{tpu_custom_call.1} parent=1 // pred_check
      _
    $region51: #{tpu_custom_call.1} parent=1 // pred_check_branch
      %4130 = sbr.rel (0) target = $region53
    $region52: #{tpu_custom_call.1} parent=1 // pred_region
      _
    $region53: #{tpu_custom_call.1} parent=1 // pred_fallthru
      _
    // Predicated region
    $region54: #{tpu_custom_call.1} parent=1 // pred_check
      _
    $region55: #{tpu_custom_call.1} parent=1 // pred_check_branch
      %4132 = sbr.rel (0) target = $region57
    $region56: #{tpu_custom_call.1} parent=1 // pred_region
      %4133 = dma.done [#allocation4], 256
    $region57: #{tpu_custom_call.1} parent=1 // pred_fallthru
      _
    %4134 = vsyncpa [#allocation3], 1
    %4135 = vsyncpa [#allocation6], 1
    %4136 = vsyncpa [#allocation9], 1
    %4137 = vsyncpa [#allocation4], 1

</llo_original>
